<compile_context>
chip_gen: v5e
topology: v5e:2x2
jax: 0.10.0
libtpu: 0.0.40
codegen_flags: <defaults>
</compile_context>

<pallas_src>
import functools

import jax
import jax.numpy as jnp
from jax import lax
from jax.experimental import pallas as pl
from jax.experimental.pallas import tpu as pltpu


def _round_up(x, m):
    return ((x + m - 1) // m) * m


# ----------------------------------------------------------------------------
# Weight re-packing glue (PyTorch LSTM layout -> gate-padded, transposed).
# Gate order is PyTorch's [i, f, g, o]; each gate is placed on a 128-lane
# boundary (columns [g*Hp, g*Hp + H)), zero-padded elsewhere.  Zero padding is
# benign: padded hidden columns stay exactly 0 through the recurrence.
# ----------------------------------------------------------------------------
def _pack_ih(w_ih, hp):
    """(4H, E) -> (E, 4*hp)."""
    four_h, e = w_ih.shape
    h = four_h // 4
    out = jnp.zeros((e, 4 * hp), jnp.float32)
    for g in range(4):
        out = out.at[:, g * hp:g * hp + h].set(
            w_ih[g * h:(g + 1) * h, :].T.astype(jnp.float32))
    return out


def _pack_hh(w_hh, hp):
    """(4H, H) -> (hp, 4*hp)."""
    four_h, h = w_hh.shape
    out = jnp.zeros((hp, 4 * hp), jnp.float32)
    for g in range(4):
        out = out.at[0:h, g * hp:g * hp + h].set(
            w_hh[g * h:(g + 1) * h, :].T.astype(jnp.float32))
    return out


def _pack_bias(b, hp):
    """(4H,) -> (1, 4*hp)."""
    four_h = b.shape[0]
    h = four_h // 4
    out = jnp.zeros((1, 4 * hp), jnp.float32)
    for g in range(4):
        out = out.at[0, g * hp:g * hp + h].set(b[g * h:(g + 1) * h].astype(jnp.float32))
    return out


# ----------------------------------------------------------------------------
# Kernel 1: bidirectional LSTM over a padded batch, respecting per-sequence
# lengths (pack_padded_sequence semantics: padded steps do not update state,
# the backward direction effectively starts at each sequence's last token
# because (h0, c0) are zero and masked steps leave the state untouched).
#
# Inputs:
#   embf : (T*B, E)   time-major flattened embeddings (row t*B + b)
#   lens : (B, 1)     int32 sequence lengths
#   wih  : (E, 8*Hp)  [fwd gates | bwd gates], gate-padded, bias NOT included
#   whh_f, whh_b : (Hp, 4*Hp)
#   bias : (1, 8*Hp)  b_ih + b_hh for both directions, gate-padded
# Output:
#   out  : (B, 2*Hp)  [h_fwd_padded | h_bwd_padded]
# ----------------------------------------------------------------------------
def bilstm_kernel(embf_ref, len_ref, wih_ref, whh_f_ref, whh_b_ref, b_ref, out_ref):
    TB, _ = embf_ref.shape
    B = len_ref.shape[0]
    T = TB // B
    Hp = whh_f_ref.shape[0]
    G = 4 * Hp

    lengths = len_ref[...]                       # (B, 1) int32
    whh_f = whh_f_ref[...]                       # (Hp, 4Hp)
    whh_b = whh_b_ref[...]                       # (Hp, 4Hp)

    # --- hoisted input projection: one matmul for all timesteps, both
    #     directions, with the bias folded in (no per-step broadcast). ---
    xproj = (jnp.dot(embf_ref[...], wih_ref[...],
                     preferred_element_type=jnp.float32)
             + b_ref[...])                       # (T*B, 8*Hp)

    def cell(gates, h, c, mask):
        i = jax.nn.sigmoid(gates[:, 0:Hp])
        f = jax.nn.sigmoid(gates[:, Hp:2 * Hp])
        g = jnp.tanh(gates[:, 2 * Hp:3 * Hp])
        o = jax.nn.sigmoid(gates[:, 3 * Hp:4 * Hp])
        c_new = f * c + i * g
        h_new = o * jnp.tanh(c_new)
        return jnp.where(mask, h_new, h), jnp.where(mask, c_new, c)

    h_f = jnp.zeros((B, Hp), jnp.float32)
    c_f = jnp.zeros((B, Hp), jnp.float32)
    h_b = jnp.zeros((B, Hp), jnp.float32)
    c_b = jnp.zeros((B, Hp), jnp.float32)

    # Interleaved forward/backward recurrence; T is static -> fully unrolled,
    # all slices static, and the scheduler sees two independent chains/iter.
    # (For long T, switch to lax.fori_loop over a (T, B, 8Hp) VMEM scratch.)
    for s in range(T):
        tf = s
        tb = T - 1 - s
        xp_f = xproj[tf * B:(tf + 1) * B, 0:G]          # (B, 4Hp)
        xp_b = xproj[tb * B:(tb + 1) * B, G:2 * G]      # (B, 4Hp)
        gates_f = xp_f + jnp.dot(h_f, whh_f, preferred_element_type=jnp.float32)
        gates_b = xp_b + jnp.dot(h_b, whh_b, preferred_element_type=jnp.float32)
        h_f, c_f = cell(gates_f, h_f, c_f, lengths > tf)
        h_b, c_b = cell(gates_b, h_b, c_b, lengths > tb)

    # lane-dense, 128-aligned output slab
    out_ref[:, 0:Hp] = h_f
    out_ref[:, Hp:2 * Hp] = h_b


# ----------------------------------------------------------------------------
# Kernel 2: ComplEx scoring against a tile of entities + BCE(sum) in logits
# form, accumulated across the entity grid into a resident (1,1) output.
# ----------------------------------------------------------------------------
def complex_bce_kernel(rel_ref, head_ref, kb_ref, y_ref, loss_ref, *, num_entities):
    n = pl.program_id(0)
    _, D = rel_ref.shape
    Hh = D // 2
    TN = kb_ref.shape[0]

    head = head_ref[...]                              # (B, D)
    rel = rel_ref[...]                                # (B, D)
    re_h, im_h = head[:, 0:Hh], head[:, Hh:D]
    re_r, im_r = rel[:, 0:Hh], rel[:, Hh:D]

    # complex product fused into one (B, D) row so both re/im contractions run
    # as a single MXU matmul against the raw KB tile (no transpose in HBM).
    s_cat = jnp.concatenate(
        [re_h * re_r - im_h * im_r, re_h * im_r + im_h * re_r], axis=1)   # (B, D)

    # score = s_cat @ kb_tile^T, contracting the last dims of both operands
    score = lax.dot_general(
        s_cat, kb_ref[...], (((1,), (1,)), ((), ())),
        preferred_element_type=jnp.float32)                               # (B, TN)

    y = y_ref[...]                                                        # (B, TN)
    # BCE-with-logits == BCELoss(sigmoid(score)):  softplus(s) - y*s
    per_elem = (jnp.maximum(score, 0.0) - y * score
                + jnp.log(1.0 + jnp.exp(-jnp.abs(score))))

    # mask out padded entity columns
    col = n * TN + lax.broadcasted_iota(jnp.int32, per_elem.shape, 1)
    per_elem = jnp.where(col < num_entities, per_elem, 0.0)

    partial = jnp.sum(jnp.sum(per_elem, axis=1, keepdims=True),
                      axis=0, keepdims=True)                              # (1, 1)

    @pl.when(n == 0)
    def _():
        loss_ref[...] = jnp.zeros_like(loss_ref)

    loss_ref[...] += partial


# ----------------------------------------------------------------------------
# Wrapper (glue): embedding gathers, weight packing, pallas_call plumbing.
# ----------------------------------------------------------------------------
def net_forward(params, sentence, p_head, p_tail, question_len):
    word_emb = params["word_emb"]        # (V, E)
    kb_emb = params["kb_emb"]            # (N, D), D = 2*H

    B, T = sentence.shape
    E = word_emb.shape[1]
    H = params["whh_f"].shape[1]         # weight_hh_l0 is (4H, H)
    N, D = kb_emb.shape
    Hp = _round_up(H, 128)               # gate-padded hidden width

    # --- glue: embedding lookup, time-major flatten, weight packing ---
    embeds = word_emb[sentence].astype(jnp.float32)                    # (B, T, E)
    emb_tm = jnp.transpose(embeds, (1, 0, 2)).reshape(T * B, E)        # (T*B, E)
    lengths = question_len.astype(jnp.int32).reshape(B, 1)

    wih_cat = jnp.concatenate(
        [_pack_ih(params["wih_f"], Hp), _pack_ih(params["wih_b"], Hp)], axis=1)  # (E, 8Hp)
    whh_f = _pack_hh(params["whh_f"], Hp)                               # (Hp, 4Hp)
    whh_b = _pack_hh(params["whh_b"], Hp)
    b_cat = jnp.concatenate(
        [_pack_bias(params["bih_f"] + params["bhh_f"], Hp),
         _pack_bias(params["bih_b"] + params["bhh_b"], Hp)], axis=1)    # (1, 8Hp)

    # --- Pallas kernel 1: BiLSTM final hidden states (gate-padded layout) ---
    hpad = pl.pallas_call(
        bilstm_kernel,
        out_shape=jax.ShapeDtypeStruct((B, 2 * Hp), jnp.float32),
        in_specs=[pl.BlockSpec(memory_space=pltpu.MemorySpace.VMEM)] * 6,
        out_specs=pl.BlockSpec(memory_space=pltpu.MemorySpace.VMEM),
    )(emb_tm, lengths, wih_cat, whh_f, whh_b, b_cat)

    rel_emb = jnp.concatenate([hpad[:, 0:H], hpad[:, Hp:Hp + H]], axis=1)  # (B, 2H)

    # --- glue: KB gather for heads; pad entity axis to the tile size.
    # (In production the KB table / labels would be stored pre-padded once.) ---
    head_e = kb_emb[p_head].astype(jnp.float32)                         # (B, D)

    TN = min(512, _round_up(N, 128))
    N_pad = _round_up(N, TN)
    kb_pad = jnp.zeros((N_pad, D), jnp.float32).at[:N, :].set(kb_emb.astype(jnp.float32))
    y_pad = jnp.zeros((B, N_pad), jnp.float32).at[:, :N].set(p_tail.astype(jnp.float32))
    num_tiles = N_pad // TN

    # --- Pallas kernel 2: entity-tiled ComplEx + BCE(sum), pipelined over N ---
    loss = pl.pallas_call(
        functools.partial(complex_bce_kernel, num_entities=N),
        out_shape=jax.ShapeDtypeStruct((1, 1), jnp.float32),
        grid=(num_tiles,),
        in_specs=[
            pl.BlockSpec((B, D), lambda n: (0, 0)),     # relation rows
            pl.BlockSpec((B, D), lambda n: (0, 0)),     # head rows
            pl.BlockSpec((TN, D), lambda n: (n, 0)),    # KB tile (no transpose)
            pl.BlockSpec((B, TN), lambda n: (0, n)),    # label tile
        ],
        out_specs=pl.BlockSpec((1, 1), lambda n: (0, 0)),   # resident accumulator
        compiler_params=pltpu.CompilerParams(
            dimension_semantics=("arbitrary",)),
    )(rel_emb, head_e, kb_pad, y_pad)

    return loss[0, 0]


# ----------------------------------------------------------------------------
# Deterministic parameter init + example run
# ----------------------------------------------------------------------------
def init_params(key, vocab_size, embedding_dim, hidden_dim, num_entities):
    D = 2 * hidden_dim           # KB / relation dim must equal 2*hidden_dim for ComplEx
    keys = jax.random.split(key, 12)
    bound = 1.0 / jnp.sqrt(hidden_dim)

    def uni(k, shape):
        return jax.random.uniform(k, shape, jnp.float32, -bound, bound)

    params = {
        "word_emb": jax.random.normal(keys[0], (vocab_size, embedding_dim), jnp.float32),
        "kb_emb": 0.1 * jax.random.normal(keys[1], (num_entities, D), jnp.float32),
        # forward direction (PyTorch layout: weight_ih_l0 (4H,E), weight_hh_l0 (4H,H))
        "wih_f": uni(keys[2], (4 * hidden_dim, embedding_dim)),
        "whh_f": uni(keys[3], (4 * hidden_dim, hidden_dim)),
        "bih_f": uni(keys[4], (4 * hidden_dim,)),
        "bhh_f": uni(keys[5], (4 * hidden_dim,)),
        # backward direction (weight_ih_l0_reverse, ...)
        "wih_b": uni(keys[6], (4 * hidden_dim, embedding_dim)),
        "whh_b": uni(keys[7], (4 * hidden_dim, hidden_dim)),
        "bih_b": uni(keys[8], (4 * hidden_dim,)),
        "bhh_b": uni(keys[9], (4 * hidden_dim,)),
    }
    return params


if __name__ == "__main__":
    # small shapes consistent with the module
    B, T = 2, 8                  # batch, max question length
    E = 16                       # embedding_dim
    H = 32                       # hidden_dim
    V = 50                       # vocab_size
    N = 40                       # num_entities (KB embedding dim = 2*H = 64)

    key = jax.random.PRNGKey(0)
    k_par, k_sent, k_head, k_tail = jax.random.split(key, 4)

    params = init_params(k_par, V, E, H, N)

    sentence = jax.random.randint(k_sent, (B, T), 0, V, dtype=jnp.int32)
    question_len = jnp.array([T, 5], dtype=jnp.int32)     # sorted descending, like pack_padded
    p_head = jax.random.randint(k_head, (B,), 0, N, dtype=jnp.int32)
    # multi-hot 0/1 targets for BCE
    p_tail = (jax.random.uniform(k_tail, (B, N)) < 0.1).astype(jnp.float32)

    loss = jax.jit(net_forward)(params, sentence, p_head, p_tail, question_len)
    loss = jax.block_until_ready(loss)

    assert jnp.isfinite(loss), "loss is not finite"
    print("KERNEL_OK")
</pallas_src>

<mosaic_0001>
module attributes {stable_mosaic.version = 11 : i64} {
  func.func @bilstm_kernel(%arg0: memref<16x16xf32, #tpu.memory_space<vmem>>, %arg1: memref<2x1xi32, #tpu.memory_space<vmem>>, %arg2: memref<16x1024xf32, #tpu.memory_space<vmem>>, %arg3: memref<128x512xf32, #tpu.memory_space<vmem>>, %arg4: memref<128x512xf32, #tpu.memory_space<vmem>>, %arg5: memref<1x1024xf32, #tpu.memory_space<vmem>>, %arg6: memref<2x256xf32, #tpu.memory_space<vmem>>) attributes {dimension_semantics = [], scalar_prefetch = 0 : i64, scratch_operands = 0 : i64, tpu.core_type = #tpu.core_type<tc>} {
    %c0 = arith.constant 0 : index
    %c0_0 = arith.constant 0 : index
    %0 = vector.load %arg1[%c0, %c0_0] : memref<2x1xi32, #tpu.memory_space<vmem>>, vector<2x1xi32>
    %c0_1 = arith.constant 0 : index
    %c0_2 = arith.constant 0 : index
    %1 = vector.load %arg3[%c0_1, %c0_2] : memref<128x512xf32, #tpu.memory_space<vmem>>, vector<128x512xf32>
    %c0_3 = arith.constant 0 : index
    %c0_4 = arith.constant 0 : index
    %2 = vector.load %arg4[%c0_3, %c0_4] : memref<128x512xf32, #tpu.memory_space<vmem>>, vector<128x512xf32>
    %c0_5 = arith.constant 0 : index
    %c0_6 = arith.constant 0 : index
    %3 = vector.load %arg0[%c0_5, %c0_6] : memref<16x16xf32, #tpu.memory_space<vmem>>, vector<16x16xf32>
    %c0_7 = arith.constant 0 : index
    %c0_8 = arith.constant 0 : index
    %4 = vector.load %arg2[%c0_7, %c0_8] : memref<16x1024xf32, #tpu.memory_space<vmem>>, vector<16x1024xf32>
    %cst = arith.constant dense<0.000000e+00> : vector<16x1024xf32>
    %5 = tpu.matmul %3, %4, %cst {dimension_numbers = #tpu.dot_dimension_numbers<[1], [0], [0], [1], [0, 0, 1, 1], [], []>} : vector<16x16xf32>, vector<16x1024xf32>, vector<16x1024xf32> -> vector<16x1024xf32>
    %c0_9 = arith.constant 0 : index
    %c0_10 = arith.constant 0 : index
    %6 = vector.load %arg5[%c0_9, %c0_10] : memref<1x1024xf32, #tpu.memory_space<vmem>>, vector<1x1024xf32>
    %7 = vector.broadcast %6 : vector<1x1024xf32> to vector<16x1024xf32>
    %8 = arith.addf %5, %7 : vector<16x1024xf32>
    %cst_11 = arith.constant 0.000000e+00 : f32
    %9 = vector.broadcast %cst_11 : f32 to vector<2x128xf32>
    %cst_12 = arith.constant 0.000000e+00 : f32
    %10 = vector.broadcast %cst_12 : f32 to vector<2x128xf32>
    %cst_13 = arith.constant 0.000000e+00 : f32
    %11 = vector.broadcast %cst_13 : f32 to vector<2x128xf32>
    %cst_14 = arith.constant 0.000000e+00 : f32
    %12 = vector.broadcast %cst_14 : f32 to vector<2x128xf32>
    %13 = vector.extract_strided_slice %8 {offsets = [0, 0], sizes = [2, 512], strides = [1, 1]} : vector<16x1024xf32> to vector<2x512xf32>
    %14 = vector.extract_strided_slice %8 {offsets = [14, 512], sizes = [2, 512], strides = [1, 1]} : vector<16x1024xf32> to vector<2x512xf32>
    %cst_15 = arith.constant dense<0.000000e+00> : vector<2x512xf32>
    %15 = tpu.matmul %9, %1, %cst_15 {dimension_numbers = #tpu.dot_dimension_numbers<[1], [0], [0], [1], [0, 0, 1, 1], [], []>} : vector<2x128xf32>, vector<128x512xf32>, vector<2x512xf32> -> vector<2x512xf32>
    %16 = arith.addf %13, %15 : vector<2x512xf32>
    %cst_16 = arith.constant dense<0.000000e+00> : vector<2x512xf32>
    %17 = tpu.matmul %11, %2, %cst_16 {dimension_numbers = #tpu.dot_dimension_numbers<[1], [0], [0], [1], [0, 0, 1, 1], [], []>} : vector<2x128xf32>, vector<128x512xf32>, vector<2x512xf32> -> vector<2x512xf32>
    %18 = arith.addf %14, %17 : vector<2x512xf32>
    %c0_i32 = arith.constant 0 : i32
    %19 = vector.broadcast %c0_i32 : i32 to vector<2x1xi32>
    %20 = arith.cmpi sgt, %0, %19 : vector<2x1xi32>
    %21 = vector.extract_strided_slice %16 {offsets = [0, 0], sizes = [2, 128], strides = [1, 1]} : vector<2x512xf32> to vector<2x128xf32>
    %22 = arith.negf %21 : vector<2x128xf32>
    %23 = math.exp %22 : vector<2x128xf32>
    %cst_17 = arith.constant 1.000000e+00 : f32
    %24 = vector.broadcast %cst_17 : f32 to vector<2x128xf32>
    %25 = arith.addf %24, %23 : vector<2x128xf32>
    %26 = arith.divf %24, %25 : vector<2x128xf32>
    %27 = vector.extract_strided_slice %16 {offsets = [0, 128], sizes = [2, 128], strides = [1, 1]} : vector<2x512xf32> to vector<2x128xf32>
    %28 = arith.negf %27 : vector<2x128xf32>
    %29 = math.exp %28 : vector<2x128xf32>
    %cst_18 = arith.constant 1.000000e+00 : f32
    %30 = vector.broadcast %cst_18 : f32 to vector<2x128xf32>
    %31 = arith.addf %30, %29 : vector<2x128xf32>
    %32 = arith.divf %30, %31 : vector<2x128xf32>
    %33 = vector.extract_strided_slice %16 {offsets = [0, 256], sizes = [2, 128], strides = [1, 1]} : vector<2x512xf32> to vector<2x128xf32>
    %34 = math.tanh %33 : vector<2x128xf32>
    %35 = vector.extract_strided_slice %16 {offsets = [0, 384], sizes = [2, 128], strides = [1, 1]} : vector<2x512xf32> to vector<2x128xf32>
    %36 = arith.negf %35 : vector<2x128xf32>
    %37 = math.exp %36 : vector<2x128xf32>
    %cst_19 = arith.constant 1.000000e+00 : f32
    %38 = vector.broadcast %cst_19 : f32 to vector<2x128xf32>
    %39 = arith.addf %38, %37 : vector<2x128xf32>
    %40 = arith.divf %38, %39 : vector<2x128xf32>
    %41 = arith.mulf %32, %10 : vector<2x128xf32>
    %42 = arith.mulf %26, %34 : vector<2x128xf32>
    %43 = arith.addf %41, %42 : vector<2x128xf32>
    %44 = math.tanh %43 : vector<2x128xf32>
    %45 = arith.mulf %40, %44 : vector<2x128xf32>
    %46 = vector.shape_cast %20 : vector<2x1xi1> to vector<2x1xi1>
    %47 = vector.broadcast %46 : vector<2x1xi1> to vector<2x128xi1>
    %48 = arith.select %47, %45, %9 : vector<2x128xi1>, vector<2x128xf32>
    %49 = vector.shape_cast %20 : vector<2x1xi1> to vector<2x1xi1>
    %50 = vector.broadcast %49 : vector<2x1xi1> to vector<2x128xi1>
    %51 = arith.select %50, %43, %10 : vector<2x128xi1>, vector<2x128xf32>
    %c7_i32 = arith.constant 7 : i32
    %52 = vector.broadcast %c7_i32 : i32 to vector<2x1xi32>
    %53 = arith.cmpi sgt, %0, %52 : vector<2x1xi32>
    %54 = vector.extract_strided_slice %18 {offsets = [0, 0], sizes = [2, 128], strides = [1, 1]} : vector<2x512xf32> to vector<2x128xf32>
    %55 = arith.negf %54 : vector<2x128xf32>
    %56 = math.exp %55 : vector<2x128xf32>
    %cst_20 = arith.constant 1.000000e+00 : f32
    %57 = vector.broadcast %cst_20 : f32 to vector<2x128xf32>
    %58 = arith.addf %57, %56 : vector<2x128xf32>
    %59 = arith.divf %57, %58 : vector<2x128xf32>
    %60 = vector.extract_strided_slice %18 {offsets = [0, 128], sizes = [2, 128], strides = [1, 1]} : vector<2x512xf32> to vector<2x128xf32>
    %61 = arith.negf %60 : vector<2x128xf32>
    %62 = math.exp %61 : vector<2x128xf32>
    %cst_21 = arith.constant 1.000000e+00 : f32
    %63 = vector.broadcast %cst_21 : f32 to vector<2x128xf32>
    %64 = arith.addf %63, %62 : vector<2x128xf32>
    %65 = arith.divf %63, %64 : vector<2x128xf32>
    %66 = vector.extract_strided_slice %18 {offsets = [0, 256], sizes = [2, 128], strides = [1, 1]} : vector<2x512xf32> to vector<2x128xf32>
    %67 = math.tanh %66 : vector<2x128xf32>
    %68 = vector.extract_strided_slice %18 {offsets = [0, 384], sizes = [2, 128], strides = [1, 1]} : vector<2x512xf32> to vector<2x128xf32>
    %69 = arith.negf %68 : vector<2x128xf32>
    %70 = math.exp %69 : vector<2x128xf32>
    %cst_22 = arith.constant 1.000000e+00 : f32
    %71 = vector.broadcast %cst_22 : f32 to vector<2x128xf32>
    %72 = arith.addf %71, %70 : vector<2x128xf32>
    %73 = arith.divf %71, %72 : vector<2x128xf32>
    %74 = arith.mulf %65, %12 : vector<2x128xf32>
    %75 = arith.mulf %59, %67 : vector<2x128xf32>
    %76 = arith.addf %74, %75 : vector<2x128xf32>
    %77 = math.tanh %76 : vector<2x128xf32>
    %78 = arith.mulf %73, %77 : vector<2x128xf32>
    %79 = vector.shape_cast %53 : vector<2x1xi1> to vector<2x1xi1>
    %80 = vector.broadcast %79 : vector<2x1xi1> to vector<2x128xi1>
    %81 = arith.select %80, %78, %11 : vector<2x128xi1>, vector<2x128xf32>
    %82 = vector.shape_cast %53 : vector<2x1xi1> to vector<2x1xi1>
    %83 = vector.broadcast %82 : vector<2x1xi1> to vector<2x128xi1>
    %84 = arith.select %83, %76, %12 : vector<2x128xi1>, vector<2x128xf32>
    %85 = vector.extract_strided_slice %8 {offsets = [2, 0], sizes = [2, 512], strides = [1, 1]} : vector<16x1024xf32> to vector<2x512xf32>
    %86 = vector.extract_strided_slice %8 {offsets = [12, 512], sizes = [2, 512], strides = [1, 1]} : vector<16x1024xf32> to vector<2x512xf32>
    %cst_23 = arith.constant dense<0.000000e+00> : vector<2x512xf32>
    %87 = tpu.matmul %48, %1, %cst_23 {dimension_numbers = #tpu.dot_dimension_numbers<[1], [0], [0], [1], [0, 0, 1, 1], [], []>} : vector<2x128xf32>, vector<128x512xf32>, vector<2x512xf32> -> vector<2x512xf32>
    %88 = arith.addf %85, %87 : vector<2x512xf32>
    %cst_24 = arith.constant dense<0.000000e+00> : vector<2x512xf32>
    %89 = tpu.matmul %81, %2, %cst_24 {dimension_numbers = #tpu.dot_dimension_numbers<[1], [0], [0], [1], [0, 0, 1, 1], [], []>} : vector<2x128xf32>, vector<128x512xf32>, vector<2x512xf32> -> vector<2x512xf32>
    %90 = arith.addf %86, %89 : vector<2x512xf32>
    %c1_i32 = arith.constant 1 : i32
    %91 = vector.broadcast %c1_i32 : i32 to vector<2x1xi32>
    %92 = arith.cmpi sgt, %0, %91 : vector<2x1xi32>
    %93 = vector.extract_strided_slice %88 {offsets = [0, 0], sizes = [2, 128], strides = [1, 1]} : vector<2x512xf32> to vector<2x128xf32>
    %94 = arith.negf %93 : vector<2x128xf32>
    %95 = math.exp %94 : vector<2x128xf32>
    %cst_25 = arith.constant 1.000000e+00 : f32
    %96 = vector.broadcast %cst_25 : f32 to vector<2x128xf32>
    %97 = arith.addf %96, %95 : vector<2x128xf32>
    %98 = arith.divf %96, %97 : vector<2x128xf32>
    %99 = vector.extract_strided_slice %88 {offsets = [0, 128], sizes = [2, 128], strides = [1, 1]} : vector<2x512xf32> to vector<2x128xf32>
    %100 = arith.negf %99 : vector<2x128xf32>
    %101 = math.exp %100 : vector<2x128xf32>
    %cst_26 = arith.constant 1.000000e+00 : f32
    %102 = vector.broadcast %cst_26 : f32 to vector<2x128xf32>
    %103 = arith.addf %102, %101 : vector<2x128xf32>
    %104 = arith.divf %102, %103 : vector<2x128xf32>
    %105 = vector.extract_strided_slice %88 {offsets = [0, 256], sizes = [2, 128], strides = [1, 1]} : vector<2x512xf32> to vector<2x128xf32>
    %106 = math.tanh %105 : vector<2x128xf32>
    %107 = vector.extract_strided_slice %88 {offsets = [0, 384], sizes = [2, 128], strides = [1, 1]} : vector<2x512xf32> to vector<2x128xf32>
    %108 = arith.negf %107 : vector<2x128xf32>
    %109 = math.exp %108 : vector<2x128xf32>
    %cst_27 = arith.constant 1.000000e+00 : f32
    %110 = vector.broadcast %cst_27 : f32 to vector<2x128xf32>
    %111 = arith.addf %110, %109 : vector<2x128xf32>
    %112 = arith.divf %110, %111 : vector<2x128xf32>
    %113 = arith.mulf %104, %51 : vector<2x128xf32>
    %114 = arith.mulf %98, %106 : vector<2x128xf32>
    %115 = arith.addf %113, %114 : vector<2x128xf32>
    %116 = math.tanh %115 : vector<2x128xf32>
    %117 = arith.mulf %112, %116 : vector<2x128xf32>
    %118 = vector.shape_cast %92 : vector<2x1xi1> to vector<2x1xi1>
    %119 = vector.broadcast %118 : vector<2x1xi1> to vector<2x128xi1>
    %120 = arith.select %119, %117, %48 : vector<2x128xi1>, vector<2x128xf32>
    %121 = vector.shape_cast %92 : vector<2x1xi1> to vector<2x1xi1>
    %122 = vector.broadcast %121 : vector<2x1xi1> to vector<2x128xi1>
    %123 = arith.select %122, %115, %51 : vector<2x128xi1>, vector<2x128xf32>
    %c6_i32 = arith.constant 6 : i32
    %124 = vector.broadcast %c6_i32 : i32 to vector<2x1xi32>
    %125 = arith.cmpi sgt, %0, %124 : vector<2x1xi32>
    %126 = vector.extract_strided_slice %90 {offsets = [0, 0], sizes = [2, 128], strides = [1, 1]} : vector<2x512xf32> to vector<2x128xf32>
    %127 = arith.negf %126 : vector<2x128xf32>
    %128 = math.exp %127 : vector<2x128xf32>
    %cst_28 = arith.constant 1.000000e+00 : f32
    %129 = vector.broadcast %cst_28 : f32 to vector<2x128xf32>
    %130 = arith.addf %129, %128 : vector<2x128xf32>
    %131 = arith.divf %129, %130 : vector<2x128xf32>
    %132 = vector.extract_strided_slice %90 {offsets = [0, 128], sizes = [2, 128], strides = [1, 1]} : vector<2x512xf32> to vector<2x128xf32>
    %133 = arith.negf %132 : vector<2x128xf32>
    %134 = math.exp %133 : vector<2x128xf32>
    %cst_29 = arith.constant 1.000000e+00 : f32
    %135 = vector.broadcast %cst_29 : f32 to vector<2x128xf32>
    %136 = arith.addf %135, %134 : vector<2x128xf32>
    %137 = arith.divf %135, %136 : vector<2x128xf32>
    %138 = vector.extract_strided_slice %90 {offsets = [0, 256], sizes = [2, 128], strides = [1, 1]} : vector<2x512xf32> to vector<2x128xf32>
    %139 = math.tanh %138 : vector<2x128xf32>
    %140 = vector.extract_strided_slice %90 {offsets = [0, 384], sizes = [2, 128], strides = [1, 1]} : vector<2x512xf32> to vector<2x128xf32>
    %141 = arith.negf %140 : vector<2x128xf32>
    %142 = math.exp %141 : vector<2x128xf32>
    %cst_30 = arith.constant 1.000000e+00 : f32
    %143 = vector.broadcast %cst_30 : f32 to vector<2x128xf32>
    %144 = arith.addf %143, %142 : vector<2x128xf32>
    %145 = arith.divf %143, %144 : vector<2x128xf32>
    %146 = arith.mulf %137, %84 : vector<2x128xf32>
    %147 = arith.mulf %131, %139 : vector<2x128xf32>
    %148 = arith.addf %146, %147 : vector<2x128xf32>
    %149 = math.tanh %148 : vector<2x128xf32>
    %150 = arith.mulf %145, %149 : vector<2x128xf32>
    %151 = vector.shape_cast %125 : vector<2x1xi1> to vector<2x1xi1>
    %152 = vector.broadcast %151 : vector<2x1xi1> to vector<2x128xi1>
    %153 = arith.select %152, %150, %81 : vector<2x128xi1>, vector<2x128xf32>
    %154 = vector.shape_cast %125 : vector<2x1xi1> to vector<2x1xi1>
    %155 = vector.broadcast %154 : vector<2x1xi1> to vector<2x128xi1>
    %156 = arith.select %155, %148, %84 : vector<2x128xi1>, vector<2x128xf32>
    %157 = vector.extract_strided_slice %8 {offsets = [4, 0], sizes = [2, 512], strides = [1, 1]} : vector<16x1024xf32> to vector<2x512xf32>
    %158 = vector.extract_strided_slice %8 {offsets = [10, 512], sizes = [2, 512], strides = [1, 1]} : vector<16x1024xf32> to vector<2x512xf32>
    %cst_31 = arith.constant dense<0.000000e+00> : vector<2x512xf32>
    %159 = tpu.matmul %120, %1, %cst_31 {dimension_numbers = #tpu.dot_dimension_numbers<[1], [0], [0], [1], [0, 0, 1, 1], [], []>} : vector<2x128xf32>, vector<128x512xf32>, vector<2x512xf32> -> vector<2x512xf32>
    %160 = arith.addf %157, %159 : vector<2x512xf32>
    %cst_32 = arith.constant dense<0.000000e+00> : vector<2x512xf32>
    %161 = tpu.matmul %153, %2, %cst_32 {dimension_numbers = #tpu.dot_dimension_numbers<[1], [0], [0], [1], [0, 0, 1, 1], [], []>} : vector<2x128xf32>, vector<128x512xf32>, vector<2x512xf32> -> vector<2x512xf32>
    %162 = arith.addf %158, %161 : vector<2x512xf32>
    %c2_i32 = arith.constant 2 : i32
    %163 = vector.broadcast %c2_i32 : i32 to vector<2x1xi32>
    %164 = arith.cmpi sgt, %0, %163 : vector<2x1xi32>
    %165 = vector.extract_strided_slice %160 {offsets = [0, 0], sizes = [2, 128], strides = [1, 1]} : vector<2x512xf32> to vector<2x128xf32>
    %166 = arith.negf %165 : vector<2x128xf32>
    %167 = math.exp %166 : vector<2x128xf32>
    %cst_33 = arith.constant 1.000000e+00 : f32
    %168 = vector.broadcast %cst_33 : f32 to vector<2x128xf32>
    %169 = arith.addf %168, %167 : vector<2x128xf32>
    %170 = arith.divf %168, %169 : vector<2x128xf32>
    %171 = vector.extract_strided_slice %160 {offsets = [0, 128], sizes = [2, 128], strides = [1, 1]} : vector<2x512xf32> to vector<2x128xf32>
    %172 = arith.negf %171 : vector<2x128xf32>
    %173 = math.exp %172 : vector<2x128xf32>
    %cst_34 = arith.constant 1.000000e+00 : f32
    %174 = vector.broadcast %cst_34 : f32 to vector<2x128xf32>
    %175 = arith.addf %174, %173 : vector<2x128xf32>
    %176 = arith.divf %174, %175 : vector<2x128xf32>
    %177 = vector.extract_strided_slice %160 {offsets = [0, 256], sizes = [2, 128], strides = [1, 1]} : vector<2x512xf32> to vector<2x128xf32>
    %178 = math.tanh %177 : vector<2x128xf32>
    %179 = vector.extract_strided_slice %160 {offsets = [0, 384], sizes = [2, 128], strides = [1, 1]} : vector<2x512xf32> to vector<2x128xf32>
    %180 = arith.negf %179 : vector<2x128xf32>
    %181 = math.exp %180 : vector<2x128xf32>
    %cst_35 = arith.constant 1.000000e+00 : f32
    %182 = vector.broadcast %cst_35 : f32 to vector<2x128xf32>
    %183 = arith.addf %182, %181 : vector<2x128xf32>
    %184 = arith.divf %182, %183 : vector<2x128xf32>
    %185 = arith.mulf %176, %123 : vector<2x128xf32>
    %186 = arith.mulf %170, %178 : vector<2x128xf32>
    %187 = arith.addf %185, %186 : vector<2x128xf32>
    %188 = math.tanh %187 : vector<2x128xf32>
    %189 = arith.mulf %184, %188 : vector<2x128xf32>
    %190 = vector.shape_cast %164 : vector<2x1xi1> to vector<2x1xi1>
    %191 = vector.broadcast %190 : vector<2x1xi1> to vector<2x128xi1>
    %192 = arith.select %191, %189, %120 : vector<2x128xi1>, vector<2x128xf32>
    %193 = vector.shape_cast %164 : vector<2x1xi1> to vector<2x1xi1>
    %194 = vector.broadcast %193 : vector<2x1xi1> to vector<2x128xi1>
    %195 = arith.select %194, %187, %123 : vector<2x128xi1>, vector<2x128xf32>
    %c5_i32 = arith.constant 5 : i32
    %196 = vector.broadcast %c5_i32 : i32 to vector<2x1xi32>
    %197 = arith.cmpi sgt, %0, %196 : vector<2x1xi32>
    %198 = vector.extract_strided_slice %162 {offsets = [0, 0], sizes = [2, 128], strides = [1, 1]} : vector<2x512xf32> to vector<2x128xf32>
    %199 = arith.negf %198 : vector<2x128xf32>
    %200 = math.exp %199 : vector<2x128xf32>
    %cst_36 = arith.constant 1.000000e+00 : f32
    %201 = vector.broadcast %cst_36 : f32 to vector<2x128xf32>
    %202 = arith.addf %201, %200 : vector<2x128xf32>
    %203 = arith.divf %201, %202 : vector<2x128xf32>
    %204 = vector.extract_strided_slice %162 {offsets = [0, 128], sizes = [2, 128], strides = [1, 1]} : vector<2x512xf32> to vector<2x128xf32>
    %205 = arith.negf %204 : vector<2x128xf32>
    %206 = math.exp %205 : vector<2x128xf32>
    %cst_37 = arith.constant 1.000000e+00 : f32
    %207 = vector.broadcast %cst_37 : f32 to vector<2x128xf32>
    %208 = arith.addf %207, %206 : vector<2x128xf32>
    %209 = arith.divf %207, %208 : vector<2x128xf32>
    %210 = vector.extract_strided_slice %162 {offsets = [0, 256], sizes = [2, 128], strides = [1, 1]} : vector<2x512xf32> to vector<2x128xf32>
    %211 = math.tanh %210 : vector<2x128xf32>
    %212 = vector.extract_strided_slice %162 {offsets = [0, 384], sizes = [2, 128], strides = [1, 1]} : vector<2x512xf32> to vector<2x128xf32>
    %213 = arith.negf %212 : vector<2x128xf32>
    %214 = math.exp %213 : vector<2x128xf32>
    %cst_38 = arith.constant 1.000000e+00 : f32
    %215 = vector.broadcast %cst_38 : f32 to vector<2x128xf32>
    %216 = arith.addf %215, %214 : vector<2x128xf32>
    %217 = arith.divf %215, %216 : vector<2x128xf32>
    %218 = arith.mulf %209, %156 : vector<2x128xf32>
    %219 = arith.mulf %203, %211 : vector<2x128xf32>
    %220 = arith.addf %218, %219 : vector<2x128xf32>
    %221 = math.tanh %220 : vector<2x128xf32>
    %222 = arith.mulf %217, %221 : vector<2x128xf32>
    %223 = vector.shape_cast %197 : vector<2x1xi1> to vector<2x1xi1>
    %224 = vector.broadcast %223 : vector<2x1xi1> to vector<2x128xi1>
    %225 = arith.select %224, %222, %153 : vector<2x128xi1>, vector<2x128xf32>
    %226 = vector.shape_cast %197 : vector<2x1xi1> to vector<2x1xi1>
    %227 = vector.broadcast %226 : vector<2x1xi1> to vector<2x128xi1>
    %228 = arith.select %227, %220, %156 : vector<2x128xi1>, vector<2x128xf32>
    %229 = vector.extract_strided_slice %8 {offsets = [6, 0], sizes = [2, 512], strides = [1, 1]} : vector<16x1024xf32> to vector<2x512xf32>
    %230 = vector.extract_strided_slice %8 {offsets = [8, 512], sizes = [2, 512], strides = [1, 1]} : vector<16x1024xf32> to vector<2x512xf32>
    %cst_39 = arith.constant dense<0.000000e+00> : vector<2x512xf32>
    %231 = tpu.matmul %192, %1, %cst_39 {dimension_numbers = #tpu.dot_dimension_numbers<[1], [0], [0], [1], [0, 0, 1, 1], [], []>} : vector<2x128xf32>, vector<128x512xf32>, vector<2x512xf32> -> vector<2x512xf32>
    %232 = arith.addf %229, %231 : vector<2x512xf32>
    %cst_40 = arith.constant dense<0.000000e+00> : vector<2x512xf32>
    %233 = tpu.matmul %225, %2, %cst_40 {dimension_numbers = #tpu.dot_dimension_numbers<[1], [0], [0], [1], [0, 0, 1, 1], [], []>} : vector<2x128xf32>, vector<128x512xf32>, vector<2x512xf32> -> vector<2x512xf32>
    %234 = arith.addf %230, %233 : vector<2x512xf32>
    %c3_i32 = arith.constant 3 : i32
    %235 = vector.broadcast %c3_i32 : i32 to vector<2x1xi32>
    %236 = arith.cmpi sgt, %0, %235 : vector<2x1xi32>
    %237 = vector.extract_strided_slice %232 {offsets = [0, 0], sizes = [2, 128], strides = [1, 1]} : vector<2x512xf32> to vector<2x128xf32>
    %238 = arith.negf %237 : vector<2x128xf32>
    %239 = math.exp %238 : vector<2x128xf32>
    %cst_41 = arith.constant 1.000000e+00 : f32
    %240 = vector.broadcast %cst_41 : f32 to vector<2x128xf32>
    %241 = arith.addf %240, %239 : vector<2x128xf32>
    %242 = arith.divf %240, %241 : vector<2x128xf32>
    %243 = vector.extract_strided_slice %232 {offsets = [0, 128], sizes = [2, 128], strides = [1, 1]} : vector<2x512xf32> to vector<2x128xf32>
    %244 = arith.negf %243 : vector<2x128xf32>
    %245 = math.exp %244 : vector<2x128xf32>
    %cst_42 = arith.constant 1.000000e+00 : f32
    %246 = vector.broadcast %cst_42 : f32 to vector<2x128xf32>
    %247 = arith.addf %246, %245 : vector<2x128xf32>
    %248 = arith.divf %246, %247 : vector<2x128xf32>
    %249 = vector.extract_strided_slice %232 {offsets = [0, 256], sizes = [2, 128], strides = [1, 1]} : vector<2x512xf32> to vector<2x128xf32>
    %250 = math.tanh %249 : vector<2x128xf32>
    %251 = vector.extract_strided_slice %232 {offsets = [0, 384], sizes = [2, 128], strides = [1, 1]} : vector<2x512xf32> to vector<2x128xf32>
    %252 = arith.negf %251 : vector<2x128xf32>
    %253 = math.exp %252 : vector<2x128xf32>
    %cst_43 = arith.constant 1.000000e+00 : f32
    %254 = vector.broadcast %cst_43 : f32 to vector<2x128xf32>
    %255 = arith.addf %254, %253 : vector<2x128xf32>
    %256 = arith.divf %254, %255 : vector<2x128xf32>
    %257 = arith.mulf %248, %195 : vector<2x128xf32>
    %258 = arith.mulf %242, %250 : vector<2x128xf32>
    %259 = arith.addf %257, %258 : vector<2x128xf32>
    %260 = math.tanh %259 : vector<2x128xf32>
    %261 = arith.mulf %256, %260 : vector<2x128xf32>
    %262 = vector.shape_cast %236 : vector<2x1xi1> to vector<2x1xi1>
    %263 = vector.broadcast %262 : vector<2x1xi1> to vector<2x128xi1>
    %264 = arith.select %263, %261, %192 : vector<2x128xi1>, vector<2x128xf32>
    %265 = vector.shape_cast %236 : vector<2x1xi1> to vector<2x1xi1>
    %266 = vector.broadcast %265 : vector<2x1xi1> to vector<2x128xi1>
    %267 = arith.select %266, %259, %195 : vector<2x128xi1>, vector<2x128xf32>
    %c4_i32 = arith.constant 4 : i32
    %268 = vector.broadcast %c4_i32 : i32 to vector<2x1xi32>
    %269 = arith.cmpi sgt, %0, %268 : vector<2x1xi32>
    %270 = vector.extract_strided_slice %234 {offsets = [0, 0], sizes = [2, 128], strides = [1, 1]} : vector<2x512xf32> to vector<2x128xf32>
    %271 = arith.negf %270 : vector<2x128xf32>
    %272 = math.exp %271 : vector<2x128xf32>
    %cst_44 = arith.constant 1.000000e+00 : f32
    %273 = vector.broadcast %cst_44 : f32 to vector<2x128xf32>
    %274 = arith.addf %273, %272 : vector<2x128xf32>
    %275 = arith.divf %273, %274 : vector<2x128xf32>
    %276 = vector.extract_strided_slice %234 {offsets = [0, 128], sizes = [2, 128], strides = [1, 1]} : vector<2x512xf32> to vector<2x128xf32>
    %277 = arith.negf %276 : vector<2x128xf32>
    %278 = math.exp %277 : vector<2x128xf32>
    %cst_45 = arith.constant 1.000000e+00 : f32
    %279 = vector.broadcast %cst_45 : f32 to vector<2x128xf32>
    %280 = arith.addf %279, %278 : vector<2x128xf32>
    %281 = arith.divf %279, %280 : vector<2x128xf32>
    %282 = vector.extract_strided_slice %234 {offsets = [0, 256], sizes = [2, 128], strides = [1, 1]} : vector<2x512xf32> to vector<2x128xf32>
    %283 = math.tanh %282 : vector<2x128xf32>
    %284 = vector.extract_strided_slice %234 {offsets = [0, 384], sizes = [2, 128], strides = [1, 1]} : vector<2x512xf32> to vector<2x128xf32>
    %285 = arith.negf %284 : vector<2x128xf32>
    %286 = math.exp %285 : vector<2x128xf32>
    %cst_46 = arith.constant 1.000000e+00 : f32
    %287 = vector.broadcast %cst_46 : f32 to vector<2x128xf32>
    %288 = arith.addf %287, %286 : vector<2x128xf32>
    %289 = arith.divf %287, %288 : vector<2x128xf32>
    %290 = arith.mulf %281, %228 : vector<2x128xf32>
    %291 = arith.mulf %275, %283 : vector<2x128xf32>
    %292 = arith.addf %290, %291 : vector<2x128xf32>
    %293 = math.tanh %292 : vector<2x128xf32>
    %294 = arith.mulf %289, %293 : vector<2x128xf32>
    %295 = vector.shape_cast %269 : vector<2x1xi1> to vector<2x1xi1>
    %296 = vector.broadcast %295 : vector<2x1xi1> to vector<2x128xi1>
    %297 = arith.select %296, %294, %225 : vector<2x128xi1>, vector<2x128xf32>
    %298 = vector.shape_cast %269 : vector<2x1xi1> to vector<2x1xi1>
    %299 = vector.broadcast %298 : vector<2x1xi1> to vector<2x128xi1>
    %300 = arith.select %299, %292, %228 : vector<2x128xi1>, vector<2x128xf32>
    %301 = vector.extract_strided_slice %8 {offsets = [8, 0], sizes = [2, 512], strides = [1, 1]} : vector<16x1024xf32> to vector<2x512xf32>
    %302 = vector.extract_strided_slice %8 {offsets = [6, 512], sizes = [2, 512], strides = [1, 1]} : vector<16x1024xf32> to vector<2x512xf32>
    %cst_47 = arith.constant dense<0.000000e+00> : vector<2x512xf32>
    %303 = tpu.matmul %264, %1, %cst_47 {dimension_numbers = #tpu.dot_dimension_numbers<[1], [0], [0], [1], [0, 0, 1, 1], [], []>} : vector<2x128xf32>, vector<128x512xf32>, vector<2x512xf32> -> vector<2x512xf32>
    %304 = arith.addf %301, %303 : vector<2x512xf32>
    %cst_48 = arith.constant dense<0.000000e+00> : vector<2x512xf32>
    %305 = tpu.matmul %297, %2, %cst_48 {dimension_numbers = #tpu.dot_dimension_numbers<[1], [0], [0], [1], [0, 0, 1, 1], [], []>} : vector<2x128xf32>, vector<128x512xf32>, vector<2x512xf32> -> vector<2x512xf32>
    %306 = arith.addf %302, %305 : vector<2x512xf32>
    %c4_i32_49 = arith.constant 4 : i32
    %307 = vector.broadcast %c4_i32_49 : i32 to vector<2x1xi32>
    %308 = arith.cmpi sgt, %0, %307 : vector<2x1xi32>
    %309 = vector.extract_strided_slice %304 {offsets = [0, 0], sizes = [2, 128], strides = [1, 1]} : vector<2x512xf32> to vector<2x128xf32>
    %310 = arith.negf %309 : vector<2x128xf32>
    %311 = math.exp %310 : vector<2x128xf32>
    %cst_50 = arith.constant 1.000000e+00 : f32
    %312 = vector.broadcast %cst_50 : f32 to vector<2x128xf32>
    %313 = arith.addf %312, %311 : vector<2x128xf32>
    %314 = arith.divf %312, %313 : vector<2x128xf32>
    %315 = vector.extract_strided_slice %304 {offsets = [0, 128], sizes = [2, 128], strides = [1, 1]} : vector<2x512xf32> to vector<2x128xf32>
    %316 = arith.negf %315 : vector<2x128xf32>
    %317 = math.exp %316 : vector<2x128xf32>
    %cst_51 = arith.constant 1.000000e+00 : f32
    %318 = vector.broadcast %cst_51 : f32 to vector<2x128xf32>
    %319 = arith.addf %318, %317 : vector<2x128xf32>
    %320 = arith.divf %318, %319 : vector<2x128xf32>
    %321 = vector.extract_strided_slice %304 {offsets = [0, 256], sizes = [2, 128], strides = [1, 1]} : vector<2x512xf32> to vector<2x128xf32>
    %322 = math.tanh %321 : vector<2x128xf32>
    %323 = vector.extract_strided_slice %304 {offsets = [0, 384], sizes = [2, 128], strides = [1, 1]} : vector<2x512xf32> to vector<2x128xf32>
    %324 = arith.negf %323 : vector<2x128xf32>
    %325 = math.exp %324 : vector<2x128xf32>
    %cst_52 = arith.constant 1.000000e+00 : f32
    %326 = vector.broadcast %cst_52 : f32 to vector<2x128xf32>
    %327 = arith.addf %326, %325 : vector<2x128xf32>
    %328 = arith.divf %326, %327 : vector<2x128xf32>
    %329 = arith.mulf %320, %267 : vector<2x128xf32>
    %330 = arith.mulf %314, %322 : vector<2x128xf32>
    %331 = arith.addf %329, %330 : vector<2x128xf32>
    %332 = math.tanh %331 : vector<2x128xf32>
    %333 = arith.mulf %328, %332 : vector<2x128xf32>
    %334 = vector.shape_cast %308 : vector<2x1xi1> to vector<2x1xi1>
    %335 = vector.broadcast %334 : vector<2x1xi1> to vector<2x128xi1>
    %336 = arith.select %335, %333, %264 : vector<2x128xi1>, vector<2x128xf32>
    %337 = vector.shape_cast %308 : vector<2x1xi1> to vector<2x1xi1>
    %338 = vector.broadcast %337 : vector<2x1xi1> to vector<2x128xi1>
    %339 = arith.select %338, %331, %267 : vector<2x128xi1>, vector<2x128xf32>
    %c3_i32_53 = arith.constant 3 : i32
    %340 = vector.broadcast %c3_i32_53 : i32 to vector<2x1xi32>
    %341 = arith.cmpi sgt, %0, %340 : vector<2x1xi32>
    %342 = vector.extract_strided_slice %306 {offsets = [0, 0], sizes = [2, 128], strides = [1, 1]} : vector<2x512xf32> to vector<2x128xf32>
    %343 = arith.negf %342 : vector<2x128xf32>
    %344 = math.exp %343 : vector<2x128xf32>
    %cst_54 = arith.constant 1.000000e+00 : f32
    %345 = vector.broadcast %cst_54 : f32 to vector<2x128xf32>
    %346 = arith.addf %345, %344 : vector<2x128xf32>
    %347 = arith.divf %345, %346 : vector<2x128xf32>
    %348 = vector.extract_strided_slice %306 {offsets = [0, 128], sizes = [2, 128], strides = [1, 1]} : vector<2x512xf32> to vector<2x128xf32>
    %349 = arith.negf %348 : vector<2x128xf32>
    %350 = math.exp %349 : vector<2x128xf32>
    %cst_55 = arith.constant 1.000000e+00 : f32
    %351 = vector.broadcast %cst_55 : f32 to vector<2x128xf32>
    %352 = arith.addf %351, %350 : vector<2x128xf32>
    %353 = arith.divf %351, %352 : vector<2x128xf32>
    %354 = vector.extract_strided_slice %306 {offsets = [0, 256], sizes = [2, 128], strides = [1, 1]} : vector<2x512xf32> to vector<2x128xf32>
    %355 = math.tanh %354 : vector<2x128xf32>
    %356 = vector.extract_strided_slice %306 {offsets = [0, 384], sizes = [2, 128], strides = [1, 1]} : vector<2x512xf32> to vector<2x128xf32>
    %357 = arith.negf %356 : vector<2x128xf32>
    %358 = math.exp %357 : vector<2x128xf32>
    %cst_56 = arith.constant 1.000000e+00 : f32
    %359 = vector.broadcast %cst_56 : f32 to vector<2x128xf32>
    %360 = arith.addf %359, %358 : vector<2x128xf32>
    %361 = arith.divf %359, %360 : vector<2x128xf32>
    %362 = arith.mulf %353, %300 : vector<2x128xf32>
    %363 = arith.mulf %347, %355 : vector<2x128xf32>
    %364 = arith.addf %362, %363 : vector<2x128xf32>
    %365 = math.tanh %364 : vector<2x128xf32>
    %366 = arith.mulf %361, %365 : vector<2x128xf32>
    %367 = vector.shape_cast %341 : vector<2x1xi1> to vector<2x1xi1>
    %368 = vector.broadcast %367 : vector<2x1xi1> to vector<2x128xi1>
    %369 = arith.select %368, %366, %297 : vector<2x128xi1>, vector<2x128xf32>
    %370 = vector.shape_cast %341 : vector<2x1xi1> to vector<2x1xi1>
    %371 = vector.broadcast %370 : vector<2x1xi1> to vector<2x128xi1>
    %372 = arith.select %371, %364, %300 : vector<2x128xi1>, vector<2x128xf32>
    %373 = vector.extract_strided_slice %8 {offsets = [10, 0], sizes = [2, 512], strides = [1, 1]} : vector<16x1024xf32> to vector<2x512xf32>
    %374 = vector.extract_strided_slice %8 {offsets = [4, 512], sizes = [2, 512], strides = [1, 1]} : vector<16x1024xf32> to vector<2x512xf32>
    %cst_57 = arith.constant dense<0.000000e+00> : vector<2x512xf32>
    %375 = tpu.matmul %336, %1, %cst_57 {dimension_numbers = #tpu.dot_dimension_numbers<[1], [0], [0], [1], [0, 0, 1, 1], [], []>} : vector<2x128xf32>, vector<128x512xf32>, vector<2x512xf32> -> vector<2x512xf32>
    %376 = arith.addf %373, %375 : vector<2x512xf32>
    %cst_58 = arith.constant dense<0.000000e+00> : vector<2x512xf32>
    %377 = tpu.matmul %369, %2, %cst_58 {dimension_numbers = #tpu.dot_dimension_numbers<[1], [0], [0], [1], [0, 0, 1, 1], [], []>} : vector<2x128xf32>, vector<128x512xf32>, vector<2x512xf32> -> vector<2x512xf32>
    %378 = arith.addf %374, %377 : vector<2x512xf32>
    %c5_i32_59 = arith.constant 5 : i32
    %379 = vector.broadcast %c5_i32_59 : i32 to vector<2x1xi32>
    %380 = arith.cmpi sgt, %0, %379 : vector<2x1xi32>
    %381 = vector.extract_strided_slice %376 {offsets = [0, 0], sizes = [2, 128], strides = [1, 1]} : vector<2x512xf32> to vector<2x128xf32>
    %382 = arith.negf %381 : vector<2x128xf32>
    %383 = math.exp %382 : vector<2x128xf32>
    %cst_60 = arith.constant 1.000000e+00 : f32
    %384 = vector.broadcast %cst_60 : f32 to vector<2x128xf32>
    %385 = arith.addf %384, %383 : vector<2x128xf32>
    %386 = arith.divf %384, %385 : vector<2x128xf32>
    %387 = vector.extract_strided_slice %376 {offsets = [0, 128], sizes = [2, 128], strides = [1, 1]} : vector<2x512xf32> to vector<2x128xf32>
    %388 = arith.negf %387 : vector<2x128xf32>
    %389 = math.exp %388 : vector<2x128xf32>
    %cst_61 = arith.constant 1.000000e+00 : f32
    %390 = vector.broadcast %cst_61 : f32 to vector<2x128xf32>
    %391 = arith.addf %390, %389 : vector<2x128xf32>
    %392 = arith.divf %390, %391 : vector<2x128xf32>
    %393 = vector.extract_strided_slice %376 {offsets = [0, 256], sizes = [2, 128], strides = [1, 1]} : vector<2x512xf32> to vector<2x128xf32>
    %394 = math.tanh %393 : vector<2x128xf32>
    %395 = vector.extract_strided_slice %376 {offsets = [0, 384], sizes = [2, 128], strides = [1, 1]} : vector<2x512xf32> to vector<2x128xf32>
    %396 = arith.negf %395 : vector<2x128xf32>
    %397 = math.exp %396 : vector<2x128xf32>
    %cst_62 = arith.constant 1.000000e+00 : f32
    %398 = vector.broadcast %cst_62 : f32 to vector<2x128xf32>
    %399 = arith.addf %398, %397 : vector<2x128xf32>
    %400 = arith.divf %398, %399 : vector<2x128xf32>
    %401 = arith.mulf %392, %339 : vector<2x128xf32>
    %402 = arith.mulf %386, %394 : vector<2x128xf32>
    %403 = arith.addf %401, %402 : vector<2x128xf32>
    %404 = math.tanh %403 : vector<2x128xf32>
    %405 = arith.mulf %400, %404 : vector<2x128xf32>
    %406 = vector.shape_cast %380 : vector<2x1xi1> to vector<2x1xi1>
    %407 = vector.broadcast %406 : vector<2x1xi1> to vector<2x128xi1>
    %408 = arith.select %407, %405, %336 : vector<2x128xi1>, vector<2x128xf32>
    %409 = vector.shape_cast %380 : vector<2x1xi1> to vector<2x1xi1>
    %410 = vector.broadcast %409 : vector<2x1xi1> to vector<2x128xi1>
    %411 = arith.select %410, %403, %339 : vector<2x128xi1>, vector<2x128xf32>
    %c2_i32_63 = arith.constant 2 : i32
    %412 = vector.broadcast %c2_i32_63 : i32 to vector<2x1xi32>
    %413 = arith.cmpi sgt, %0, %412 : vector<2x1xi32>
    %414 = vector.extract_strided_slice %378 {offsets = [0, 0], sizes = [2, 128], strides = [1, 1]} : vector<2x512xf32> to vector<2x128xf32>
    %415 = arith.negf %414 : vector<2x128xf32>
    %416 = math.exp %415 : vector<2x128xf32>
    %cst_64 = arith.constant 1.000000e+00 : f32
    %417 = vector.broadcast %cst_64 : f32 to vector<2x128xf32>
    %418 = arith.addf %417, %416 : vector<2x128xf32>
    %419 = arith.divf %417, %418 : vector<2x128xf32>
    %420 = vector.extract_strided_slice %378 {offsets = [0, 128], sizes = [2, 128], strides = [1, 1]} : vector<2x512xf32> to vector<2x128xf32>
    %421 = arith.negf %420 : vector<2x128xf32>
    %422 = math.exp %421 : vector<2x128xf32>
    %cst_65 = arith.constant 1.000000e+00 : f32
    %423 = vector.broadcast %cst_65 : f32 to vector<2x128xf32>
    %424 = arith.addf %423, %422 : vector<2x128xf32>
    %425 = arith.divf %423, %424 : vector<2x128xf32>
    %426 = vector.extract_strided_slice %378 {offsets = [0, 256], sizes = [2, 128], strides = [1, 1]} : vector<2x512xf32> to vector<2x128xf32>
    %427 = math.tanh %426 : vector<2x128xf32>
    %428 = vector.extract_strided_slice %378 {offsets = [0, 384], sizes = [2, 128], strides = [1, 1]} : vector<2x512xf32> to vector<2x128xf32>
    %429 = arith.negf %428 : vector<2x128xf32>
    %430 = math.exp %429 : vector<2x128xf32>
    %cst_66 = arith.constant 1.000000e+00 : f32
    %431 = vector.broadcast %cst_66 : f32 to vector<2x128xf32>
    %432 = arith.addf %431, %430 : vector<2x128xf32>
    %433 = arith.divf %431, %432 : vector<2x128xf32>
    %434 = arith.mulf %425, %372 : vector<2x128xf32>
    %435 = arith.mulf %419, %427 : vector<2x128xf32>
    %436 = arith.addf %434, %435 : vector<2x128xf32>
    %437 = math.tanh %436 : vector<2x128xf32>
    %438 = arith.mulf %433, %437 : vector<2x128xf32>
    %439 = vector.shape_cast %413 : vector<2x1xi1> to vector<2x1xi1>
    %440 = vector.broadcast %439 : vector<2x1xi1> to vector<2x128xi1>
    %441 = arith.select %440, %438, %369 : vector<2x128xi1>, vector<2x128xf32>
    %442 = vector.shape_cast %413 : vector<2x1xi1> to vector<2x1xi1>
    %443 = vector.broadcast %442 : vector<2x1xi1> to vector<2x128xi1>
    %444 = arith.select %443, %436, %372 : vector<2x128xi1>, vector<2x128xf32>
    %445 = vector.extract_strided_slice %8 {offsets = [12, 0], sizes = [2, 512], strides = [1, 1]} : vector<16x1024xf32> to vector<2x512xf32>
    %446 = vector.extract_strided_slice %8 {offsets = [2, 512], sizes = [2, 512], strides = [1, 1]} : vector<16x1024xf32> to vector<2x512xf32>
    %cst_67 = arith.constant dense<0.000000e+00> : vector<2x512xf32>
    %447 = tpu.matmul %408, %1, %cst_67 {dimension_numbers = #tpu.dot_dimension_numbers<[1], [0], [0], [1], [0, 0, 1, 1], [], []>} : vector<2x128xf32>, vector<128x512xf32>, vector<2x512xf32> -> vector<2x512xf32>
    %448 = arith.addf %445, %447 : vector<2x512xf32>
    %cst_68 = arith.constant dense<0.000000e+00> : vector<2x512xf32>
    %449 = tpu.matmul %441, %2, %cst_68 {dimension_numbers = #tpu.dot_dimension_numbers<[1], [0], [0], [1], [0, 0, 1, 1], [], []>} : vector<2x128xf32>, vector<128x512xf32>, vector<2x512xf32> -> vector<2x512xf32>
    %450 = arith.addf %446, %449 : vector<2x512xf32>
    %c6_i32_69 = arith.constant 6 : i32
    %451 = vector.broadcast %c6_i32_69 : i32 to vector<2x1xi32>
    %452 = arith.cmpi sgt, %0, %451 : vector<2x1xi32>
    %453 = vector.extract_strided_slice %448 {offsets = [0, 0], sizes = [2, 128], strides = [1, 1]} : vector<2x512xf32> to vector<2x128xf32>
    %454 = arith.negf %453 : vector<2x128xf32>
    %455 = math.exp %454 : vector<2x128xf32>
    %cst_70 = arith.constant 1.000000e+00 : f32
    %456 = vector.broadcast %cst_70 : f32 to vector<2x128xf32>
    %457 = arith.addf %456, %455 : vector<2x128xf32>
    %458 = arith.divf %456, %457 : vector<2x128xf32>
    %459 = vector.extract_strided_slice %448 {offsets = [0, 128], sizes = [2, 128], strides = [1, 1]} : vector<2x512xf32> to vector<2x128xf32>
    %460 = arith.negf %459 : vector<2x128xf32>
    %461 = math.exp %460 : vector<2x128xf32>
    %cst_71 = arith.constant 1.000000e+00 : f32
    %462 = vector.broadcast %cst_71 : f32 to vector<2x128xf32>
    %463 = arith.addf %462, %461 : vector<2x128xf32>
    %464 = arith.divf %462, %463 : vector<2x128xf32>
    %465 = vector.extract_strided_slice %448 {offsets = [0, 256], sizes = [2, 128], strides = [1, 1]} : vector<2x512xf32> to vector<2x128xf32>
    %466 = math.tanh %465 : vector<2x128xf32>
    %467 = vector.extract_strided_slice %448 {offsets = [0, 384], sizes = [2, 128], strides = [1, 1]} : vector<2x512xf32> to vector<2x128xf32>
    %468 = arith.negf %467 : vector<2x128xf32>
    %469 = math.exp %468 : vector<2x128xf32>
    %cst_72 = arith.constant 1.000000e+00 : f32
    %470 = vector.broadcast %cst_72 : f32 to vector<2x128xf32>
    %471 = arith.addf %470, %469 : vector<2x128xf32>
    %472 = arith.divf %470, %471 : vector<2x128xf32>
    %473 = arith.mulf %464, %411 : vector<2x128xf32>
    %474 = arith.mulf %458, %466 : vector<2x128xf32>
    %475 = arith.addf %473, %474 : vector<2x128xf32>
    %476 = math.tanh %475 : vector<2x128xf32>
    %477 = arith.mulf %472, %476 : vector<2x128xf32>
    %478 = vector.shape_cast %452 : vector<2x1xi1> to vector<2x1xi1>
    %479 = vector.broadcast %478 : vector<2x1xi1> to vector<2x128xi1>
    %480 = arith.select %479, %477, %408 : vector<2x128xi1>, vector<2x128xf32>
    %481 = vector.shape_cast %452 : vector<2x1xi1> to vector<2x1xi1>
    %482 = vector.broadcast %481 : vector<2x1xi1> to vector<2x128xi1>
    %483 = arith.select %482, %475, %411 : vector<2x128xi1>, vector<2x128xf32>
    %c1_i32_73 = arith.constant 1 : i32
    %484 = vector.broadcast %c1_i32_73 : i32 to vector<2x1xi32>
    %485 = arith.cmpi sgt, %0, %484 : vector<2x1xi32>
    %486 = vector.extract_strided_slice %450 {offsets = [0, 0], sizes = [2, 128], strides = [1, 1]} : vector<2x512xf32> to vector<2x128xf32>
    %487 = arith.negf %486 : vector<2x128xf32>
    %488 = math.exp %487 : vector<2x128xf32>
    %cst_74 = arith.constant 1.000000e+00 : f32
    %489 = vector.broadcast %cst_74 : f32 to vector<2x128xf32>
    %490 = arith.addf %489, %488 : vector<2x128xf32>
    %491 = arith.divf %489, %490 : vector<2x128xf32>
    %492 = vector.extract_strided_slice %450 {offsets = [0, 128], sizes = [2, 128], strides = [1, 1]} : vector<2x512xf32> to vector<2x128xf32>
    %493 = arith.negf %492 : vector<2x128xf32>
    %494 = math.exp %493 : vector<2x128xf32>
    %cst_75 = arith.constant 1.000000e+00 : f32
    %495 = vector.broadcast %cst_75 : f32 to vector<2x128xf32>
    %496 = arith.addf %495, %494 : vector<2x128xf32>
    %497 = arith.divf %495, %496 : vector<2x128xf32>
    %498 = vector.extract_strided_slice %450 {offsets = [0, 256], sizes = [2, 128], strides = [1, 1]} : vector<2x512xf32> to vector<2x128xf32>
    %499 = math.tanh %498 : vector<2x128xf32>
    %500 = vector.extract_strided_slice %450 {offsets = [0, 384], sizes = [2, 128], strides = [1, 1]} : vector<2x512xf32> to vector<2x128xf32>
    %501 = arith.negf %500 : vector<2x128xf32>
    %502 = math.exp %501 : vector<2x128xf32>
    %cst_76 = arith.constant 1.000000e+00 : f32
    %503 = vector.broadcast %cst_76 : f32 to vector<2x128xf32>
    %504 = arith.addf %503, %502 : vector<2x128xf32>
    %505 = arith.divf %503, %504 : vector<2x128xf32>
    %506 = arith.mulf %497, %444 : vector<2x128xf32>
    %507 = arith.mulf %491, %499 : vector<2x128xf32>
    %508 = arith.addf %506, %507 : vector<2x128xf32>
    %509 = math.tanh %508 : vector<2x128xf32>
    %510 = arith.mulf %505, %509 : vector<2x128xf32>
    %511 = vector.shape_cast %485 : vector<2x1xi1> to vector<2x1xi1>
    %512 = vector.broadcast %511 : vector<2x1xi1> to vector<2x128xi1>
    %513 = arith.select %512, %510, %441 : vector<2x128xi1>, vector<2x128xf32>
    %514 = vector.shape_cast %485 : vector<2x1xi1> to vector<2x1xi1>
    %515 = vector.broadcast %514 : vector<2x1xi1> to vector<2x128xi1>
    %516 = arith.select %515, %508, %444 : vector<2x128xi1>, vector<2x128xf32>
    %517 = vector.extract_strided_slice %8 {offsets = [14, 0], sizes = [2, 512], strides = [1, 1]} : vector<16x1024xf32> to vector<2x512xf32>
    %518 = vector.extract_strided_slice %8 {offsets = [0, 512], sizes = [2, 512], strides = [1, 1]} : vector<16x1024xf32> to vector<2x512xf32>
    %cst_77 = arith.constant dense<0.000000e+00> : vector<2x512xf32>
    %519 = tpu.matmul %480, %1, %cst_77 {dimension_numbers = #tpu.dot_dimension_numbers<[1], [0], [0], [1], [0, 0, 1, 1], [], []>} : vector<2x128xf32>, vector<128x512xf32>, vector<2x512xf32> -> vector<2x512xf32>
    %520 = arith.addf %517, %519 : vector<2x512xf32>
    %cst_78 = arith.constant dense<0.000000e+00> : vector<2x512xf32>
    %521 = tpu.matmul %513, %2, %cst_78 {dimension_numbers = #tpu.dot_dimension_numbers<[1], [0], [0], [1], [0, 0, 1, 1], [], []>} : vector<2x128xf32>, vector<128x512xf32>, vector<2x512xf32> -> vector<2x512xf32>
    %522 = arith.addf %518, %521 : vector<2x512xf32>
    %c7_i32_79 = arith.constant 7 : i32
    %523 = vector.broadcast %c7_i32_79 : i32 to vector<2x1xi32>
    %524 = arith.cmpi sgt, %0, %523 : vector<2x1xi32>
    %525 = vector.extract_strided_slice %520 {offsets = [0, 0], sizes = [2, 128], strides = [1, 1]} : vector<2x512xf32> to vector<2x128xf32>
    %526 = arith.negf %525 : vector<2x128xf32>
    %527 = math.exp %526 : vector<2x128xf32>
    %cst_80 = arith.constant 1.000000e+00 : f32
    %528 = vector.broadcast %cst_80 : f32 to vector<2x128xf32>
    %529 = arith.addf %528, %527 : vector<2x128xf32>
    %530 = arith.divf %528, %529 : vector<2x128xf32>
    %531 = vector.extract_strided_slice %520 {offsets = [0, 128], sizes = [2, 128], strides = [1, 1]} : vector<2x512xf32> to vector<2x128xf32>
    %532 = arith.negf %531 : vector<2x128xf32>
    %533 = math.exp %532 : vector<2x128xf32>
    %cst_81 = arith.constant 1.000000e+00 : f32
    %534 = vector.broadcast %cst_81 : f32 to vector<2x128xf32>
    %535 = arith.addf %534, %533 : vector<2x128xf32>
    %536 = arith.divf %534, %535 : vector<2x128xf32>
    %537 = vector.extract_strided_slice %520 {offsets = [0, 256], sizes = [2, 128], strides = [1, 1]} : vector<2x512xf32> to vector<2x128xf32>
    %538 = math.tanh %537 : vector<2x128xf32>
    %539 = vector.extract_strided_slice %520 {offsets = [0, 384], sizes = [2, 128], strides = [1, 1]} : vector<2x512xf32> to vector<2x128xf32>
    %540 = arith.negf %539 : vector<2x128xf32>
    %541 = math.exp %540 : vector<2x128xf32>
    %cst_82 = arith.constant 1.000000e+00 : f32
    %542 = vector.broadcast %cst_82 : f32 to vector<2x128xf32>
    %543 = arith.addf %542, %541 : vector<2x128xf32>
    %544 = arith.divf %542, %543 : vector<2x128xf32>
    %545 = arith.mulf %536, %483 : vector<2x128xf32>
    %546 = arith.mulf %530, %538 : vector<2x128xf32>
    %547 = arith.addf %545, %546 : vector<2x128xf32>
    %548 = math.tanh %547 : vector<2x128xf32>
    %549 = arith.mulf %544, %548 : vector<2x128xf32>
    %550 = vector.shape_cast %524 : vector<2x1xi1> to vector<2x1xi1>
    %551 = vector.broadcast %550 : vector<2x1xi1> to vector<2x128xi1>
    %552 = arith.select %551, %549, %480 : vector<2x128xi1>, vector<2x128xf32>
    %c0_i32_83 = arith.constant 0 : i32
    %553 = vector.broadcast %c0_i32_83 : i32 to vector<2x1xi32>
    %554 = arith.cmpi sgt, %0, %553 : vector<2x1xi32>
    %555 = vector.extract_strided_slice %522 {offsets = [0, 0], sizes = [2, 128], strides = [1, 1]} : vector<2x512xf32> to vector<2x128xf32>
    %556 = arith.negf %555 : vector<2x128xf32>
    %557 = math.exp %556 : vector<2x128xf32>
    %cst_84 = arith.constant 1.000000e+00 : f32
    %558 = vector.broadcast %cst_84 : f32 to vector<2x128xf32>
    %559 = arith.addf %558, %557 : vector<2x128xf32>
    %560 = arith.divf %558, %559 : vector<2x128xf32>
    %561 = vector.extract_strided_slice %522 {offsets = [0, 128], sizes = [2, 128], strides = [1, 1]} : vector<2x512xf32> to vector<2x128xf32>
    %562 = arith.negf %561 : vector<2x128xf32>
    %563 = math.exp %562 : vector<2x128xf32>
    %cst_85 = arith.constant 1.000000e+00 : f32
    %564 = vector.broadcast %cst_85 : f32 to vector<2x128xf32>
    %565 = arith.addf %564, %563 : vector<2x128xf32>
    %566 = arith.divf %564, %565 : vector<2x128xf32>
    %567 = vector.extract_strided_slice %522 {offsets = [0, 256], sizes = [2, 128], strides = [1, 1]} : vector<2x512xf32> to vector<2x128xf32>
    %568 = math.tanh %567 : vector<2x128xf32>
    %569 = vector.extract_strided_slice %522 {offsets = [0, 384], sizes = [2, 128], strides = [1, 1]} : vector<2x512xf32> to vector<2x128xf32>
    %570 = arith.negf %569 : vector<2x128xf32>
    %571 = math.exp %570 : vector<2x128xf32>
    %cst_86 = arith.constant 1.000000e+00 : f32
    %572 = vector.broadcast %cst_86 : f32 to vector<2x128xf32>
    %573 = arith.addf %572, %571 : vector<2x128xf32>
    %574 = arith.divf %572, %573 : vector<2x128xf32>
    %575 = arith.mulf %566, %516 : vector<2x128xf32>
    %576 = arith.mulf %560, %568 : vector<2x128xf32>
    %577 = arith.addf %575, %576 : vector<2x128xf32>
    %578 = math.tanh %577 : vector<2x128xf32>
    %579 = arith.mulf %574, %578 : vector<2x128xf32>
    %580 = vector.shape_cast %554 : vector<2x1xi1> to vector<2x1xi1>
    %581 = vector.broadcast %580 : vector<2x1xi1> to vector<2x128xi1>
    %582 = arith.select %581, %579, %513 : vector<2x128xi1>, vector<2x128xf32>
    %c0_87 = arith.constant 0 : index
    %c0_88 = arith.constant 0 : index
    %583 = vector.load %arg6[%c0_87, %c0_88] : memref<2x256xf32, #tpu.memory_space<vmem>>, vector<2x128xf32>
    tpu.vector_store %arg6[%c0_87, %c0_88], %552 {strides = array<i32>} : memref<2x256xf32, #tpu.memory_space<vmem>>, vector<2x128xf32>,
    %c0_89 = arith.constant 0 : index
    %c128 = arith.constant 128 : index
    %584 = vector.load %arg6[%c0_89, %c128] : memref<2x256xf32, #tpu.memory_space<vmem>>, vector<2x128xf32>
    tpu.vector_store %arg6[%c0_89, %c128], %582 {strides = array<i32>} : memref<2x256xf32, #tpu.memory_space<vmem>>, vector<2x128xf32>,
    return
  }
}

module attributes {stable_mosaic.version = 11 : i64} {
  func.func @complex_bce_kernel(%arg0: i32, %arg1: memref<2x64xf32, #tpu.memory_space<vmem>>, %arg2: memref<2x64xf32, #tpu.memory_space<vmem>>, %arg3: memref<128x64xf32, #tpu.memory_space<vmem>>, %arg4: memref<2x128xf32, #tpu.memory_space<vmem>>, %arg5: memref<1x1xf32, #tpu.memory_space<vmem>>) attributes {dimension_semantics = [#tpu.dimension_semantics<arbitrary>], iteration_bounds = array<i64: 1>, scalar_prefetch = 0 : i64, scratch_operands = 0 : i64, tpu.core_type = #tpu.core_type<tc>, window_params = [{pipeline_mode = #tpu.pipeline_mode<synchronous>, transform_indices = @transform_0, window_bounds = array<i64: 2, 64>}, {pipeline_mode = #tpu.pipeline_mode<synchronous>, transform_indices = @transform_1, window_bounds = array<i64: 2, 64>}, {transform_indices = @transform_2, window_bounds = array<i64: 128, 64>}, {transform_indices = @transform_3, window_bounds = array<i64: 2, 128>}, {pipeline_mode = #tpu.pipeline_mode<synchronous>, transform_indices = @transform_4, window_bounds = array<i64: 1, 1>}]} {
    %c0 = arith.constant 0 : index
    %c0_0 = arith.constant 0 : index
    %0 = vector.load %arg2[%c0, %c0_0] : memref<2x64xf32, #tpu.memory_space<vmem>>, vector<2x64xf32>
    %c0_1 = arith.constant 0 : index
    %c0_2 = arith.constant 0 : index
    %1 = vector.load %arg1[%c0_1, %c0_2] : memref<2x64xf32, #tpu.memory_space<vmem>>, vector<2x64xf32>
    %2 = vector.extract_strided_slice %0 {offsets = [0, 0], sizes = [2, 32], strides = [1, 1]} : vector<2x64xf32> to vector<2x32xf32>
    %3 = vector.extract_strided_slice %0 {offsets = [0, 32], sizes = [2, 32], strides = [1, 1]} : vector<2x64xf32> to vector<2x32xf32>
    %4 = vector.extract_strided_slice %1 {offsets = [0, 0], sizes = [2, 32], strides = [1, 1]} : vector<2x64xf32> to vector<2x32xf32>
    %5 = vector.extract_strided_slice %1 {offsets = [0, 32], sizes = [2, 32], strides = [1, 1]} : vector<2x64xf32> to vector<2x32xf32>
    %6 = arith.mulf %2, %4 : vector<2x32xf32>
    %7 = arith.mulf %3, %5 : vector<2x32xf32>
    %8 = arith.subf %6, %7 : vector<2x32xf32>
    %9 = arith.mulf %2, %5 : vector<2x32xf32>
    %10 = arith.mulf %3, %4 : vector<2x32xf32>
    %11 = arith.addf %9, %10 : vector<2x32xf32>
    %12 = tpu.concatenate %8, %11 in 1 : vector<2x32xf32>, vector<2x32xf32> -> vector<2x64xf32>
    %c0_3 = arith.constant 0 : index
    %c0_4 = arith.constant 0 : index
    %13 = vector.load %arg3[%c0_3, %c0_4] : memref<128x64xf32, #tpu.memory_space<vmem>>, vector<128x64xf32>
    %cst = arith.constant dense<0.000000e+00> : vector<2x128xf32>
    %14 = tpu.matmul %12, %13, %cst {dimension_numbers = #tpu.dot_dimension_numbers<[1], [1], [0], [0], [0, 0, 1, 0], [], []>} : vector<2x64xf32>, vector<128x64xf32>, vector<2x128xf32> -> vector<2x128xf32>
    %c0_5 = arith.constant 0 : index
    %c0_6 = arith.constant 0 : index
    %15 = vector.load %arg4[%c0_5, %c0_6] : memref<2x128xf32, #tpu.memory_space<vmem>>, vector<2x128xf32>
    %cst_7 = arith.constant 0.000000e+00 : f32
    %16 = vector.broadcast %cst_7 : f32 to vector<2x128xf32>
    %17 = arith.maximumf %14, %16 : vector<2x128xf32>
    %18 = arith.mulf %15, %14 : vector<2x128xf32>
    %19 = arith.subf %17, %18 : vector<2x128xf32>
    %20 = math.absf %14 : vector<2x128xf32>
    %cst_8 = arith.constant 0.000000e+00 : f32
    %21 = vector.broadcast %cst_8 : f32 to vector<2x128xf32>
    %22 = arith.subf %21, %20 : vector<2x128xf32>
    %23 = math.exp %22 : vector<2x128xf32>
    %cst_9 = arith.constant 1.000000e+00 : f32
    %24 = vector.broadcast %cst_9 : f32 to vector<2x128xf32>
    %25 = arith.addf %24, %23 : vector<2x128xf32>
    %26 = math.log %25 : vector<2x128xf32>
    %27 = arith.addf %19, %26 : vector<2x128xf32>
    %c128_i32 = arith.constant 128 : i32
    %28 = arith.muli %arg0, %c128_i32 : i32
    %29 = tpu.iota {dimensions = array<i32: 1>} : vector<2x128xi32>
    %30 = vector.broadcast %28 : i32 to vector<2x128xi32>
    %31 = arith.addi %30, %29 : vector<2x128xi32>
    %c40_i32 = arith.constant 40 : i32
    %32 = vector.broadcast %c40_i32 : i32 to vector<2x128xi32>
    %33 = arith.cmpi slt, %31, %32 : vector<2x128xi32>
    %cst_10 = arith.constant 0.000000e+00 : f32
    %34 = vector.broadcast %cst_10 : f32 to vector<2x128xf32>
    %35 = arith.select %33, %27, %34 : vector<2x128xi1>, vector<2x128xf32>
    %cst_11 = arith.constant dense<0.000000e+00> : vector<2xf32>
    %36 = vector.multi_reduction <add>, %35, %cst_11 [1] : vector<2x128xf32> to vector<2xf32>
    %37 = vector.shape_cast %36 : vector<2xf32> to vector<2x1xf32>
    %cst_12 = arith.constant dense<0.000000e+00> : vector<1xf32>
    %38 = vector.multi_reduction <add>, %37, %cst_12 [0] : vector<2x1xf32> to vector<1xf32>
    %39 = vector.shape_cast %38 : vector<1xf32> to vector<1x1xf32>
    %c0_i32 = arith.constant 0 : i32
    %40 = arith.cmpi eq, %arg0, %c0_i32 : i32
    %41 = arith.extui %40 : i1 to i32
    %c0_i32_13 = arith.constant 0 : i32
    %42 = arith.cmpi ne, %41, %c0_i32_13 : i32
    scf.if %42 {
      %cst_18 = arith.constant 0.000000e+00 : f32
      %46 = vector.broadcast %cst_18 : f32 to vector<1x1xf32>
      %c0_19 = arith.constant 0 : index
      %c0_20 = arith.constant 0 : index
      %47 = vector.load %arg5[%c0_19, %c0_20] : memref<1x1xf32, #tpu.memory_space<vmem>>, vector<1x1xf32>
      tpu.vector_store %arg5[%c0_19, %c0_20], %46 {strides = array<i32>} : memref<1x1xf32, #tpu.memory_space<vmem>>, vector<1x1xf32>,
    } else {
    }
    %c0_14 = arith.constant 0 : index
    %c0_15 = arith.constant 0 : index
    %43 = vector.load %arg5[%c0_14, %c0_15] : memref<1x1xf32, #tpu.memory_space<vmem>>, vector<1x1xf32>
    %44 = arith.addf %43, %39 : vector<1x1xf32>
    %c0_16 = arith.constant 0 : index
    %c0_17 = arith.constant 0 : index
    %45 = vector.load %arg5[%c0_16, %c0_17] : memref<1x1xf32, #tpu.memory_space<vmem>>, vector<1x1xf32>
    tpu.vector_store %arg5[%c0_16, %c0_17], %44 {strides = array<i32>} : memref<1x1xf32, #tpu.memory_space<vmem>>, vector<1x1xf32>,
    return
  }
  func.func @transform_0(%arg0: i32) -> (i32, i32) {
    %c0_i32 = arith.constant 0 : i32
    %c0_i32_0 = arith.constant 0 : i32
    %c0_i32_1 = arith.constant 0 : i32
    return %c0_i32, %c0_i32_0 : i32, i32
  }
  func.func @transform_1(%arg0: i32) -> (i32, i32) {
    %c0_i32 = arith.constant 0 : i32
    %c0_i32_0 = arith.constant 0 : i32
    %c0_i32_1 = arith.constant 0 : i32
    return %c0_i32, %c0_i32_0 : i32, i32
  }
  func.func @transform_2(%arg0: i32) -> (i32, i32) {
    %c0_i32 = arith.constant 0 : i32
    %c0_i32_0 = arith.constant 0 : i32
    return %arg0, %c0_i32 : i32, i32
  }
  func.func @transform_3(%arg0: i32) -> (i32, i32) {
    %c0_i32 = arith.constant 0 : i32
    %c0_i32_0 = arith.constant 0 : i32
    return %c0_i32, %arg0 : i32, i32
  }
  func.func @transform_4(%arg0: i32) -> (i32, i32) {
    %c0_i32 = arith.constant 0 : i32
    %c0_i32_0 = arith.constant 0 : i32
    %c0_i32_1 = arith.constant 0 : i32
    return %c0_i32, %c0_i32_0 : i32, i32
  }
}

</mosaic_0001>

<llo_original>
// kernel: net_forward.3
$region0: #{net_forward.3}
  #allocation0 [shape = 'u32[]', space=smem, size = 0x4, offset = 0x4, fixed_abs, tag = 'smem constant byte address 0x4 - core index']
  #allocation1 [shape = 'u32[72,128]{1,0:T(1,128)}', space=vmem, size = 0x9000, scoped, tag = 'internal scratch']
  %s0 = inlined_call_operand.vmem [shape: f32[2,64], index: 0, kind: input, shape index: {}]
  %s1 = inlined_call_operand.vmem [shape: f32[2,64], index: 1, kind: input, shape index: {}]
  %s2 = inlined_call_operand.vmem [shape: f32[128,64], index: 2, kind: input, shape index: {}]
  %s3 = inlined_call_operand.vmem [shape: f32[2,128], index: 3, kind: input, shape index: {}]
  %s4 = inlined_call_operand.hbm [shape: f32[1,1], index: 4, kind: output, shape index: {}]
  %s5 = sld [smem:[#allocation0]]
  $region30: #{net_forward.3} parent=0
    _
  %s7 = ssub.s32 1, %s5
  %s8 = scalar_select 0, %s7, %s5
  $region1: #{net_forward.3} parent=0
    #allocation2 [shape = 'u8[512]{0}', space=vmem, size = 0x400, scoped, tag = 'output window, operand 0, single buffered']
    #allocation3 [shape = 's32[1]{0}', space=sflag, size = 0x4, scoped, tag = 'scoped memory for net_forward.3']
    %9 = vsyncpa [#allocation3], 0
    // Predicated region
    $region2: #{net_forward.3} parent=1 // pred_check
      _
    $region3: #{net_forward.3} parent=1 // pred_check_branch
      %11 = sbr.rel (0) target = $region5
    $region4: #{net_forward.3} parent=1 // pred_region
      _
    $region5: #{net_forward.3} parent=1 // pred_fallthru
      _
    // Predicated region
    $region6: #{net_forward.3} parent=1 // pred_check
      _
    $region7: #{net_forward.3} parent=1 // pred_check_branch
      %13 = sbr.rel (0) target = $region9
    $region8: #{net_forward.3} parent=1 // pred_region
      _
    $region9: #{net_forward.3} parent=1 // pred_fallthru
      _
    // Predicated region
    $region10: #{net_forward.3} parent=1 // pred_check
      _
    $region11: #{net_forward.3} parent=1 // pred_check_branch
      %15 = sbr.rel (0) target = $region13
    $region12: #{net_forward.3} parent=1 // pred_region
      _
    $region13: #{net_forward.3} parent=1 // pred_fallthru
      _
    // Predicated region
    $region14: #{net_forward.3} parent=1 // pred_check
      _
    $region15: #{net_forward.3} parent=1 // pred_check_branch
      %17 = sbr.rel (0) target = $region17
    $region16: #{net_forward.3} parent=1 // pred_region
      _
    $region17: #{net_forward.3} parent=1 // pred_fallthru
      _
    %v18 = vld [vmem:[%s1] sm:$0x3]
    %v19 = vld [vmem:[%s0] sm:$0x3]
    %v20 = vmul.f32 %v18, %v19
    %22 = vrot.lane.b32.xlu0 %v20, 96
    %v23 = vpop.permute.xlu0 %22
    %v25 = vsub.f32 %v20, %v23
    %27 = vrot.lane.b32.xlu0 %v19, 96
    %v28 = vpop.permute.xlu0 %27
    %v30 = vmul.f32 %v18, %v28
    %31 = vrot.lane.b32.xlu0 %v19, 32
    %v32 = vpop.permute.xlu0 %31
    %v34 = vmul.f32 %v18, %v32
    %36 = vrot.lane.b32.xlu0 %v34, 96
    %v37 = vpop.permute.xlu0 %36
    %v39 = vadd.f32 %v30, %v37
    %41 = vrot.lane.b32.xlu0 %v39, 32
    %v42 = vpop.permute.xlu0 %41
    %vm44 = vcmask 261120
    %v45 = vsel %vm44, %v25, %v42
    %v46 = vld [vmem:[%s2] sm:$0xff]
    %v47 = vld [vmem:[%s2 + $0x8] sm:$0xff]
    %v48 = vld [vmem:[%s2 + $0x10] sm:$0xff]
    %v49 = vld [vmem:[%s2 + $0x18] sm:$0xff]
    %v50 = vld [vmem:[%s2 + $0x20] sm:$0xff]
    %v51 = vld [vmem:[%s2 + $0x28] sm:$0xff]
    %v52 = vld [vmem:[%s2 + $0x30] sm:$0xff]
    %v53 = vld [vmem:[%s2 + $0x38] sm:$0xff]
    %v54 = vld [vmem:[%s2 + $0x40] sm:$0xff]
    %v55 = vld [vmem:[%s2 + $0x48] sm:$0xff]
    %v56 = vld [vmem:[%s2 + $0x50] sm:$0xff]
    %v57 = vld [vmem:[%s2 + $0x58] sm:$0xff]
    %v58 = vld [vmem:[%s2 + $0x60] sm:$0xff]
    %v59 = vld [vmem:[%s2 + $0x68] sm:$0xff]
    %v60 = vld [vmem:[%s2 + $0x70] sm:$0xff]
    %v61 = vld [vmem:[%s2 + $0x78] sm:$0xff]
    %vm62 = vcmask 523264
    %v64 = vsel %vm62, %v45, 0
    %v67 = vsel %vm62, %v46, 0
    %v70 = vsel %vm62, %v47, 0
    %v73 = vsel %vm62, %v48, 0
    %v76 = vsel %vm62, %v49, 0
    %v79 = vsel %vm62, %v50, 0
    %v82 = vsel %vm62, %v51, 0
    %v85 = vsel %vm62, %v52, 0
    %v88 = vsel %vm62, %v53, 0
    %v91 = vsel %vm62, %v54, 0
    %v94 = vsel %vm62, %v55, 0
    %v97 = vsel %vm62, %v56, 0
    %v100 = vsel %vm62, %v57, 0
    %v103 = vsel %vm62, %v58, 0
    %v106 = vsel %vm62, %v59, 0
    %v109 = vsel %vm62, %v60, 0
    %v112 = vsel %vm62, %v61, 0
    %114 = vmatpush.xpose.msra.mxu0 %v112
    %115 = vmatpush.xpose.msra.mxu0 %v109
    %116 = vmatpush.xpose.msra.mxu0 %v106
    %117 = vmatpush.xpose.msra.mxu0 %v103
    %118 = vmatpush.xpose.msra.mxu0 %v100
    %119 = vmatpush.xpose.msra.mxu0 %v97
    %120 = vmatpush.xpose.msra.mxu0 %v94
    %121 = vmatpush.xpose.msra.mxu0 %v91
    %122 = vmatpush.xpose.msra.mxu0 %v88
    %123 = vmatpush.xpose.msra.mxu0 %v85
    %124 = vmatpush.xpose.msra.mxu0 %v82
    %125 = vmatpush.xpose.msra.mxu0 %v79
    %126 = vmatpush.xpose.msra.mxu0 %v76
    %127 = vmatpush.xpose.msra.mxu0 %v73
    %128 = vmatpush.xpose.msra.mxu0 %v70
    %129 = vmatpush.xpose.msra.mxu0 %v67
    %130 = vmatmul.f32.gmra.mxu0 %v64
    %v131 = vpop.f32.mrf.mxu0
    %v132 = vadd.f32 0.0, %v131
    %133 = vdwg.mxu0
    %v134 = vld [vmem:[%s3] sm:$0x3]
    %v135 = vmax.f32 %v132, 0.0
    %v136 = vmul.f32 %v134, %v132
    %v137 = vsub.f32 %v135, %v136
    %v138 = vand.u32 2147483647, %v132
    %v139 = vsub.f32 0.0, %v138
    %v140 = vmul.f32 %v139, 1.442695
    %v141 = vpow.pop %v140
    %v142 = vadd.f32 %v141, 1.0
    %v143 = vlog2.pop %v142
    %v144 = vmul.f32 %v143, 0.6931472
    %v145 = vadd.f32 %v137, %v144
    %s146 = smul.u32 0, 128
    %v147 = vlaneseq
    %v148 = vand.u32 %v147, 127
    %v149 = vstv %s146
    %v150 = vadd.s32 %v149, %v148
    %vm151 = vcmp.lt.s32.totalorder %v150, 40
    %v152 = vsel %vm151, %v145, 0.0
    %vm153 = vcmask 1041408
    %v154 = vsel %vm153, %v152, 0.0
    %155 = vadd.xlane.f32.xlu0 %v154
    %v156 = vpop.xlane.xlu0 %155
    %v157 = vsel %vm153, %v156, 0.0
    %v158 = vrot.slane %v157, 4
    %v159 = vadd.f32 %v157, %v158
    %v160 = vrot.slane %v159, 2
    %v161 = vadd.f32 %v159, %v160
    %v162 = vrot.slane %v161, 1
    %v163 = vadd.f32 %v161, %v162
    %p164 = scmp.eq.s32.totalorder 0, 0
    // Predicated region
    $region18: #{net_forward.3} parent=1 // pred_check
      %p165 = pneg %p164
    $region19: #{net_forward.3} parent=1 // pred_check_branch
      %167 = sbr.rel (%p165) target = $region21
    $region20: #{net_forward.3} parent=1 // pred_region
      %vm168 = vcmask 0
      %169 = vst.msk [vmem:[#allocation2] sm:$0x1] %vm168, 0.0
    $region21: #{net_forward.3} parent=1 // pred_fallthru
      _
    %v170 = vld [vmem:[#allocation2] sm:$0x1]
    %v171 = vadd.f32 %v170, %v163
    %vm172 = vcmask 0
    %173 = vst.msk [vmem:[#allocation2] sm:$0x1] %vm172, %v171
    // Predicated region
    $region22: #{net_forward.3} parent=1 // pred_check
      _
    $region23: #{net_forward.3} parent=1 // pred_check_branch
      %175 = sbr.rel (0) target = $region25
    $region24: #{net_forward.3} parent=1 // pred_region
      %177 = vsyncadd [#allocation3], 0
      %s179 = sshll.u32 [#allocation2], 4
      %s180 = int_to_ptr.vmem [resolvable:$true] %s179
      %s181 = sshll.u32 %s4, 4
      %s182 = int_to_ptr.hbm [resolvable:$true] %s181
      %184 = dma.vmem_to_hbm [thread:$0]  %s180, 16, %s182, [#allocation3]
    $region25: #{net_forward.3} parent=1 // pred_fallthru
      _
    // Predicated region
    $region26: #{net_forward.3} parent=1 // pred_check
      _
    $region27: #{net_forward.3} parent=1 // pred_check_branch
      %186 = sbr.rel (0) target = $region29
    $region28: #{net_forward.3} parent=1 // pred_region
      %188 = dma.done [#allocation3], 16
    $region29: #{net_forward.3} parent=1 // pred_fallthru
      _
    %189 = vsyncpa [#allocation3], 1

// kernel: net_forward.2
$region0: #{net_forward.2}
  #allocation0 [shape = 'u32[]', space=smem, size = 0x4, offset = 0x4, fixed_abs, tag = 'smem constant byte address 0x4 - core index']
  #allocation1 [shape = 'u32[72,128]{1,0:T(1,128)}', space=vmem, size = 0x9000, scoped, tag = 'internal scratch']
  %s0 = inlined_call_operand.vmem [shape: f32[16,16], index: 0, kind: input, shape index: {}]
  %s1 = inlined_call_operand.vmem [shape: s32[2,1], index: 1, kind: input, shape index: {}]
  %s2 = inlined_call_operand.vmem [shape: f32[16,1024], index: 2, kind: input, shape index: {}]
  %s3 = inlined_call_operand.vmem [shape: f32[128,512], index: 3, kind: input, shape index: {}]
  %s4 = inlined_call_operand.vmem [shape: f32[128,512], index: 4, kind: input, shape index: {}]
  %s5 = inlined_call_operand.vmem [shape: f32[1,1024], index: 5, kind: input, shape index: {}]
  %s6 = inlined_call_operand.vmem [shape: f32[2,256], index: 6, kind: output, shape index: {}]
  %s7 = sld [smem:[#allocation0]]
  $region34: #{net_forward.2} parent=0
    _
  %s9 = ssub.s32 1, %s7
  %s10 = scalar_select 0, %s9, %s7
  // Predicated region
  $region2: #{net_forward.2} parent=0 // pred_check
    _
  $region3: #{net_forward.2} parent=0 // pred_check_branch
    %12 = sbr.rel (0) target = $region5
  $region4: #{net_forward.2} parent=0 // pred_region
    _
  $region5: #{net_forward.2} parent=0 // pred_fallthru
    _
  // Predicated region
  $region6: #{net_forward.2} parent=0 // pred_check
    _
  $region7: #{net_forward.2} parent=0 // pred_check_branch
    %14 = sbr.rel (0) target = $region9
  $region8: #{net_forward.2} parent=0 // pred_region
    _
  $region9: #{net_forward.2} parent=0 // pred_fallthru
    _
  // Predicated region
  $region10: #{net_forward.2} parent=0 // pred_check
    _
  $region11: #{net_forward.2} parent=0 // pred_check_branch
    %16 = sbr.rel (0) target = $region13
  $region12: #{net_forward.2} parent=0 // pred_region
    _
  $region13: #{net_forward.2} parent=0 // pred_fallthru
    _
  // Predicated region
  $region14: #{net_forward.2} parent=0 // pred_check
    _
  $region15: #{net_forward.2} parent=0 // pred_check_branch
    %18 = sbr.rel (0) target = $region17
  $region16: #{net_forward.2} parent=0 // pred_region
    _
  $region17: #{net_forward.2} parent=0 // pred_fallthru
    _
  // Predicated region
  $region18: #{net_forward.2} parent=0 // pred_check
    _
  $region19: #{net_forward.2} parent=0 // pred_check_branch
    %20 = sbr.rel (0) target = $region21
  $region20: #{net_forward.2} parent=0 // pred_region
    _
  $region21: #{net_forward.2} parent=0 // pred_fallthru
    _
  // Predicated region
  $region22: #{net_forward.2} parent=0 // pred_check
    _
  $region23: #{net_forward.2} parent=0 // pred_check_branch
    %22 = sbr.rel (0) target = $region25
  $region24: #{net_forward.2} parent=0 // pred_region
    _
  $region25: #{net_forward.2} parent=0 // pred_fallthru
    _
  %v23 = vld [vmem:[%s1] sm:$0x3]
  %v24 = vld [vmem:[%s3] sm:$0xff]
  %v25 = vld [vmem:[%s3 + $0x8] sm:$0xff]
  %v26 = vld [vmem:[%s3 + $0x10] sm:$0xff]
  %v27 = vld [vmem:[%s3 + $0x18] sm:$0xff]
  %v28 = vld [vmem:[%s3 + $0x20] sm:$0xff]
  %v29 = vld [vmem:[%s3 + $0x28] sm:$0xff]
  %v30 = vld [vmem:[%s3 + $0x30] sm:$0xff]
  %v31 = vld [vmem:[%s3 + $0x38] sm:$0xff]
  %v32 = vld [vmem:[%s3 + $0x40] sm:$0xff]
  %v33 = vld [vmem:[%s3 + $0x48] sm:$0xff]
  %v34 = vld [vmem:[%s3 + $0x50] sm:$0xff]
  %v35 = vld [vmem:[%s3 + $0x58] sm:$0xff]
  %v36 = vld [vmem:[%s3 + $0x60] sm:$0xff]
  %v37 = vld [vmem:[%s3 + $0x68] sm:$0xff]
  %v38 = vld [vmem:[%s3 + $0x70] sm:$0xff]
  %v39 = vld [vmem:[%s3 + $0x78] sm:$0xff]
  %v40 = vld [vmem:[%s3 + $0x80] sm:$0xff]
  %v41 = vld [vmem:[%s3 + $0x88] sm:$0xff]
  %v42 = vld [vmem:[%s3 + $0x90] sm:$0xff]
  %v43 = vld [vmem:[%s3 + $0x98] sm:$0xff]
  %v44 = vld [vmem:[%s3 + $0xa0] sm:$0xff]
  %v45 = vld [vmem:[%s3 + $0xa8] sm:$0xff]
  %v46 = vld [vmem:[%s3 + $0xb0] sm:$0xff]
  %v47 = vld [vmem:[%s3 + $0xb8] sm:$0xff]
  %v48 = vld [vmem:[%s3 + $0xc0] sm:$0xff]
  %v49 = vld [vmem:[%s3 + $0xc8] sm:$0xff]
  %v50 = vld [vmem:[%s3 + $0xd0] sm:$0xff]
  %v51 = vld [vmem:[%s3 + $0xd8] sm:$0xff]
  %v52 = vld [vmem:[%s3 + $0xe0] sm:$0xff]
  %v53 = vld [vmem:[%s3 + $0xe8] sm:$0xff]
  %v54 = vld [vmem:[%s3 + $0xf0] sm:$0xff]
  %v55 = vld [vmem:[%s3 + $0xf8] sm:$0xff]
  %v56 = vld [vmem:[%s3 + $0x100] sm:$0xff]
  %v57 = vld [vmem:[%s3 + $0x108] sm:$0xff]
  %v58 = vld [vmem:[%s3 + $0x110] sm:$0xff]
  %v59 = vld [vmem:[%s3 + $0x118] sm:$0xff]
  %v60 = vld [vmem:[%s3 + $0x120] sm:$0xff]
  %v61 = vld [vmem:[%s3 + $0x128] sm:$0xff]
  %v62 = vld [vmem:[%s3 + $0x130] sm:$0xff]
  %v63 = vld [vmem:[%s3 + $0x138] sm:$0xff]
  %v64 = vld [vmem:[%s3 + $0x140] sm:$0xff]
  %v65 = vld [vmem:[%s3 + $0x148] sm:$0xff]
  %v66 = vld [vmem:[%s3 + $0x150] sm:$0xff]
  %v67 = vld [vmem:[%s3 + $0x158] sm:$0xff]
  %v68 = vld [vmem:[%s3 + $0x160] sm:$0xff]
  %v69 = vld [vmem:[%s3 + $0x168] sm:$0xff]
  %v70 = vld [vmem:[%s3 + $0x170] sm:$0xff]
  %v71 = vld [vmem:[%s3 + $0x178] sm:$0xff]
  %v72 = vld [vmem:[%s3 + $0x180] sm:$0xff]
  %v73 = vld [vmem:[%s3 + $0x188] sm:$0xff]
  %v74 = vld [vmem:[%s3 + $0x190] sm:$0xff]
  %v75 = vld [vmem:[%s3 + $0x198] sm:$0xff]
  %v76 = vld [vmem:[%s3 + $0x1a0] sm:$0xff]
  %v77 = vld [vmem:[%s3 + $0x1a8] sm:$0xff]
  %v78 = vld [vmem:[%s3 + $0x1b0] sm:$0xff]
  %v79 = vld [vmem:[%s3 + $0x1b8] sm:$0xff]
  %v80 = vld [vmem:[%s3 + $0x1c0] sm:$0xff]
  %v81 = vld [vmem:[%s3 + $0x1c8] sm:$0xff]
  %v82 = vld [vmem:[%s3 + $0x1d0] sm:$0xff]
  %v83 = vld [vmem:[%s3 + $0x1d8] sm:$0xff]
  %v84 = vld [vmem:[%s3 + $0x1e0] sm:$0xff]
  %v85 = vld [vmem:[%s3 + $0x1e8] sm:$0xff]
  %v86 = vld [vmem:[%s3 + $0x1f0] sm:$0xff]
  %v87 = vld [vmem:[%s3 + $0x1f8] sm:$0xff]
  %v88 = vld [vmem:[%s4] sm:$0xff]
  %v89 = vld [vmem:[%s4 + $0x8] sm:$0xff]
  %v90 = vld [vmem:[%s4 + $0x10] sm:$0xff]
  %v91 = vld [vmem:[%s4 + $0x18] sm:$0xff]
  %v92 = vld [vmem:[%s4 + $0x20] sm:$0xff]
  %v93 = vld [vmem:[%s4 + $0x28] sm:$0xff]
  %v94 = vld [vmem:[%s4 + $0x30] sm:$0xff]
  %v95 = vld [vmem:[%s4 + $0x38] sm:$0xff]
  %v96 = vld [vmem:[%s4 + $0x40] sm:$0xff]
  %v97 = vld [vmem:[%s4 + $0x48] sm:$0xff]
  %v98 = vld [vmem:[%s4 + $0x50] sm:$0xff]
  %v99 = vld [vmem:[%s4 + $0x58] sm:$0xff]
  %v100 = vld [vmem:[%s4 + $0x60] sm:$0xff]
  %v101 = vld [vmem:[%s4 + $0x68] sm:$0xff]
  %v102 = vld [vmem:[%s4 + $0x70] sm:$0xff]
  %v103 = vld [vmem:[%s4 + $0x78] sm:$0xff]
  %v104 = vld [vmem:[%s4 + $0x80] sm:$0xff]
  %v105 = vld [vmem:[%s4 + $0x88] sm:$0xff]
  %v106 = vld [vmem:[%s4 + $0x90] sm:$0xff]
  %v107 = vld [vmem:[%s4 + $0x98] sm:$0xff]
  %v108 = vld [vmem:[%s4 + $0xa0] sm:$0xff]
  %v109 = vld [vmem:[%s4 + $0xa8] sm:$0xff]
  %v110 = vld [vmem:[%s4 + $0xb0] sm:$0xff]
  %v111 = vld [vmem:[%s4 + $0xb8] sm:$0xff]
  %v112 = vld [vmem:[%s4 + $0xc0] sm:$0xff]
  %v113 = vld [vmem:[%s4 + $0xc8] sm:$0xff]
  %v114 = vld [vmem:[%s4 + $0xd0] sm:$0xff]
  %v115 = vld [vmem:[%s4 + $0xd8] sm:$0xff]
  %v116 = vld [vmem:[%s4 + $0xe0] sm:$0xff]
  %v117 = vld [vmem:[%s4 + $0xe8] sm:$0xff]
  %v118 = vld [vmem:[%s4 + $0xf0] sm:$0xff]
  %v119 = vld [vmem:[%s4 + $0xf8] sm:$0xff]
  %v120 = vld [vmem:[%s4 + $0x100] sm:$0xff]
  %v121 = vld [vmem:[%s4 + $0x108] sm:$0xff]
  %v122 = vld [vmem:[%s4 + $0x110] sm:$0xff]
  %v123 = vld [vmem:[%s4 + $0x118] sm:$0xff]
  %v124 = vld [vmem:[%s4 + $0x120] sm:$0xff]
  %v125 = vld [vmem:[%s4 + $0x128] sm:$0xff]
  %v126 = vld [vmem:[%s4 + $0x130] sm:$0xff]
  %v127 = vld [vmem:[%s4 + $0x138] sm:$0xff]
  %v128 = vld [vmem:[%s4 + $0x140] sm:$0xff]
  %v129 = vld [vmem:[%s4 + $0x148] sm:$0xff]
  %v130 = vld [vmem:[%s4 + $0x150] sm:$0xff]
  %v131 = vld [vmem:[%s4 + $0x158] sm:$0xff]
  %v132 = vld [vmem:[%s4 + $0x160] sm:$0xff]
  %v133 = vld [vmem:[%s4 + $0x168] sm:$0xff]
  %v134 = vld [vmem:[%s4 + $0x170] sm:$0xff]
  %v135 = vld [vmem:[%s4 + $0x178] sm:$0xff]
  %v136 = vld [vmem:[%s4 + $0x180] sm:$0xff]
  %v137 = vld [vmem:[%s4 + $0x188] sm:$0xff]
  %v138 = vld [vmem:[%s4 + $0x190] sm:$0xff]
  %v139 = vld [vmem:[%s4 + $0x198] sm:$0xff]
  %v140 = vld [vmem:[%s4 + $0x1a0] sm:$0xff]
  %v141 = vld [vmem:[%s4 + $0x1a8] sm:$0xff]
  %v142 = vld [vmem:[%s4 + $0x1b0] sm:$0xff]
  %v143 = vld [vmem:[%s4 + $0x1b8] sm:$0xff]
  %v144 = vld [vmem:[%s4 + $0x1c0] sm:$0xff]
  %v145 = vld [vmem:[%s4 + $0x1c8] sm:$0xff]
  %v146 = vld [vmem:[%s4 + $0x1d0] sm:$0xff]
  %v147 = vld [vmem:[%s4 + $0x1d8] sm:$0xff]
  %v148 = vld [vmem:[%s4 + $0x1e0] sm:$0xff]
  %v149 = vld [vmem:[%s4 + $0x1e8] sm:$0xff]
  %v150 = vld [vmem:[%s4 + $0x1f0] sm:$0xff]
  %v151 = vld [vmem:[%s4 + $0x1f8] sm:$0xff]
  %v152 = vld [vmem:[%s0] sm:$0xff]
  %v153 = vld [vmem:[%s0 + $0x8] sm:$0xff]
  %v154 = vld [vmem:[%s2] sm:$0xff]
  %v155 = vld [vmem:[%s2 + $0x8] sm:$0xff]
  %v156 = vld [vmem:[%s2 + $0x10] sm:$0xff]
  %v157 = vld [vmem:[%s2 + $0x18] sm:$0xff]
  %v158 = vld [vmem:[%s2 + $0x20] sm:$0xff]
  %v159 = vld [vmem:[%s2 + $0x28] sm:$0xff]
  %v160 = vld [vmem:[%s2 + $0x30] sm:$0xff]
  %v161 = vld [vmem:[%s2 + $0x38] sm:$0xff]
  %v162 = vld [vmem:[%s2 + $0x40] sm:$0xff]
  %v163 = vld [vmem:[%s2 + $0x48] sm:$0xff]
  %v164 = vld [vmem:[%s2 + $0x50] sm:$0xff]
  %v165 = vld [vmem:[%s2 + $0x58] sm:$0xff]
  %v166 = vld [vmem:[%s2 + $0x60] sm:$0xff]
  %v167 = vld [vmem:[%s2 + $0x68] sm:$0xff]
  %v168 = vld [vmem:[%s2 + $0x70] sm:$0xff]
  %v169 = vld [vmem:[%s2 + $0x78] sm:$0xff]
  %v170 = vld [vmem:[%s5] sm:$0xff]
  %v172 = vperm.slane %v170, 0
  %v173 = vperm.slane %v170, 1
  %v174 = vperm.slane %v170, 2
  %v175 = vperm.slane %v170, 3
  %v176 = vperm.slane %v170, 4
  %v177 = vperm.slane %v170, 5
  %v178 = vperm.slane %v170, 6
  %v179 = vperm.slane %v170, 7
  %vm188 = vcmask 130048
  %v190 = vsel %vm188, %v152, 0
  %v193 = vsel %vm188, %v153, 0
  %195 = vmatpush.msra.mxu0 0.0
  %196 = vmatpush.msra.mxu0 0.0
  %197 = vmatpush.msra.mxu0 0.0
  %198 = vmatpush.msra.mxu0 0.0
  %199 = vmatpush.msra.mxu0 0.0
  %200 = vmatpush.msra.mxu0 0.0
  %201 = vmatpush.msra.mxu0 0.0
  %202 = vmatpush.msra.mxu0 0.0
  %203 = vmatpush.msra.mxu0 0.0
  %204 = vmatpush.msra.mxu0 0.0
  %205 = vmatpush.msra.mxu0 0.0
  %206 = vmatpush.msra.mxu0 0.0
  %207 = vmatpush.msra.mxu0 0.0
  %208 = vmatpush.msra.mxu0 0.0
  %209 = vmatpush.msra.mxu0 %v162
  %210 = vmatpush.msra.mxu0 %v154
  %211 = vmatmul.f32.gmra.mxu0 %v190
  %v212 = vpop.f32.mrf.mxu0
  %v213 = vadd.f32 %v172, %v212
  %214 = vmatmul.f32.gmra.mxu0 %v193
  %v215 = vpop.f32.mrf.mxu0
  %v216 = vadd.f32 %v172, %v215
  %217 = vdwg.mxu0
  %218 = vmatpush.msra.mxu0 0.0
  %219 = vmatpush.msra.mxu0 0.0
  %220 = vmatpush.msra.mxu0 0.0
  %221 = vmatpush.msra.mxu0 0.0
  %222 = vmatpush.msra.mxu0 0.0
  %223 = vmatpush.msra.mxu0 0.0
  %224 = vmatpush.msra.mxu0 0.0
  %225 = vmatpush.msra.mxu0 0.0
  %226 = vmatpush.msra.mxu0 0.0
  %227 = vmatpush.msra.mxu0 0.0
  %228 = vmatpush.msra.mxu0 0.0
  %229 = vmatpush.msra.mxu0 0.0
  %230 = vmatpush.msra.mxu0 0.0
  %231 = vmatpush.msra.mxu0 0.0
  %232 = vmatpush.msra.mxu0 %v163
  %233 = vmatpush.msra.mxu0 %v155
  %234 = vmatmul.f32.gmra.mxu0 %v190
  %v235 = vpop.f32.mrf.mxu0
  %v236 = vadd.f32 %v173, %v235
  %237 = vmatmul.f32.gmra.mxu0 %v193
  %v238 = vpop.f32.mrf.mxu0
  %v239 = vadd.f32 %v173, %v238
  %240 = vdwg.mxu0
  %241 = vmatpush.msra.mxu0 0.0
  %242 = vmatpush.msra.mxu0 0.0
  %243 = vmatpush.msra.mxu0 0.0
  %244 = vmatpush.msra.mxu0 0.0
  %245 = vmatpush.msra.mxu0 0.0
  %246 = vmatpush.msra.mxu0 0.0
  %247 = vmatpush.msra.mxu0 0.0
  %248 = vmatpush.msra.mxu0 0.0
  %249 = vmatpush.msra.mxu0 0.0
  %250 = vmatpush.msra.mxu0 0.0
  %251 = vmatpush.msra.mxu0 0.0
  %252 = vmatpush.msra.mxu0 0.0
  %253 = vmatpush.msra.mxu0 0.0
  %254 = vmatpush.msra.mxu0 0.0
  %255 = vmatpush.msra.mxu0 %v164
  %256 = vmatpush.msra.mxu0 %v156
  %257 = vmatmul.f32.gmra.mxu0 %v190
  %v258 = vpop.f32.mrf.mxu0
  %v259 = vadd.f32 %v174, %v258
  %260 = vmatmul.f32.gmra.mxu0 %v193
  %v261 = vpop.f32.mrf.mxu0
  %v262 = vadd.f32 %v174, %v261
  %263 = vdwg.mxu0
  %264 = vmatpush.msra.mxu0 0.0
  %265 = vmatpush.msra.mxu0 0.0
  %266 = vmatpush.msra.mxu0 0.0
  %267 = vmatpush.msra.mxu0 0.0
  %268 = vmatpush.msra.mxu0 0.0
  %269 = vmatpush.msra.mxu0 0.0
  %270 = vmatpush.msra.mxu0 0.0
  %271 = vmatpush.msra.mxu0 0.0
  %272 = vmatpush.msra.mxu0 0.0
  %273 = vmatpush.msra.mxu0 0.0
  %274 = vmatpush.msra.mxu0 0.0
  %275 = vmatpush.msra.mxu0 0.0
  %276 = vmatpush.msra.mxu0 0.0
  %277 = vmatpush.msra.mxu0 0.0
  %278 = vmatpush.msra.mxu0 %v165
  %279 = vmatpush.msra.mxu0 %v157
  %280 = vmatmul.f32.gmra.mxu0 %v190
  %v281 = vpop.f32.mrf.mxu0
  %v282 = vadd.f32 %v175, %v281
  %283 = vmatmul.f32.gmra.mxu0 %v193
  %v284 = vpop.f32.mrf.mxu0
  %v285 = vadd.f32 %v175, %v284
  %286 = vdwg.mxu0
  %287 = vmatpush.msra.mxu0 0.0
  %288 = vmatpush.msra.mxu0 0.0
  %289 = vmatpush.msra.mxu0 0.0
  %290 = vmatpush.msra.mxu0 0.0
  %291 = vmatpush.msra.mxu0 0.0
  %292 = vmatpush.msra.mxu0 0.0
  %293 = vmatpush.msra.mxu0 0.0
  %294 = vmatpush.msra.mxu0 0.0
  %295 = vmatpush.msra.mxu0 0.0
  %296 = vmatpush.msra.mxu0 0.0
  %297 = vmatpush.msra.mxu0 0.0
  %298 = vmatpush.msra.mxu0 0.0
  %299 = vmatpush.msra.mxu0 0.0
  %300 = vmatpush.msra.mxu0 0.0
  %301 = vmatpush.msra.mxu0 %v166
  %302 = vmatpush.msra.mxu0 %v158
  %303 = vmatmul.f32.gmra.mxu0 %v190
  %v304 = vpop.f32.mrf.mxu0
  %v305 = vadd.f32 %v176, %v304
  %306 = vmatmul.f32.gmra.mxu0 %v193
  %v307 = vpop.f32.mrf.mxu0
  %v308 = vadd.f32 %v176, %v307
  %309 = vdwg.mxu0
  %310 = vmatpush.msra.mxu0 0.0
  %311 = vmatpush.msra.mxu0 0.0
  %312 = vmatpush.msra.mxu0 0.0
  %313 = vmatpush.msra.mxu0 0.0
  %314 = vmatpush.msra.mxu0 0.0
  %315 = vmatpush.msra.mxu0 0.0
  %316 = vmatpush.msra.mxu0 0.0
  %317 = vmatpush.msra.mxu0 0.0
  %318 = vmatpush.msra.mxu0 0.0
  %319 = vmatpush.msra.mxu0 0.0
  %320 = vmatpush.msra.mxu0 0.0
  %321 = vmatpush.msra.mxu0 0.0
  %322 = vmatpush.msra.mxu0 0.0
  %323 = vmatpush.msra.mxu0 0.0
  %324 = vmatpush.msra.mxu0 %v167
  %325 = vmatpush.msra.mxu0 %v159
  %326 = vmatmul.f32.gmra.mxu0 %v190
  %v327 = vpop.f32.mrf.mxu0
  %v328 = vadd.f32 %v177, %v327
  %329 = vmatmul.f32.gmra.mxu0 %v193
  %v330 = vpop.f32.mrf.mxu0
  %v331 = vadd.f32 %v177, %v330
  %332 = vdwg.mxu0
  %333 = vmatpush.msra.mxu0 0.0
  %334 = vmatpush.msra.mxu0 0.0
  %335 = vmatpush.msra.mxu0 0.0
  %336 = vmatpush.msra.mxu0 0.0
  %337 = vmatpush.msra.mxu0 0.0
  %338 = vmatpush.msra.mxu0 0.0
  %339 = vmatpush.msra.mxu0 0.0
  %340 = vmatpush.msra.mxu0 0.0
  %341 = vmatpush.msra.mxu0 0.0
  %342 = vmatpush.msra.mxu0 0.0
  %343 = vmatpush.msra.mxu0 0.0
  %344 = vmatpush.msra.mxu0 0.0
  %345 = vmatpush.msra.mxu0 0.0
  %346 = vmatpush.msra.mxu0 0.0
  %347 = vmatpush.msra.mxu0 %v168
  %348 = vmatpush.msra.mxu0 %v160
  %349 = vmatmul.f32.gmra.mxu0 %v190
  %v350 = vpop.f32.mrf.mxu0
  %v351 = vadd.f32 %v178, %v350
  %352 = vmatmul.f32.gmra.mxu0 %v193
  %v353 = vpop.f32.mrf.mxu0
  %v354 = vadd.f32 %v178, %v353
  %355 = vdwg.mxu0
  %356 = vmatpush.msra.mxu0 0.0
  %357 = vmatpush.msra.mxu0 0.0
  %358 = vmatpush.msra.mxu0 0.0
  %359 = vmatpush.msra.mxu0 0.0
  %360 = vmatpush.msra.mxu0 0.0
  %361 = vmatpush.msra.mxu0 0.0
  %362 = vmatpush.msra.mxu0 0.0
  %363 = vmatpush.msra.mxu0 0.0
  %364 = vmatpush.msra.mxu0 0.0
  %365 = vmatpush.msra.mxu0 0.0
  %366 = vmatpush.msra.mxu0 0.0
  %367 = vmatpush.msra.mxu0 0.0
  %368 = vmatpush.msra.mxu0 0.0
  %369 = vmatpush.msra.mxu0 0.0
  %370 = vmatpush.msra.mxu0 %v169
  %371 = vmatpush.msra.mxu0 %v161
  %372 = vmatmul.f32.gmra.mxu0 %v190
  %v373 = vpop.f32.mrf.mxu0
  %v374 = vadd.f32 %v179, %v373
  %375 = vmatmul.f32.gmra.mxu0 %v193
  %v376 = vpop.f32.mrf.mxu0
  %v377 = vadd.f32 %v179, %v376
  %378 = vdwg.mxu0
  %379 = vmatpush.msra.mxu0 %v84
  %380 = vmatpush.msra.mxu0 %v80
  %381 = vmatpush.msra.mxu0 %v76
  %382 = vmatpush.msra.mxu0 %v72
  %383 = vmatpush.msra.mxu0 %v68
  %384 = vmatpush.msra.mxu0 %v64
  %385 = vmatpush.msra.mxu0 %v60
  %386 = vmatpush.msra.mxu0 %v56
  %387 = vmatpush.msra.mxu0 %v52
  %388 = vmatpush.msra.mxu0 %v48
  %389 = vmatpush.msra.mxu0 %v44
  %390 = vmatpush.msra.mxu0 %v40
  %391 = vmatpush.msra.mxu0 %v36
  %392 = vmatpush.msra.mxu0 %v32
  %393 = vmatpush.msra.mxu0 %v28
  %394 = vmatpush.msra.mxu0 %v24
  %395 = vmatmul.f32.gmra.mxu0 0.0
  %v396 = vpop.f32.mrf.mxu0
  %v397 = vadd.f32 0.0, %v396
  %398 = vdwg.mxu0
  %399 = vmatpush.msra.mxu0 %v85
  %400 = vmatpush.msra.mxu0 %v81
  %401 = vmatpush.msra.mxu0 %v77
  %402 = vmatpush.msra.mxu0 %v73
  %403 = vmatpush.msra.mxu0 %v69
  %404 = vmatpush.msra.mxu0 %v65
  %405 = vmatpush.msra.mxu0 %v61
  %406 = vmatpush.msra.mxu0 %v57
  %407 = vmatpush.msra.mxu0 %v53
  %408 = vmatpush.msra.mxu0 %v49
  %409 = vmatpush.msra.mxu0 %v45
  %410 = vmatpush.msra.mxu0 %v41
  %411 = vmatpush.msra.mxu0 %v37
  %412 = vmatpush.msra.mxu0 %v33
  %413 = vmatpush.msra.mxu0 %v29
  %414 = vmatpush.msra.mxu0 %v25
  %415 = vmatmul.f32.gmra.mxu0 0.0
  %v416 = vpop.f32.mrf.mxu0
  %v417 = vadd.f32 0.0, %v416
  %418 = vdwg.mxu0
  %419 = vmatpush.msra.mxu0 %v86
  %420 = vmatpush.msra.mxu0 %v82
  %421 = vmatpush.msra.mxu0 %v78
  %422 = vmatpush.msra.mxu0 %v74
  %423 = vmatpush.msra.mxu0 %v70
  %424 = vmatpush.msra.mxu0 %v66
  %425 = vmatpush.msra.mxu0 %v62
  %426 = vmatpush.msra.mxu0 %v58
  %427 = vmatpush.msra.mxu0 %v54
  %428 = vmatpush.msra.mxu0 %v50
  %429 = vmatpush.msra.mxu0 %v46
  %430 = vmatpush.msra.mxu0 %v42
  %431 = vmatpush.msra.mxu0 %v38
  %432 = vmatpush.msra.mxu0 %v34
  %433 = vmatpush.msra.mxu0 %v30
  %434 = vmatpush.msra.mxu0 %v26
  %435 = vmatmul.f32.gmra.mxu0 0.0
  %v436 = vpop.f32.mrf.mxu0
  %v437 = vadd.f32 0.0, %v436
  %438 = vdwg.mxu0
  %439 = vmatpush.msra.mxu0 %v87
  %440 = vmatpush.msra.mxu0 %v83
  %441 = vmatpush.msra.mxu0 %v79
  %442 = vmatpush.msra.mxu0 %v75
  %443 = vmatpush.msra.mxu0 %v71
  %444 = vmatpush.msra.mxu0 %v67
  %445 = vmatpush.msra.mxu0 %v63
  %446 = vmatpush.msra.mxu0 %v59
  %447 = vmatpush.msra.mxu0 %v55
  %448 = vmatpush.msra.mxu0 %v51
  %449 = vmatpush.msra.mxu0 %v47
  %450 = vmatpush.msra.mxu0 %v43
  %451 = vmatpush.msra.mxu0 %v39
  %452 = vmatpush.msra.mxu0 %v35
  %453 = vmatpush.msra.mxu0 %v31
  %454 = vmatpush.msra.mxu0 %v27
  %455 = vmatmul.f32.gmra.mxu0 0.0
  %v456 = vpop.f32.mrf.mxu0
  %v457 = vadd.f32 0.0, %v456
  %458 = vdwg.mxu0
  %v459 = vadd.f32 %v213, %v397
  %v460 = vadd.f32 %v236, %v417
  %v461 = vadd.f32 %v259, %v437
  %v462 = vadd.f32 %v282, %v457
  %463 = vmatpush.msra.mxu0 %v148
  %464 = vmatpush.msra.mxu0 %v144
  %465 = vmatpush.msra.mxu0 %v140
  %466 = vmatpush.msra.mxu0 %v136
  %467 = vmatpush.msra.mxu0 %v132
  %468 = vmatpush.msra.mxu0 %v128
  %469 = vmatpush.msra.mxu0 %v124
  %470 = vmatpush.msra.mxu0 %v120
  %471 = vmatpush.msra.mxu0 %v116
  %472 = vmatpush.msra.mxu0 %v112
  %473 = vmatpush.msra.mxu0 %v108
  %474 = vmatpush.msra.mxu0 %v104
  %475 = vmatpush.msra.mxu0 %v100
  %476 = vmatpush.msra.mxu0 %v96
  %477 = vmatpush.msra.mxu0 %v92
  %478 = vmatpush.msra.mxu0 %v88
  %479 = vmatmul.f32.gmra.mxu0 0.0
  %v480 = vpop.f32.mrf.mxu0
  %v481 = vadd.f32 0.0, %v480
  %482 = vdwg.mxu0
  %483 = vmatpush.msra.mxu0 %v149
  %484 = vmatpush.msra.mxu0 %v145
  %485 = vmatpush.msra.mxu0 %v141
  %486 = vmatpush.msra.mxu0 %v137
  %487 = vmatpush.msra.mxu0 %v133
  %488 = vmatpush.msra.mxu0 %v129
  %489 = vmatpush.msra.mxu0 %v125
  %490 = vmatpush.msra.mxu0 %v121
  %491 = vmatpush.msra.mxu0 %v117
  %492 = vmatpush.msra.mxu0 %v113
  %493 = vmatpush.msra.mxu0 %v109
  %494 = vmatpush.msra.mxu0 %v105
  %495 = vmatpush.msra.mxu0 %v101
  %496 = vmatpush.msra.mxu0 %v97
  %497 = vmatpush.msra.mxu0 %v93
  %498 = vmatpush.msra.mxu0 %v89
  %499 = vmatmul.f32.gmra.mxu0 0.0
  %v500 = vpop.f32.mrf.mxu0
  %v501 = vadd.f32 0.0, %v500
  %502 = vdwg.mxu0
  %503 = vmatpush.msra.mxu0 %v150
  %504 = vmatpush.msra.mxu0 %v146
  %505 = vmatpush.msra.mxu0 %v142
  %506 = vmatpush.msra.mxu0 %v138
  %507 = vmatpush.msra.mxu0 %v134
  %508 = vmatpush.msra.mxu0 %v130
  %509 = vmatpush.msra.mxu0 %v126
  %510 = vmatpush.msra.mxu0 %v122
  %511 = vmatpush.msra.mxu0 %v118
  %512 = vmatpush.msra.mxu0 %v114
  %513 = vmatpush.msra.mxu0 %v110
  %514 = vmatpush.msra.mxu0 %v106
  %515 = vmatpush.msra.mxu0 %v102
  %516 = vmatpush.msra.mxu0 %v98
  %517 = vmatpush.msra.mxu0 %v94
  %518 = vmatpush.msra.mxu0 %v90
  %519 = vmatmul.f32.gmra.mxu0 0.0
  %v520 = vpop.f32.mrf.mxu0
  %v521 = vadd.f32 0.0, %v520
  %522 = vdwg.mxu0
  %523 = vmatpush.msra.mxu0 %v151
  %524 = vmatpush.msra.mxu0 %v147
  %525 = vmatpush.msra.mxu0 %v143
  %526 = vmatpush.msra.mxu0 %v139
  %527 = vmatpush.msra.mxu0 %v135
  %528 = vmatpush.msra.mxu0 %v131
  %529 = vmatpush.msra.mxu0 %v127
  %530 = vmatpush.msra.mxu0 %v123
  %531 = vmatpush.msra.mxu0 %v119
  %532 = vmatpush.msra.mxu0 %v115
  %533 = vmatpush.msra.mxu0 %v111
  %534 = vmatpush.msra.mxu0 %v107
  %535 = vmatpush.msra.mxu0 %v103
  %536 = vmatpush.msra.mxu0 %v99
  %537 = vmatpush.msra.mxu0 %v95
  %538 = vmatpush.msra.mxu0 %v91
  %539 = vmatmul.f32.gmra.mxu0 0.0
  %v540 = vpop.f32.mrf.mxu0
  %v541 = vadd.f32 0.0, %v540
  %542 = vdwg.mxu0
  %v547 = vrot.slane %v481, 2
  %v548 = vrot.slane %v501, 2
  %v549 = vrot.slane %v521, 2
  %v550 = vrot.slane %v541, 2
  %v555 = vadd.f32 %v308, %v547
  %v556 = vadd.f32 %v331, %v548
  %v557 = vadd.f32 %v354, %v549
  %v558 = vadd.f32 %v377, %v550
  %vm559 = vcmp.gt.s32.totalorder %v23, 0
  %v560 = vxor.u32 %v459, 2147483648
  %v561 = vmul.f32 %v560, 1.442695
  %v562 = vpow.pop %v561
  %v563 = vadd.f32 %v562, 1.0
  %v564 = vrcp.pop %v563
  %v565 = vmul.f32 %v563, %v564
  %v566 = vsub.f32 1.0, %v565
  %v567 = vmul.f32 %v564, %v566
  %v568 = vadd.f32 %v564, %v567
  %vm569 = vweird.f32 %v563
  %vm570 = vweird.f32 %v564
  %vm571 = vmor %vm569, %vm570
  %v572 = vsel %vm571, %v564, %v568
  %v573 = vand.u32 2147483647, %v563
  %vm574 = vcmp.eq.f32.partialorder %v573, 8.507059e+37
  %v575 = vand.u32 %v563, 2147483648
  %v576 = vor.u32 1.1754944e-38, %v575
  %v577 = vsel %vm574, %v576, %v572
  %v578 = vmul.f32 1.0, %v577
  %v579 = vxor.u32 %v460, 2147483648
  %v580 = vmul.f32 %v579, 1.442695
  %v581 = vpow.pop %v580
  %v582 = vadd.f32 %v581, 1.0
  %v583 = vrcp.pop %v582
  %v584 = vmul.f32 %v582, %v583
  %v585 = vsub.f32 1.0, %v584
  %v586 = vmul.f32 %v583, %v585
  %v587 = vadd.f32 %v583, %v586
  %vm588 = vweird.f32 %v582
  %vm589 = vweird.f32 %v583
  %vm590 = vmor %vm588, %vm589
  %v591 = vsel %vm590, %v583, %v587
  %v592 = vand.u32 2147483647, %v582
  %vm593 = vcmp.eq.f32.partialorder %v592, 8.507059e+37
  %v594 = vand.u32 %v582, 2147483648
  %v595 = vor.u32 1.1754944e-38, %v594
  %v596 = vsel %vm593, %v595, %v591
  %v597 = vmul.f32 1.0, %v596
  %v598 = vtanh.pop %v461
  %v599 = vxor.u32 %v462, 2147483648
  %v600 = vmul.f32 %v599, 1.442695
  %v601 = vpow.pop %v600
  %v602 = vadd.f32 %v601, 1.0
  %v603 = vrcp.pop %v602
  %v604 = vmul.f32 %v602, %v603
  %v605 = vsub.f32 1.0, %v604
  %v606 = vmul.f32 %v603, %v605
  %v607 = vadd.f32 %v603, %v606
  %vm608 = vweird.f32 %v602
  %vm609 = vweird.f32 %v603
  %vm610 = vmor %vm608, %vm609
  %v611 = vsel %vm610, %v603, %v607
  %v612 = vand.u32 2147483647, %v602
  %vm613 = vcmp.eq.f32.partialorder %v612, 8.507059e+37
  %v614 = vand.u32 %v602, 2147483648
  %v615 = vor.u32 1.1754944e-38, %v614
  %v616 = vsel %vm613, %v615, %v611
  %v617 = vmul.f32 1.0, %v616
  %v618 = vmul.f32 %v597, 0.0
  %v619 = vmul.f32 %v578, %v598
  %v620 = vadd.f32 %v618, %v619
  %v621 = vtanh.pop %v620
  %v622 = vmul.f32 %v617, %v621
  %v623 = vsel %vm559, 1, 0
  %624 = vset.pattern.permute.xlu0 0
  %625 = vperm.xlu0 %624, %v623
  %v626 = vpop.permute.xlu0 %625
  %vm627 = vcmp.eq.s32.totalorder %v626, 1
  %v628 = vsel %vm627, %v622, 0.0
  %v629 = vsel %vm627, %v620, 0.0
  %vm630 = vcmp.gt.s32.totalorder %v23, 7
  %v631 = vxor.u32 %v555, 2147483648
  %v632 = vmul.f32 %v631, 1.442695
  %v633 = vpow.pop %v632
  %v634 = vadd.f32 %v633, 1.0
  %v635 = vrcp.pop %v634
  %v636 = vmul.f32 %v634, %v635
  %v637 = vsub.f32 1.0, %v636
  %v638 = vmul.f32 %v635, %v637
  %v639 = vadd.f32 %v635, %v638
  %vm640 = vweird.f32 %v634
  %vm641 = vweird.f32 %v635
  %vm642 = vmor %vm640, %vm641
  %v643 = vsel %vm642, %v635, %v639
  %v644 = vand.u32 2147483647, %v634
  %vm645 = vcmp.eq.f32.partialorder %v644, 8.507059e+37
  %v646 = vand.u32 %v634, 2147483648
  %v647 = vor.u32 1.1754944e-38, %v646
  %v648 = vsel %vm645, %v647, %v643
  %v649 = vmul.f32 1.0, %v648
  %v650 = vxor.u32 %v556, 2147483648
  %v651 = vmul.f32 %v650, 1.442695
  %v652 = vpow.pop %v651
  %v653 = vadd.f32 %v652, 1.0
  %v654 = vrcp.pop %v653
  %v655 = vmul.f32 %v653, %v654
  %v656 = vsub.f32 1.0, %v655
  %v657 = vmul.f32 %v654, %v656
  %v658 = vadd.f32 %v654, %v657
  %vm659 = vweird.f32 %v653
  %vm660 = vweird.f32 %v654
  %vm661 = vmor %vm659, %vm660
  %v662 = vsel %vm661, %v654, %v658
  %v663 = vand.u32 2147483647, %v653
  %vm664 = vcmp.eq.f32.partialorder %v663, 8.507059e+37
  %v665 = vand.u32 %v653, 2147483648
  %v666 = vor.u32 1.1754944e-38, %v665
  %v667 = vsel %vm664, %v666, %v662
  %v668 = vmul.f32 1.0, %v667
  %v669 = vtanh.pop %v557
  %v670 = vxor.u32 %v558, 2147483648
  %v671 = vmul.f32 %v670, 1.442695
  %v672 = vpow.pop %v671
  %v673 = vadd.f32 %v672, 1.0
  %v674 = vrcp.pop %v673
  %v675 = vmul.f32 %v673, %v674
  %v676 = vsub.f32 1.0, %v675
  %v677 = vmul.f32 %v674, %v676
  %v678 = vadd.f32 %v674, %v677
  %vm679 = vweird.f32 %v673
  %vm680 = vweird.f32 %v674
  %vm681 = vmor %vm679, %vm680
  %v682 = vsel %vm681, %v674, %v678
  %v683 = vand.u32 2147483647, %v673
  %vm684 = vcmp.eq.f32.partialorder %v683, 8.507059e+37
  %v685 = vand.u32 %v673, 2147483648
  %v686 = vor.u32 1.1754944e-38, %v685
  %v687 = vsel %vm684, %v686, %v682
  %v688 = vmul.f32 1.0, %v687
  %v689 = vmul.f32 %v668, 0.0
  %v690 = vmul.f32 %v649, %v669
  %v691 = vadd.f32 %v689, %v690
  %v692 = vtanh.pop %v691
  %v693 = vmul.f32 %v688, %v692
  %v694 = vsel %vm630, 1, 0
  %695 = vset.pattern.permute.xlu0 0
  %696 = vperm.xlu0 %695, %v694
  %v697 = vpop.permute.xlu0 %696
  %vm698 = vcmp.eq.s32.totalorder %v697, 1
  %v700 = vrot.slane %v693, 6
  %v702 = vsel %vm698, %v700, 0.0
  %v704 = vrot.slane %v691, 6
  %v706 = vsel %vm698, %v704, 0.0
  %707 = vmatpush.msra.mxu0 %v84
  %708 = vmatpush.msra.mxu0 %v80
  %709 = vmatpush.msra.mxu0 %v76
  %710 = vmatpush.msra.mxu0 %v72
  %711 = vmatpush.msra.mxu0 %v68
  %712 = vmatpush.msra.mxu0 %v64
  %713 = vmatpush.msra.mxu0 %v60
  %714 = vmatpush.msra.mxu0 %v56
  %715 = vmatpush.msra.mxu0 %v52
  %716 = vmatpush.msra.mxu0 %v48
  %717 = vmatpush.msra.mxu0 %v44
  %718 = vmatpush.msra.mxu0 %v40
  %719 = vmatpush.msra.mxu0 %v36
  %720 = vmatpush.msra.mxu0 %v32
  %721 = vmatpush.msra.mxu0 %v28
  %722 = vmatpush.msra.mxu0 %v24
  %723 = vmatmul.f32.gmra.mxu0 %v628
  %v724 = vpop.f32.mrf.mxu0
  %v725 = vadd.f32 0.0, %v724
  %726 = vdwg.mxu0
  %727 = vmatpush.msra.mxu0 %v85
  %728 = vmatpush.msra.mxu0 %v81
  %729 = vmatpush.msra.mxu0 %v77
  %730 = vmatpush.msra.mxu0 %v73
  %731 = vmatpush.msra.mxu0 %v69
  %732 = vmatpush.msra.mxu0 %v65
  %733 = vmatpush.msra.mxu0 %v61
  %734 = vmatpush.msra.mxu0 %v57
  %735 = vmatpush.msra.mxu0 %v53
  %736 = vmatpush.msra.mxu0 %v49
  %737 = vmatpush.msra.mxu0 %v45
  %738 = vmatpush.msra.mxu0 %v41
  %739 = vmatpush.msra.mxu0 %v37
  %740 = vmatpush.msra.mxu0 %v33
  %741 = vmatpush.msra.mxu0 %v29
  %742 = vmatpush.msra.mxu0 %v25
  %743 = vmatmul.f32.gmra.mxu0 %v628
  %v744 = vpop.f32.mrf.mxu0
  %v745 = vadd.f32 0.0, %v744
  %746 = vdwg.mxu0
  %747 = vmatpush.msra.mxu0 %v86
  %748 = vmatpush.msra.mxu0 %v82
  %749 = vmatpush.msra.mxu0 %v78
  %750 = vmatpush.msra.mxu0 %v74
  %751 = vmatpush.msra.mxu0 %v70
  %752 = vmatpush.msra.mxu0 %v66
  %753 = vmatpush.msra.mxu0 %v62
  %754 = vmatpush.msra.mxu0 %v58
  %755 = vmatpush.msra.mxu0 %v54
  %756 = vmatpush.msra.mxu0 %v50
  %757 = vmatpush.msra.mxu0 %v46
  %758 = vmatpush.msra.mxu0 %v42
  %759 = vmatpush.msra.mxu0 %v38
  %760 = vmatpush.msra.mxu0 %v34
  %761 = vmatpush.msra.mxu0 %v30
  %762 = vmatpush.msra.mxu0 %v26
  %763 = vmatmul.f32.gmra.mxu0 %v628
  %v764 = vpop.f32.mrf.mxu0
  %v765 = vadd.f32 0.0, %v764
  %766 = vdwg.mxu0
  %767 = vmatpush.msra.mxu0 %v87
  %768 = vmatpush.msra.mxu0 %v83
  %769 = vmatpush.msra.mxu0 %v79
  %770 = vmatpush.msra.mxu0 %v75
  %771 = vmatpush.msra.mxu0 %v71
  %772 = vmatpush.msra.mxu0 %v67
  %773 = vmatpush.msra.mxu0 %v63
  %774 = vmatpush.msra.mxu0 %v59
  %775 = vmatpush.msra.mxu0 %v55
  %776 = vmatpush.msra.mxu0 %v51
  %777 = vmatpush.msra.mxu0 %v47
  %778 = vmatpush.msra.mxu0 %v43
  %779 = vmatpush.msra.mxu0 %v39
  %780 = vmatpush.msra.mxu0 %v35
  %781 = vmatpush.msra.mxu0 %v31
  %782 = vmatpush.msra.mxu0 %v27
  %783 = vmatmul.f32.gmra.mxu0 %v628
  %v784 = vpop.f32.mrf.mxu0
  %v785 = vadd.f32 0.0, %v784
  %786 = vdwg.mxu0
  %v791 = vrot.slane %v725, 6
  %v792 = vrot.slane %v745, 6
  %v793 = vrot.slane %v765, 6
  %v794 = vrot.slane %v785, 6
  %v799 = vadd.f32 %v213, %v791
  %v800 = vadd.f32 %v236, %v792
  %v801 = vadd.f32 %v259, %v793
  %v802 = vadd.f32 %v282, %v794
  %803 = vmatpush.msra.mxu0 %v148
  %804 = vmatpush.msra.mxu0 %v144
  %805 = vmatpush.msra.mxu0 %v140
  %806 = vmatpush.msra.mxu0 %v136
  %807 = vmatpush.msra.mxu0 %v132
  %808 = vmatpush.msra.mxu0 %v128
  %809 = vmatpush.msra.mxu0 %v124
  %810 = vmatpush.msra.mxu0 %v120
  %811 = vmatpush.msra.mxu0 %v116
  %812 = vmatpush.msra.mxu0 %v112
  %813 = vmatpush.msra.mxu0 %v108
  %814 = vmatpush.msra.mxu0 %v104
  %815 = vmatpush.msra.mxu0 %v100
  %816 = vmatpush.msra.mxu0 %v96
  %817 = vmatpush.msra.mxu0 %v92
  %818 = vmatpush.msra.mxu0 %v88
  %819 = vmatmul.f32.gmra.mxu0 %v702
  %v820 = vpop.f32.mrf.mxu0
  %v821 = vadd.f32 0.0, %v820
  %822 = vdwg.mxu0
  %823 = vmatpush.msra.mxu0 %v149
  %824 = vmatpush.msra.mxu0 %v145
  %825 = vmatpush.msra.mxu0 %v141
  %826 = vmatpush.msra.mxu0 %v137
  %827 = vmatpush.msra.mxu0 %v133
  %828 = vmatpush.msra.mxu0 %v129
  %829 = vmatpush.msra.mxu0 %v125
  %830 = vmatpush.msra.mxu0 %v121
  %831 = vmatpush.msra.mxu0 %v117
  %832 = vmatpush.msra.mxu0 %v113
  %833 = vmatpush.msra.mxu0 %v109
  %834 = vmatpush.msra.mxu0 %v105
  %835 = vmatpush.msra.mxu0 %v101
  %836 = vmatpush.msra.mxu0 %v97
  %837 = vmatpush.msra.mxu0 %v93
  %838 = vmatpush.msra.mxu0 %v89
  %839 = vmatmul.f32.gmra.mxu0 %v702
  %v840 = vpop.f32.mrf.mxu0
  %v841 = vadd.f32 0.0, %v840
  %842 = vdwg.mxu0
  %843 = vmatpush.msra.mxu0 %v150
  %844 = vmatpush.msra.mxu0 %v146
  %845 = vmatpush.msra.mxu0 %v142
  %846 = vmatpush.msra.mxu0 %v138
  %847 = vmatpush.msra.mxu0 %v134
  %848 = vmatpush.msra.mxu0 %v130
  %849 = vmatpush.msra.mxu0 %v126
  %850 = vmatpush.msra.mxu0 %v122
  %851 = vmatpush.msra.mxu0 %v118
  %852 = vmatpush.msra.mxu0 %v114
  %853 = vmatpush.msra.mxu0 %v110
  %854 = vmatpush.msra.mxu0 %v106
  %855 = vmatpush.msra.mxu0 %v102
  %856 = vmatpush.msra.mxu0 %v98
  %857 = vmatpush.msra.mxu0 %v94
  %858 = vmatpush.msra.mxu0 %v90
  %859 = vmatmul.f32.gmra.mxu0 %v702
  %v860 = vpop.f32.mrf.mxu0
  %v861 = vadd.f32 0.0, %v860
  %862 = vdwg.mxu0
  %863 = vmatpush.msra.mxu0 %v151
  %864 = vmatpush.msra.mxu0 %v147
  %865 = vmatpush.msra.mxu0 %v143
  %866 = vmatpush.msra.mxu0 %v139
  %867 = vmatpush.msra.mxu0 %v135
  %868 = vmatpush.msra.mxu0 %v131
  %869 = vmatpush.msra.mxu0 %v127
  %870 = vmatpush.msra.mxu0 %v123
  %871 = vmatpush.msra.mxu0 %v119
  %872 = vmatpush.msra.mxu0 %v115
  %873 = vmatpush.msra.mxu0 %v111
  %874 = vmatpush.msra.mxu0 %v107
  %875 = vmatpush.msra.mxu0 %v103
  %876 = vmatpush.msra.mxu0 %v99
  %877 = vmatpush.msra.mxu0 %v95
  %878 = vmatpush.msra.mxu0 %v91
  %879 = vmatmul.f32.gmra.mxu0 %v702
  %v880 = vpop.f32.mrf.mxu0
  %v881 = vadd.f32 0.0, %v880
  %882 = vdwg.mxu0
  %v887 = vrot.slane %v821, 4
  %v888 = vrot.slane %v841, 4
  %v889 = vrot.slane %v861, 4
  %v890 = vrot.slane %v881, 4
  %v895 = vadd.f32 %v308, %v887
  %v896 = vadd.f32 %v331, %v888
  %v897 = vadd.f32 %v354, %v889
  %v898 = vadd.f32 %v377, %v890
  %vm899 = vcmp.gt.s32.totalorder %v23, 1
  %v900 = vxor.u32 %v799, 2147483648
  %v901 = vmul.f32 %v900, 1.442695
  %v902 = vpow.pop %v901
  %v903 = vadd.f32 %v902, 1.0
  %v904 = vrcp.pop %v903
  %v905 = vmul.f32 %v903, %v904
  %v906 = vsub.f32 1.0, %v905
  %v907 = vmul.f32 %v904, %v906
  %v908 = vadd.f32 %v904, %v907
  %vm909 = vweird.f32 %v903
  %vm910 = vweird.f32 %v904
  %vm911 = vmor %vm909, %vm910
  %v912 = vsel %vm911, %v904, %v908
  %v913 = vand.u32 2147483647, %v903
  %vm914 = vcmp.eq.f32.partialorder %v913, 8.507059e+37
  %v915 = vand.u32 %v903, 2147483648
  %v916 = vor.u32 1.1754944e-38, %v915
  %v917 = vsel %vm914, %v916, %v912
  %v918 = vmul.f32 1.0, %v917
  %v919 = vxor.u32 %v800, 2147483648
  %v920 = vmul.f32 %v919, 1.442695
  %v921 = vpow.pop %v920
  %v922 = vadd.f32 %v921, 1.0
  %v923 = vrcp.pop %v922
  %v924 = vmul.f32 %v922, %v923
  %v925 = vsub.f32 1.0, %v924
  %v926 = vmul.f32 %v923, %v925
  %v927 = vadd.f32 %v923, %v926
  %vm928 = vweird.f32 %v922
  %vm929 = vweird.f32 %v923
  %vm930 = vmor %vm928, %vm929
  %v931 = vsel %vm930, %v923, %v927
  %v932 = vand.u32 2147483647, %v922
  %vm933 = vcmp.eq.f32.partialorder %v932, 8.507059e+37
  %v934 = vand.u32 %v922, 2147483648
  %v935 = vor.u32 1.1754944e-38, %v934
  %v936 = vsel %vm933, %v935, %v931
  %v937 = vmul.f32 1.0, %v936
  %v938 = vtanh.pop %v801
  %v939 = vxor.u32 %v802, 2147483648
  %v940 = vmul.f32 %v939, 1.442695
  %v941 = vpow.pop %v940
  %v942 = vadd.f32 %v941, 1.0
  %v943 = vrcp.pop %v942
  %v944 = vmul.f32 %v942, %v943
  %v945 = vsub.f32 1.0, %v944
  %v946 = vmul.f32 %v943, %v945
  %v947 = vadd.f32 %v943, %v946
  %vm948 = vweird.f32 %v942
  %vm949 = vweird.f32 %v943
  %vm950 = vmor %vm948, %vm949
  %v951 = vsel %vm950, %v943, %v947
  %v952 = vand.u32 2147483647, %v942
  %vm953 = vcmp.eq.f32.partialorder %v952, 8.507059e+37
  %v954 = vand.u32 %v942, 2147483648
  %v955 = vor.u32 1.1754944e-38, %v954
  %v956 = vsel %vm953, %v955, %v951
  %v957 = vmul.f32 1.0, %v956
  %v959 = vrot.slane %v629, 6
  %v961 = vmul.f32 %v937, %v959
  %v962 = vmul.f32 %v918, %v938
  %v963 = vadd.f32 %v961, %v962
  %v964 = vtanh.pop %v963
  %v965 = vmul.f32 %v957, %v964
  %v966 = vsel %vm899, 1, 0
  %967 = vset.pattern.permute.xlu0 0
  %968 = vperm.xlu0 %967, %v966
  %v969 = vpop.permute.xlu0 %968
  %vm970 = vcmp.eq.s32.totalorder %v969, 1
  %v972 = vrot.slane %v965, 2
  %v974 = vsel %vm970, %v972, %v628
  %v976 = vrot.slane %v963, 2
  %v978 = vsel %vm970, %v976, %v629
  %vm979 = vcmp.gt.s32.totalorder %v23, 6
  %v980 = vxor.u32 %v895, 2147483648
  %v981 = vmul.f32 %v980, 1.442695
  %v982 = vpow.pop %v981
  %v983 = vadd.f32 %v982, 1.0
  %v984 = vrcp.pop %v983
  %v985 = vmul.f32 %v983, %v984
  %v986 = vsub.f32 1.0, %v985
  %v987 = vmul.f32 %v984, %v986
  %v988 = vadd.f32 %v984, %v987
  %vm989 = vweird.f32 %v983
  %vm990 = vweird.f32 %v984
  %vm991 = vmor %vm989, %vm990
  %v992 = vsel %vm991, %v984, %v988
  %v993 = vand.u32 2147483647, %v983
  %vm994 = vcmp.eq.f32.partialorder %v993, 8.507059e+37
  %v995 = vand.u32 %v983, 2147483648
  %v996 = vor.u32 1.1754944e-38, %v995
  %v997 = vsel %vm994, %v996, %v992
  %v998 = vmul.f32 1.0, %v997
  %v999 = vxor.u32 %v896, 2147483648
  %v1000 = vmul.f32 %v999, 1.442695
  %v1001 = vpow.pop %v1000
  %v1002 = vadd.f32 %v1001, 1.0
  %v1003 = vrcp.pop %v1002
  %v1004 = vmul.f32 %v1002, %v1003
  %v1005 = vsub.f32 1.0, %v1004
  %v1006 = vmul.f32 %v1003, %v1005
  %v1007 = vadd.f32 %v1003, %v1006
  %vm1008 = vweird.f32 %v1002
  %vm1009 = vweird.f32 %v1003
  %vm1010 = vmor %vm1008, %vm1009
  %v1011 = vsel %vm1010, %v1003, %v1007
  %v1012 = vand.u32 2147483647, %v1002
  %vm1013 = vcmp.eq.f32.partialorder %v1012, 8.507059e+37
  %v1014 = vand.u32 %v1002, 2147483648
  %v1015 = vor.u32 1.1754944e-38, %v1014
  %v1016 = vsel %vm1013, %v1015, %v1011
  %v1017 = vmul.f32 1.0, %v1016
  %v1018 = vtanh.pop %v897
  %v1019 = vxor.u32 %v898, 2147483648
  %v1020 = vmul.f32 %v1019, 1.442695
  %v1021 = vpow.pop %v1020
  %v1022 = vadd.f32 %v1021, 1.0
  %v1023 = vrcp.pop %v1022
  %v1024 = vmul.f32 %v1022, %v1023
  %v1025 = vsub.f32 1.0, %v1024
  %v1026 = vmul.f32 %v1023, %v1025
  %v1027 = vadd.f32 %v1023, %v1026
  %vm1028 = vweird.f32 %v1022
  %vm1029 = vweird.f32 %v1023
  %vm1030 = vmor %vm1028, %vm1029
  %v1031 = vsel %vm1030, %v1023, %v1027
  %v1032 = vand.u32 2147483647, %v1022
  %vm1033 = vcmp.eq.f32.partialorder %v1032, 8.507059e+37
  %v1034 = vand.u32 %v1022, 2147483648
  %v1035 = vor.u32 1.1754944e-38, %v1034
  %v1036 = vsel %vm1033, %v1035, %v1031
  %v1037 = vmul.f32 1.0, %v1036
  %v1039 = vrot.slane %v706, 4
  %v1041 = vmul.f32 %v1017, %v1039
  %v1042 = vmul.f32 %v998, %v1018
  %v1043 = vadd.f32 %v1041, %v1042
  %v1044 = vtanh.pop %v1043
  %v1045 = vmul.f32 %v1037, %v1044
  %v1046 = vsel %vm979, 1, 0
  %1047 = vset.pattern.permute.xlu0 0
  %1048 = vperm.xlu0 %1047, %v1046
  %v1049 = vpop.permute.xlu0 %1048
  %vm1050 = vcmp.eq.s32.totalorder %v1049, 1
  %v1052 = vrot.slane %v1045, 4
  %v1054 = vsel %vm1050, %v1052, %v702
  %v1056 = vrot.slane %v1043, 4
  %v1058 = vsel %vm1050, %v1056, %v706
  %1059 = vmatpush.msra.mxu0 %v84
  %1060 = vmatpush.msra.mxu0 %v80
  %1061 = vmatpush.msra.mxu0 %v76
  %1062 = vmatpush.msra.mxu0 %v72
  %1063 = vmatpush.msra.mxu0 %v68
  %1064 = vmatpush.msra.mxu0 %v64
  %1065 = vmatpush.msra.mxu0 %v60
  %1066 = vmatpush.msra.mxu0 %v56
  %1067 = vmatpush.msra.mxu0 %v52
  %1068 = vmatpush.msra.mxu0 %v48
  %1069 = vmatpush.msra.mxu0 %v44
  %1070 = vmatpush.msra.mxu0 %v40
  %1071 = vmatpush.msra.mxu0 %v36
  %1072 = vmatpush.msra.mxu0 %v32
  %1073 = vmatpush.msra.mxu0 %v28
  %1074 = vmatpush.msra.mxu0 %v24
  %1075 = vmatmul.f32.gmra.mxu0 %v974
  %v1076 = vpop.f32.mrf.mxu0
  %v1077 = vadd.f32 0.0, %v1076
  %1078 = vdwg.mxu0
  %1079 = vmatpush.msra.mxu0 %v85
  %1080 = vmatpush.msra.mxu0 %v81
  %1081 = vmatpush.msra.mxu0 %v77
  %1082 = vmatpush.msra.mxu0 %v73
  %1083 = vmatpush.msra.mxu0 %v69
  %1084 = vmatpush.msra.mxu0 %v65
  %1085 = vmatpush.msra.mxu0 %v61
  %1086 = vmatpush.msra.mxu0 %v57
  %1087 = vmatpush.msra.mxu0 %v53
  %1088 = vmatpush.msra.mxu0 %v49
  %1089 = vmatpush.msra.mxu0 %v45
  %1090 = vmatpush.msra.mxu0 %v41
  %1091 = vmatpush.msra.mxu0 %v37
  %1092 = vmatpush.msra.mxu0 %v33
  %1093 = vmatpush.msra.mxu0 %v29
  %1094 = vmatpush.msra.mxu0 %v25
  %1095 = vmatmul.f32.gmra.mxu0 %v974
  %v1096 = vpop.f32.mrf.mxu0
  %v1097 = vadd.f32 0.0, %v1096
  %1098 = vdwg.mxu0
  %1099 = vmatpush.msra.mxu0 %v86
  %1100 = vmatpush.msra.mxu0 %v82
  %1101 = vmatpush.msra.mxu0 %v78
  %1102 = vmatpush.msra.mxu0 %v74
  %1103 = vmatpush.msra.mxu0 %v70
  %1104 = vmatpush.msra.mxu0 %v66
  %1105 = vmatpush.msra.mxu0 %v62
  %1106 = vmatpush.msra.mxu0 %v58
  %1107 = vmatpush.msra.mxu0 %v54
  %1108 = vmatpush.msra.mxu0 %v50
  %1109 = vmatpush.msra.mxu0 %v46
  %1110 = vmatpush.msra.mxu0 %v42
  %1111 = vmatpush.msra.mxu0 %v38
  %1112 = vmatpush.msra.mxu0 %v34
  %1113 = vmatpush.msra.mxu0 %v30
  %1114 = vmatpush.msra.mxu0 %v26
  %1115 = vmatmul.f32.gmra.mxu0 %v974
  %v1116 = vpop.f32.mrf.mxu0
  %v1117 = vadd.f32 0.0, %v1116
  %1118 = vdwg.mxu0
  %1119 = vmatpush.msra.mxu0 %v87
  %1120 = vmatpush.msra.mxu0 %v83
  %1121 = vmatpush.msra.mxu0 %v79
  %1122 = vmatpush.msra.mxu0 %v75
  %1123 = vmatpush.msra.mxu0 %v71
  %1124 = vmatpush.msra.mxu0 %v67
  %1125 = vmatpush.msra.mxu0 %v63
  %1126 = vmatpush.msra.mxu0 %v59
  %1127 = vmatpush.msra.mxu0 %v55
  %1128 = vmatpush.msra.mxu0 %v51
  %1129 = vmatpush.msra.mxu0 %v47
  %1130 = vmatpush.msra.mxu0 %v43
  %1131 = vmatpush.msra.mxu0 %v39
  %1132 = vmatpush.msra.mxu0 %v35
  %1133 = vmatpush.msra.mxu0 %v31
  %1134 = vmatpush.msra.mxu0 %v27
  %1135 = vmatmul.f32.gmra.mxu0 %v974
  %v1136 = vpop.f32.mrf.mxu0
  %v1137 = vadd.f32 0.0, %v1136
  %1138 = vdwg.mxu0
  %v1143 = vrot.slane %v1077, 4
  %v1144 = vrot.slane %v1097, 4
  %v1145 = vrot.slane %v1117, 4
  %v1146 = vrot.slane %v1137, 4
  %v1151 = vadd.f32 %v213, %v1143
  %v1152 = vadd.f32 %v236, %v1144
  %v1153 = vadd.f32 %v259, %v1145
  %v1154 = vadd.f32 %v282, %v1146
  %1155 = vmatpush.msra.mxu0 %v148
  %1156 = vmatpush.msra.mxu0 %v144
  %1157 = vmatpush.msra.mxu0 %v140
  %1158 = vmatpush.msra.mxu0 %v136
  %1159 = vmatpush.msra.mxu0 %v132
  %1160 = vmatpush.msra.mxu0 %v128
  %1161 = vmatpush.msra.mxu0 %v124
  %1162 = vmatpush.msra.mxu0 %v120
  %1163 = vmatpush.msra.mxu0 %v116
  %1164 = vmatpush.msra.mxu0 %v112
  %1165 = vmatpush.msra.mxu0 %v108
  %1166 = vmatpush.msra.mxu0 %v104
  %1167 = vmatpush.msra.mxu0 %v100
  %1168 = vmatpush.msra.mxu0 %v96
  %1169 = vmatpush.msra.mxu0 %v92
  %1170 = vmatpush.msra.mxu0 %v88
  %1171 = vmatmul.f32.gmra.mxu0 %v1054
  %v1172 = vpop.f32.mrf.mxu0
  %v1173 = vadd.f32 0.0, %v1172
  %1174 = vdwg.mxu0
  %1175 = vmatpush.msra.mxu0 %v149
  %1176 = vmatpush.msra.mxu0 %v145
  %1177 = vmatpush.msra.mxu0 %v141
  %1178 = vmatpush.msra.mxu0 %v137
  %1179 = vmatpush.msra.mxu0 %v133
  %1180 = vmatpush.msra.mxu0 %v129
  %1181 = vmatpush.msra.mxu0 %v125
  %1182 = vmatpush.msra.mxu0 %v121
  %1183 = vmatpush.msra.mxu0 %v117
  %1184 = vmatpush.msra.mxu0 %v113
  %1185 = vmatpush.msra.mxu0 %v109
  %1186 = vmatpush.msra.mxu0 %v105
  %1187 = vmatpush.msra.mxu0 %v101
  %1188 = vmatpush.msra.mxu0 %v97
  %1189 = vmatpush.msra.mxu0 %v93
  %1190 = vmatpush.msra.mxu0 %v89
  %1191 = vmatmul.f32.gmra.mxu0 %v1054
  %v1192 = vpop.f32.mrf.mxu0
  %v1193 = vadd.f32 0.0, %v1192
  %1194 = vdwg.mxu0
  %1195 = vmatpush.msra.mxu0 %v150
  %1196 = vmatpush.msra.mxu0 %v146
  %1197 = vmatpush.msra.mxu0 %v142
  %1198 = vmatpush.msra.mxu0 %v138
  %1199 = vmatpush.msra.mxu0 %v134
  %1200 = vmatpush.msra.mxu0 %v130
  %1201 = vmatpush.msra.mxu0 %v126
  %1202 = vmatpush.msra.mxu0 %v122
  %1203 = vmatpush.msra.mxu0 %v118
  %1204 = vmatpush.msra.mxu0 %v114
  %1205 = vmatpush.msra.mxu0 %v110
  %1206 = vmatpush.msra.mxu0 %v106
  %1207 = vmatpush.msra.mxu0 %v102
  %1208 = vmatpush.msra.mxu0 %v98
  %1209 = vmatpush.msra.mxu0 %v94
  %1210 = vmatpush.msra.mxu0 %v90
  %1211 = vmatmul.f32.gmra.mxu0 %v1054
  %v1212 = vpop.f32.mrf.mxu0
  %v1213 = vadd.f32 0.0, %v1212
  %1214 = vdwg.mxu0
  %1215 = vmatpush.msra.mxu0 %v151
  %1216 = vmatpush.msra.mxu0 %v147
  %1217 = vmatpush.msra.mxu0 %v143
  %1218 = vmatpush.msra.mxu0 %v139
  %1219 = vmatpush.msra.mxu0 %v135
  %1220 = vmatpush.msra.mxu0 %v131
  %1221 = vmatpush.msra.mxu0 %v127
  %1222 = vmatpush.msra.mxu0 %v123
  %1223 = vmatpush.msra.mxu0 %v119
  %1224 = vmatpush.msra.mxu0 %v115
  %1225 = vmatpush.msra.mxu0 %v111
  %1226 = vmatpush.msra.mxu0 %v107
  %1227 = vmatpush.msra.mxu0 %v103
  %1228 = vmatpush.msra.mxu0 %v99
  %1229 = vmatpush.msra.mxu0 %v95
  %1230 = vmatpush.msra.mxu0 %v91
  %1231 = vmatmul.f32.gmra.mxu0 %v1054
  %v1232 = vpop.f32.mrf.mxu0
  %v1233 = vadd.f32 0.0, %v1232
  %1234 = vdwg.mxu0
  %v1239 = vrot.slane %v1173, 6
  %v1240 = vrot.slane %v1193, 6
  %v1241 = vrot.slane %v1213, 6
  %v1242 = vrot.slane %v1233, 6
  %v1247 = vadd.f32 %v308, %v1239
  %v1248 = vadd.f32 %v331, %v1240
  %v1249 = vadd.f32 %v354, %v1241
  %v1250 = vadd.f32 %v377, %v1242
  %vm1251 = vcmp.gt.s32.totalorder %v23, 2
  %v1252 = vxor.u32 %v1151, 2147483648
  %v1253 = vmul.f32 %v1252, 1.442695
  %v1254 = vpow.pop %v1253
  %v1255 = vadd.f32 %v1254, 1.0
  %v1256 = vrcp.pop %v1255
  %v1257 = vmul.f32 %v1255, %v1256
  %v1258 = vsub.f32 1.0, %v1257
  %v1259 = vmul.f32 %v1256, %v1258
  %v1260 = vadd.f32 %v1256, %v1259
  %vm1261 = vweird.f32 %v1255
  %vm1262 = vweird.f32 %v1256
  %vm1263 = vmor %vm1261, %vm1262
  %v1264 = vsel %vm1263, %v1256, %v1260
  %v1265 = vand.u32 2147483647, %v1255
  %vm1266 = vcmp.eq.f32.partialorder %v1265, 8.507059e+37
  %v1267 = vand.u32 %v1255, 2147483648
  %v1268 = vor.u32 1.1754944e-38, %v1267
  %v1269 = vsel %vm1266, %v1268, %v1264
  %v1270 = vmul.f32 1.0, %v1269
  %v1271 = vxor.u32 %v1152, 2147483648
  %v1272 = vmul.f32 %v1271, 1.442695
  %v1273 = vpow.pop %v1272
  %v1274 = vadd.f32 %v1273, 1.0
  %v1275 = vrcp.pop %v1274
  %v1276 = vmul.f32 %v1274, %v1275
  %v1277 = vsub.f32 1.0, %v1276
  %v1278 = vmul.f32 %v1275, %v1277
  %v1279 = vadd.f32 %v1275, %v1278
  %vm1280 = vweird.f32 %v1274
  %vm1281 = vweird.f32 %v1275
  %vm1282 = vmor %vm1280, %vm1281
  %v1283 = vsel %vm1282, %v1275, %v1279
  %v1284 = vand.u32 2147483647, %v1274
  %vm1285 = vcmp.eq.f32.partialorder %v1284, 8.507059e+37
  %v1286 = vand.u32 %v1274, 2147483648
  %v1287 = vor.u32 1.1754944e-38, %v1286
  %v1288 = vsel %vm1285, %v1287, %v1283
  %v1289 = vmul.f32 1.0, %v1288
  %v1290 = vtanh.pop %v1153
  %v1291 = vxor.u32 %v1154, 2147483648
  %v1292 = vmul.f32 %v1291, 1.442695
  %v1293 = vpow.pop %v1292
  %v1294 = vadd.f32 %v1293, 1.0
  %v1295 = vrcp.pop %v1294
  %v1296 = vmul.f32 %v1294, %v1295
  %v1297 = vsub.f32 1.0, %v1296
  %v1298 = vmul.f32 %v1295, %v1297
  %v1299 = vadd.f32 %v1295, %v1298
  %vm1300 = vweird.f32 %v1294
  %vm1301 = vweird.f32 %v1295
  %vm1302 = vmor %vm1300, %vm1301
  %v1303 = vsel %vm1302, %v1295, %v1299
  %v1304 = vand.u32 2147483647, %v1294
  %vm1305 = vcmp.eq.f32.partialorder %v1304, 8.507059e+37
  %v1306 = vand.u32 %v1294, 2147483648
  %v1307 = vor.u32 1.1754944e-38, %v1306
  %v1308 = vsel %vm1305, %v1307, %v1303
  %v1309 = vmul.f32 1.0, %v1308
  %v1311 = vrot.slane %v978, 4
  %v1313 = vmul.f32 %v1289, %v1311
  %v1314 = vmul.f32 %v1270, %v1290
  %v1315 = vadd.f32 %v1313, %v1314
  %v1316 = vtanh.pop %v1315
  %v1317 = vmul.f32 %v1309, %v1316
  %v1318 = vsel %vm1251, 1, 0
  %1319 = vset.pattern.permute.xlu0 0
  %1320 = vperm.xlu0 %1319, %v1318
  %v1321 = vpop.permute.xlu0 %1320
  %vm1322 = vcmp.eq.s32.totalorder %v1321, 1
  %v1324 = vrot.slane %v1317, 4
  %v1326 = vsel %vm1322, %v1324, %v974
  %v1328 = vrot.slane %v1315, 4
  %v1330 = vsel %vm1322, %v1328, %v978
  %vm1331 = vcmp.gt.s32.totalorder %v23, 5
  %v1332 = vxor.u32 %v1247, 2147483648
  %v1333 = vmul.f32 %v1332, 1.442695
  %v1334 = vpow.pop %v1333
  %v1335 = vadd.f32 %v1334, 1.0
  %v1336 = vrcp.pop %v1335
  %v1337 = vmul.f32 %v1335, %v1336
  %v1338 = vsub.f32 1.0, %v1337
  %v1339 = vmul.f32 %v1336, %v1338
  %v1340 = vadd.f32 %v1336, %v1339
  %vm1341 = vweird.f32 %v1335
  %vm1342 = vweird.f32 %v1336
  %vm1343 = vmor %vm1341, %vm1342
  %v1344 = vsel %vm1343, %v1336, %v1340
  %v1345 = vand.u32 2147483647, %v1335
  %vm1346 = vcmp.eq.f32.partialorder %v1345, 8.507059e+37
  %v1347 = vand.u32 %v1335, 2147483648
  %v1348 = vor.u32 1.1754944e-38, %v1347
  %v1349 = vsel %vm1346, %v1348, %v1344
  %v1350 = vmul.f32 1.0, %v1349
  %v1351 = vxor.u32 %v1248, 2147483648
  %v1352 = vmul.f32 %v1351, 1.442695
  %v1353 = vpow.pop %v1352
  %v1354 = vadd.f32 %v1353, 1.0
  %v1355 = vrcp.pop %v1354
  %v1356 = vmul.f32 %v1354, %v1355
  %v1357 = vsub.f32 1.0, %v1356
  %v1358 = vmul.f32 %v1355, %v1357
  %v1359 = vadd.f32 %v1355, %v1358
  %vm1360 = vweird.f32 %v1354
  %vm1361 = vweird.f32 %v1355
  %vm1362 = vmor %vm1360, %vm1361
  %v1363 = vsel %vm1362, %v1355, %v1359
  %v1364 = vand.u32 2147483647, %v1354
  %vm1365 = vcmp.eq.f32.partialorder %v1364, 8.507059e+37
  %v1366 = vand.u32 %v1354, 2147483648
  %v1367 = vor.u32 1.1754944e-38, %v1366
  %v1368 = vsel %vm1365, %v1367, %v1363
  %v1369 = vmul.f32 1.0, %v1368
  %v1370 = vtanh.pop %v1249
  %v1371 = vxor.u32 %v1250, 2147483648
  %v1372 = vmul.f32 %v1371, 1.442695
  %v1373 = vpow.pop %v1372
  %v1374 = vadd.f32 %v1373, 1.0
  %v1375 = vrcp.pop %v1374
  %v1376 = vmul.f32 %v1374, %v1375
  %v1377 = vsub.f32 1.0, %v1376
  %v1378 = vmul.f32 %v1375, %v1377
  %v1379 = vadd.f32 %v1375, %v1378
  %vm1380 = vweird.f32 %v1374
  %vm1381 = vweird.f32 %v1375
  %vm1382 = vmor %vm1380, %vm1381
  %v1383 = vsel %vm1382, %v1375, %v1379
  %v1384 = vand.u32 2147483647, %v1374
  %vm1385 = vcmp.eq.f32.partialorder %v1384, 8.507059e+37
  %v1386 = vand.u32 %v1374, 2147483648
  %v1387 = vor.u32 1.1754944e-38, %v1386
  %v1388 = vsel %vm1385, %v1387, %v1383
  %v1389 = vmul.f32 1.0, %v1388
  %v1391 = vrot.slane %v1058, 6
  %v1393 = vmul.f32 %v1369, %v1391
  %v1394 = vmul.f32 %v1350, %v1370
  %v1395 = vadd.f32 %v1393, %v1394
  %v1396 = vtanh.pop %v1395
  %v1397 = vmul.f32 %v1389, %v1396
  %v1398 = vsel %vm1331, 1, 0
  %1399 = vset.pattern.permute.xlu0 0
  %1400 = vperm.xlu0 %1399, %v1398
  %v1401 = vpop.permute.xlu0 %1400
  %vm1402 = vcmp.eq.s32.totalorder %v1401, 1
  %v1404 = vrot.slane %v1397, 2
  %v1406 = vsel %vm1402, %v1404, %v1054
  %v1408 = vrot.slane %v1395, 2
  %v1410 = vsel %vm1402, %v1408, %v1058
  %1411 = vmatpush.msra.mxu0 %v84
  %1412 = vmatpush.msra.mxu0 %v80
  %1413 = vmatpush.msra.mxu0 %v76
  %1414 = vmatpush.msra.mxu0 %v72
  %1415 = vmatpush.msra.mxu0 %v68
  %1416 = vmatpush.msra.mxu0 %v64
  %1417 = vmatpush.msra.mxu0 %v60
  %1418 = vmatpush.msra.mxu0 %v56
  %1419 = vmatpush.msra.mxu0 %v52
  %1420 = vmatpush.msra.mxu0 %v48
  %1421 = vmatpush.msra.mxu0 %v44
  %1422 = vmatpush.msra.mxu0 %v40
  %1423 = vmatpush.msra.mxu0 %v36
  %1424 = vmatpush.msra.mxu0 %v32
  %1425 = vmatpush.msra.mxu0 %v28
  %1426 = vmatpush.msra.mxu0 %v24
  %1427 = vmatmul.f32.gmra.mxu0 %v1326
  %v1428 = vpop.f32.mrf.mxu0
  %v1429 = vadd.f32 0.0, %v1428
  %1430 = vdwg.mxu0
  %1431 = vmatpush.msra.mxu0 %v85
  %1432 = vmatpush.msra.mxu0 %v81
  %1433 = vmatpush.msra.mxu0 %v77
  %1434 = vmatpush.msra.mxu0 %v73
  %1435 = vmatpush.msra.mxu0 %v69
  %1436 = vmatpush.msra.mxu0 %v65
  %1437 = vmatpush.msra.mxu0 %v61
  %1438 = vmatpush.msra.mxu0 %v57
  %1439 = vmatpush.msra.mxu0 %v53
  %1440 = vmatpush.msra.mxu0 %v49
  %1441 = vmatpush.msra.mxu0 %v45
  %1442 = vmatpush.msra.mxu0 %v41
  %1443 = vmatpush.msra.mxu0 %v37
  %1444 = vmatpush.msra.mxu0 %v33
  %1445 = vmatpush.msra.mxu0 %v29
  %1446 = vmatpush.msra.mxu0 %v25
  %1447 = vmatmul.f32.gmra.mxu0 %v1326
  %v1448 = vpop.f32.mrf.mxu0
  %v1449 = vadd.f32 0.0, %v1448
  %1450 = vdwg.mxu0
  %1451 = vmatpush.msra.mxu0 %v86
  %1452 = vmatpush.msra.mxu0 %v82
  %1453 = vmatpush.msra.mxu0 %v78
  %1454 = vmatpush.msra.mxu0 %v74
  %1455 = vmatpush.msra.mxu0 %v70
  %1456 = vmatpush.msra.mxu0 %v66
  %1457 = vmatpush.msra.mxu0 %v62
  %1458 = vmatpush.msra.mxu0 %v58
  %1459 = vmatpush.msra.mxu0 %v54
  %1460 = vmatpush.msra.mxu0 %v50
  %1461 = vmatpush.msra.mxu0 %v46
  %1462 = vmatpush.msra.mxu0 %v42
  %1463 = vmatpush.msra.mxu0 %v38
  %1464 = vmatpush.msra.mxu0 %v34
  %1465 = vmatpush.msra.mxu0 %v30
  %1466 = vmatpush.msra.mxu0 %v26
  %1467 = vmatmul.f32.gmra.mxu0 %v1326
  %v1468 = vpop.f32.mrf.mxu0
  %v1469 = vadd.f32 0.0, %v1468
  %1470 = vdwg.mxu0
  %1471 = vmatpush.msra.mxu0 %v87
  %1472 = vmatpush.msra.mxu0 %v83
  %1473 = vmatpush.msra.mxu0 %v79
  %1474 = vmatpush.msra.mxu0 %v75
  %1475 = vmatpush.msra.mxu0 %v71
  %1476 = vmatpush.msra.mxu0 %v67
  %1477 = vmatpush.msra.mxu0 %v63
  %1478 = vmatpush.msra.mxu0 %v59
  %1479 = vmatpush.msra.mxu0 %v55
  %1480 = vmatpush.msra.mxu0 %v51
  %1481 = vmatpush.msra.mxu0 %v47
  %1482 = vmatpush.msra.mxu0 %v43
  %1483 = vmatpush.msra.mxu0 %v39
  %1484 = vmatpush.msra.mxu0 %v35
  %1485 = vmatpush.msra.mxu0 %v31
  %1486 = vmatpush.msra.mxu0 %v27
  %1487 = vmatmul.f32.gmra.mxu0 %v1326
  %v1488 = vpop.f32.mrf.mxu0
  %v1489 = vadd.f32 0.0, %v1488
  %1490 = vdwg.mxu0
  %v1495 = vrot.slane %v1429, 2
  %v1496 = vrot.slane %v1449, 2
  %v1497 = vrot.slane %v1469, 2
  %v1498 = vrot.slane %v1489, 2
  %v1503 = vadd.f32 %v213, %v1495
  %v1504 = vadd.f32 %v236, %v1496
  %v1505 = vadd.f32 %v259, %v1497
  %v1506 = vadd.f32 %v282, %v1498
  %1507 = vmatpush.msra.mxu0 %v148
  %1508 = vmatpush.msra.mxu0 %v144
  %1509 = vmatpush.msra.mxu0 %v140
  %1510 = vmatpush.msra.mxu0 %v136
  %1511 = vmatpush.msra.mxu0 %v132
  %1512 = vmatpush.msra.mxu0 %v128
  %1513 = vmatpush.msra.mxu0 %v124
  %1514 = vmatpush.msra.mxu0 %v120
  %1515 = vmatpush.msra.mxu0 %v116
  %1516 = vmatpush.msra.mxu0 %v112
  %1517 = vmatpush.msra.mxu0 %v108
  %1518 = vmatpush.msra.mxu0 %v104
  %1519 = vmatpush.msra.mxu0 %v100
  %1520 = vmatpush.msra.mxu0 %v96
  %1521 = vmatpush.msra.mxu0 %v92
  %1522 = vmatpush.msra.mxu0 %v88
  %1523 = vmatmul.f32.gmra.mxu0 %v1406
  %v1524 = vpop.f32.mrf.mxu0
  %v1525 = vadd.f32 0.0, %v1524
  %1526 = vdwg.mxu0
  %1527 = vmatpush.msra.mxu0 %v149
  %1528 = vmatpush.msra.mxu0 %v145
  %1529 = vmatpush.msra.mxu0 %v141
  %1530 = vmatpush.msra.mxu0 %v137
  %1531 = vmatpush.msra.mxu0 %v133
  %1532 = vmatpush.msra.mxu0 %v129
  %1533 = vmatpush.msra.mxu0 %v125
  %1534 = vmatpush.msra.mxu0 %v121
  %1535 = vmatpush.msra.mxu0 %v117
  %1536 = vmatpush.msra.mxu0 %v113
  %1537 = vmatpush.msra.mxu0 %v109
  %1538 = vmatpush.msra.mxu0 %v105
  %1539 = vmatpush.msra.mxu0 %v101
  %1540 = vmatpush.msra.mxu0 %v97
  %1541 = vmatpush.msra.mxu0 %v93
  %1542 = vmatpush.msra.mxu0 %v89
  %1543 = vmatmul.f32.gmra.mxu0 %v1406
  %v1544 = vpop.f32.mrf.mxu0
  %v1545 = vadd.f32 0.0, %v1544
  %1546 = vdwg.mxu0
  %1547 = vmatpush.msra.mxu0 %v150
  %1548 = vmatpush.msra.mxu0 %v146
  %1549 = vmatpush.msra.mxu0 %v142
  %1550 = vmatpush.msra.mxu0 %v138
  %1551 = vmatpush.msra.mxu0 %v134
  %1552 = vmatpush.msra.mxu0 %v130
  %1553 = vmatpush.msra.mxu0 %v126
  %1554 = vmatpush.msra.mxu0 %v122
  %1555 = vmatpush.msra.mxu0 %v118
  %1556 = vmatpush.msra.mxu0 %v114
  %1557 = vmatpush.msra.mxu0 %v110
  %1558 = vmatpush.msra.mxu0 %v106
  %1559 = vmatpush.msra.mxu0 %v102
  %1560 = vmatpush.msra.mxu0 %v98
  %1561 = vmatpush.msra.mxu0 %v94
  %1562 = vmatpush.msra.mxu0 %v90
  %1563 = vmatmul.f32.gmra.mxu0 %v1406
  %v1564 = vpop.f32.mrf.mxu0
  %v1565 = vadd.f32 0.0, %v1564
  %1566 = vdwg.mxu0
  %1567 = vmatpush.msra.mxu0 %v151
  %1568 = vmatpush.msra.mxu0 %v147
  %1569 = vmatpush.msra.mxu0 %v143
  %1570 = vmatpush.msra.mxu0 %v139
  %1571 = vmatpush.msra.mxu0 %v135
  %1572 = vmatpush.msra.mxu0 %v131
  %1573 = vmatpush.msra.mxu0 %v127
  %1574 = vmatpush.msra.mxu0 %v123
  %1575 = vmatpush.msra.mxu0 %v119
  %1576 = vmatpush.msra.mxu0 %v115
  %1577 = vmatpush.msra.mxu0 %v111
  %1578 = vmatpush.msra.mxu0 %v107
  %1579 = vmatpush.msra.mxu0 %v103
  %1580 = vmatpush.msra.mxu0 %v99
  %1581 = vmatpush.msra.mxu0 %v95
  %1582 = vmatpush.msra.mxu0 %v91
  %1583 = vmatmul.f32.gmra.mxu0 %v1406
  %v1584 = vpop.f32.mrf.mxu0
  %v1585 = vadd.f32 0.0, %v1584
  %1586 = vdwg.mxu0
  %v1587 = vadd.f32 %v308, %v1525
  %v1588 = vadd.f32 %v331, %v1545
  %v1589 = vadd.f32 %v354, %v1565
  %v1590 = vadd.f32 %v377, %v1585
  %vm1591 = vcmp.gt.s32.totalorder %v23, 3
  %v1592 = vxor.u32 %v1503, 2147483648
  %v1593 = vmul.f32 %v1592, 1.442695
  %v1594 = vpow.pop %v1593
  %v1595 = vadd.f32 %v1594, 1.0
  %v1596 = vrcp.pop %v1595
  %v1597 = vmul.f32 %v1595, %v1596
  %v1598 = vsub.f32 1.0, %v1597
  %v1599 = vmul.f32 %v1596, %v1598
  %v1600 = vadd.f32 %v1596, %v1599
  %vm1601 = vweird.f32 %v1595
  %vm1602 = vweird.f32 %v1596
  %vm1603 = vmor %vm1601, %vm1602
  %v1604 = vsel %vm1603, %v1596, %v1600
  %v1605 = vand.u32 2147483647, %v1595
  %vm1606 = vcmp.eq.f32.partialorder %v1605, 8.507059e+37
  %v1607 = vand.u32 %v1595, 2147483648
  %v1608 = vor.u32 1.1754944e-38, %v1607
  %v1609 = vsel %vm1606, %v1608, %v1604
  %v1610 = vmul.f32 1.0, %v1609
  %v1611 = vxor.u32 %v1504, 2147483648
  %v1612 = vmul.f32 %v1611, 1.442695
  %v1613 = vpow.pop %v1612
  %v1614 = vadd.f32 %v1613, 1.0
  %v1615 = vrcp.pop %v1614
  %v1616 = vmul.f32 %v1614, %v1615
  %v1617 = vsub.f32 1.0, %v1616
  %v1618 = vmul.f32 %v1615, %v1617
  %v1619 = vadd.f32 %v1615, %v1618
  %vm1620 = vweird.f32 %v1614
  %vm1621 = vweird.f32 %v1615
  %vm1622 = vmor %vm1620, %vm1621
  %v1623 = vsel %vm1622, %v1615, %v1619
  %v1624 = vand.u32 2147483647, %v1614
  %vm1625 = vcmp.eq.f32.partialorder %v1624, 8.507059e+37
  %v1626 = vand.u32 %v1614, 2147483648
  %v1627 = vor.u32 1.1754944e-38, %v1626
  %v1628 = vsel %vm1625, %v1627, %v1623
  %v1629 = vmul.f32 1.0, %v1628
  %v1630 = vtanh.pop %v1505
  %v1631 = vxor.u32 %v1506, 2147483648
  %v1632 = vmul.f32 %v1631, 1.442695
  %v1633 = vpow.pop %v1632
  %v1634 = vadd.f32 %v1633, 1.0
  %v1635 = vrcp.pop %v1634
  %v1636 = vmul.f32 %v1634, %v1635
  %v1637 = vsub.f32 1.0, %v1636
  %v1638 = vmul.f32 %v1635, %v1637
  %v1639 = vadd.f32 %v1635, %v1638
  %vm1640 = vweird.f32 %v1634
  %vm1641 = vweird.f32 %v1635
  %vm1642 = vmor %vm1640, %vm1641
  %v1643 = vsel %vm1642, %v1635, %v1639
  %v1644 = vand.u32 2147483647, %v1634
  %vm1645 = vcmp.eq.f32.partialorder %v1644, 8.507059e+37
  %v1646 = vand.u32 %v1634, 2147483648
  %v1647 = vor.u32 1.1754944e-38, %v1646
  %v1648 = vsel %vm1645, %v1647, %v1643
  %v1649 = vmul.f32 1.0, %v1648
  %v1651 = vrot.slane %v1330, 2
  %v1653 = vmul.f32 %v1629, %v1651
  %v1654 = vmul.f32 %v1610, %v1630
  %v1655 = vadd.f32 %v1653, %v1654
  %v1656 = vtanh.pop %v1655
  %v1657 = vmul.f32 %v1649, %v1656
  %v1658 = vsel %vm1591, 1, 0
  %1659 = vset.pattern.permute.xlu0 0
  %1660 = vperm.xlu0 %1659, %v1658
  %v1661 = vpop.permute.xlu0 %1660
  %vm1662 = vcmp.eq.s32.totalorder %v1661, 1
  %v1664 = vrot.slane %v1657, 6
  %v1666 = vsel %vm1662, %v1664, %v1326
  %v1668 = vrot.slane %v1655, 6
  %v1670 = vsel %vm1662, %v1668, %v1330
  %vm1671 = vcmp.gt.s32.totalorder %v23, 4
  %v1672 = vxor.u32 %v1587, 2147483648
  %v1673 = vmul.f32 %v1672, 1.442695
  %v1674 = vpow.pop %v1673
  %v1675 = vadd.f32 %v1674, 1.0
  %v1676 = vrcp.pop %v1675
  %v1677 = vmul.f32 %v1675, %v1676
  %v1678 = vsub.f32 1.0, %v1677
  %v1679 = vmul.f32 %v1676, %v1678
  %v1680 = vadd.f32 %v1676, %v1679
  %vm1681 = vweird.f32 %v1675
  %vm1682 = vweird.f32 %v1676
  %vm1683 = vmor %vm1681, %vm1682
  %v1684 = vsel %vm1683, %v1676, %v1680
  %v1685 = vand.u32 2147483647, %v1675
  %vm1686 = vcmp.eq.f32.partialorder %v1685, 8.507059e+37
  %v1687 = vand.u32 %v1675, 2147483648
  %v1688 = vor.u32 1.1754944e-38, %v1687
  %v1689 = vsel %vm1686, %v1688, %v1684
  %v1690 = vmul.f32 1.0, %v1689
  %v1691 = vxor.u32 %v1588, 2147483648
  %v1692 = vmul.f32 %v1691, 1.442695
  %v1693 = vpow.pop %v1692
  %v1694 = vadd.f32 %v1693, 1.0
  %v1695 = vrcp.pop %v1694
  %v1696 = vmul.f32 %v1694, %v1695
  %v1697 = vsub.f32 1.0, %v1696
  %v1698 = vmul.f32 %v1695, %v1697
  %v1699 = vadd.f32 %v1695, %v1698
  %vm1700 = vweird.f32 %v1694
  %vm1701 = vweird.f32 %v1695
  %vm1702 = vmor %vm1700, %vm1701
  %v1703 = vsel %vm1702, %v1695, %v1699
  %v1704 = vand.u32 2147483647, %v1694
  %vm1705 = vcmp.eq.f32.partialorder %v1704, 8.507059e+37
  %v1706 = vand.u32 %v1694, 2147483648
  %v1707 = vor.u32 1.1754944e-38, %v1706
  %v1708 = vsel %vm1705, %v1707, %v1703
  %v1709 = vmul.f32 1.0, %v1708
  %v1710 = vtanh.pop %v1589
  %v1711 = vxor.u32 %v1590, 2147483648
  %v1712 = vmul.f32 %v1711, 1.442695
  %v1713 = vpow.pop %v1712
  %v1714 = vadd.f32 %v1713, 1.0
  %v1715 = vrcp.pop %v1714
  %v1716 = vmul.f32 %v1714, %v1715
  %v1717 = vsub.f32 1.0, %v1716
  %v1718 = vmul.f32 %v1715, %v1717
  %v1719 = vadd.f32 %v1715, %v1718
  %vm1720 = vweird.f32 %v1714
  %vm1721 = vweird.f32 %v1715
  %vm1722 = vmor %vm1720, %vm1721
  %v1723 = vsel %vm1722, %v1715, %v1719
  %v1724 = vand.u32 2147483647, %v1714
  %vm1725 = vcmp.eq.f32.partialorder %v1724, 8.507059e+37
  %v1726 = vand.u32 %v1714, 2147483648
  %v1727 = vor.u32 1.1754944e-38, %v1726
  %v1728 = vsel %vm1725, %v1727, %v1723
  %v1729 = vmul.f32 1.0, %v1728
  %v1730 = vmul.f32 %v1709, %v1410
  %v1731 = vmul.f32 %v1690, %v1710
  %v1732 = vadd.f32 %v1730, %v1731
  %v1733 = vtanh.pop %v1732
  %v1734 = vmul.f32 %v1729, %v1733
  %v1735 = vsel %vm1671, 1, 0
  %1736 = vset.pattern.permute.xlu0 0
  %1737 = vperm.xlu0 %1736, %v1735
  %v1738 = vpop.permute.xlu0 %1737
  %vm1739 = vcmp.eq.s32.totalorder %v1738, 1
  %v1740 = vsel %vm1739, %v1734, %v1406
  %v1741 = vsel %vm1739, %v1732, %v1410
  %1742 = vmatpush.msra.mxu0 %v84
  %1743 = vmatpush.msra.mxu0 %v80
  %1744 = vmatpush.msra.mxu0 %v76
  %1745 = vmatpush.msra.mxu0 %v72
  %1746 = vmatpush.msra.mxu0 %v68
  %1747 = vmatpush.msra.mxu0 %v64
  %1748 = vmatpush.msra.mxu0 %v60
  %1749 = vmatpush.msra.mxu0 %v56
  %1750 = vmatpush.msra.mxu0 %v52
  %1751 = vmatpush.msra.mxu0 %v48
  %1752 = vmatpush.msra.mxu0 %v44
  %1753 = vmatpush.msra.mxu0 %v40
  %1754 = vmatpush.msra.mxu0 %v36
  %1755 = vmatpush.msra.mxu0 %v32
  %1756 = vmatpush.msra.mxu0 %v28
  %1757 = vmatpush.msra.mxu0 %v24
  %1758 = vmatmul.f32.gmra.mxu0 %v1666
  %v1759 = vpop.f32.mrf.mxu0
  %v1760 = vadd.f32 0.0, %v1759
  %1761 = vdwg.mxu0
  %1762 = vmatpush.msra.mxu0 %v85
  %1763 = vmatpush.msra.mxu0 %v81
  %1764 = vmatpush.msra.mxu0 %v77
  %1765 = vmatpush.msra.mxu0 %v73
  %1766 = vmatpush.msra.mxu0 %v69
  %1767 = vmatpush.msra.mxu0 %v65
  %1768 = vmatpush.msra.mxu0 %v61
  %1769 = vmatpush.msra.mxu0 %v57
  %1770 = vmatpush.msra.mxu0 %v53
  %1771 = vmatpush.msra.mxu0 %v49
  %1772 = vmatpush.msra.mxu0 %v45
  %1773 = vmatpush.msra.mxu0 %v41
  %1774 = vmatpush.msra.mxu0 %v37
  %1775 = vmatpush.msra.mxu0 %v33
  %1776 = vmatpush.msra.mxu0 %v29
  %1777 = vmatpush.msra.mxu0 %v25
  %1778 = vmatmul.f32.gmra.mxu0 %v1666
  %v1779 = vpop.f32.mrf.mxu0
  %v1780 = vadd.f32 0.0, %v1779
  %1781 = vdwg.mxu0
  %1782 = vmatpush.msra.mxu0 %v86
  %1783 = vmatpush.msra.mxu0 %v82
  %1784 = vmatpush.msra.mxu0 %v78
  %1785 = vmatpush.msra.mxu0 %v74
  %1786 = vmatpush.msra.mxu0 %v70
  %1787 = vmatpush.msra.mxu0 %v66
  %1788 = vmatpush.msra.mxu0 %v62
  %1789 = vmatpush.msra.mxu0 %v58
  %1790 = vmatpush.msra.mxu0 %v54
  %1791 = vmatpush.msra.mxu0 %v50
  %1792 = vmatpush.msra.mxu0 %v46
  %1793 = vmatpush.msra.mxu0 %v42
  %1794 = vmatpush.msra.mxu0 %v38
  %1795 = vmatpush.msra.mxu0 %v34
  %1796 = vmatpush.msra.mxu0 %v30
  %1797 = vmatpush.msra.mxu0 %v26
  %1798 = vmatmul.f32.gmra.mxu0 %v1666
  %v1799 = vpop.f32.mrf.mxu0
  %v1800 = vadd.f32 0.0, %v1799
  %1801 = vdwg.mxu0
  %1802 = vmatpush.msra.mxu0 %v87
  %1803 = vmatpush.msra.mxu0 %v83
  %1804 = vmatpush.msra.mxu0 %v79
  %1805 = vmatpush.msra.mxu0 %v75
  %1806 = vmatpush.msra.mxu0 %v71
  %1807 = vmatpush.msra.mxu0 %v67
  %1808 = vmatpush.msra.mxu0 %v63
  %1809 = vmatpush.msra.mxu0 %v59
  %1810 = vmatpush.msra.mxu0 %v55
  %1811 = vmatpush.msra.mxu0 %v51
  %1812 = vmatpush.msra.mxu0 %v47
  %1813 = vmatpush.msra.mxu0 %v43
  %1814 = vmatpush.msra.mxu0 %v39
  %1815 = vmatpush.msra.mxu0 %v35
  %1816 = vmatpush.msra.mxu0 %v31
  %1817 = vmatpush.msra.mxu0 %v27
  %1818 = vmatmul.f32.gmra.mxu0 %v1666
  %v1819 = vpop.f32.mrf.mxu0
  %v1820 = vadd.f32 0.0, %v1819
  %1821 = vdwg.mxu0
  %v1822 = vadd.f32 %v216, %v1760
  %v1823 = vadd.f32 %v239, %v1780
  %v1824 = vadd.f32 %v262, %v1800
  %v1825 = vadd.f32 %v285, %v1820
  %1826 = vmatpush.msra.mxu0 %v148
  %1827 = vmatpush.msra.mxu0 %v144
  %1828 = vmatpush.msra.mxu0 %v140
  %1829 = vmatpush.msra.mxu0 %v136
  %1830 = vmatpush.msra.mxu0 %v132
  %1831 = vmatpush.msra.mxu0 %v128
  %1832 = vmatpush.msra.mxu0 %v124
  %1833 = vmatpush.msra.mxu0 %v120
  %1834 = vmatpush.msra.mxu0 %v116
  %1835 = vmatpush.msra.mxu0 %v112
  %1836 = vmatpush.msra.mxu0 %v108
  %1837 = vmatpush.msra.mxu0 %v104
  %1838 = vmatpush.msra.mxu0 %v100
  %1839 = vmatpush.msra.mxu0 %v96
  %1840 = vmatpush.msra.mxu0 %v92
  %1841 = vmatpush.msra.mxu0 %v88
  %1842 = vmatmul.f32.gmra.mxu0 %v1740
  %v1843 = vpop.f32.mrf.mxu0
  %v1844 = vadd.f32 0.0, %v1843
  %1845 = vdwg.mxu0
  %1846 = vmatpush.msra.mxu0 %v149
  %1847 = vmatpush.msra.mxu0 %v145
  %1848 = vmatpush.msra.mxu0 %v141
  %1849 = vmatpush.msra.mxu0 %v137
  %1850 = vmatpush.msra.mxu0 %v133
  %1851 = vmatpush.msra.mxu0 %v129
  %1852 = vmatpush.msra.mxu0 %v125
  %1853 = vmatpush.msra.mxu0 %v121
  %1854 = vmatpush.msra.mxu0 %v117
  %1855 = vmatpush.msra.mxu0 %v113
  %1856 = vmatpush.msra.mxu0 %v109
  %1857 = vmatpush.msra.mxu0 %v105
  %1858 = vmatpush.msra.mxu0 %v101
  %1859 = vmatpush.msra.mxu0 %v97
  %1860 = vmatpush.msra.mxu0 %v93
  %1861 = vmatpush.msra.mxu0 %v89
  %1862 = vmatmul.f32.gmra.mxu0 %v1740
  %v1863 = vpop.f32.mrf.mxu0
  %v1864 = vadd.f32 0.0, %v1863
  %1865 = vdwg.mxu0
  %1866 = vmatpush.msra.mxu0 %v150
  %1867 = vmatpush.msra.mxu0 %v146
  %1868 = vmatpush.msra.mxu0 %v142
  %1869 = vmatpush.msra.mxu0 %v138
  %1870 = vmatpush.msra.mxu0 %v134
  %1871 = vmatpush.msra.mxu0 %v130
  %1872 = vmatpush.msra.mxu0 %v126
  %1873 = vmatpush.msra.mxu0 %v122
  %1874 = vmatpush.msra.mxu0 %v118
  %1875 = vmatpush.msra.mxu0 %v114
  %1876 = vmatpush.msra.mxu0 %v110
  %1877 = vmatpush.msra.mxu0 %v106
  %1878 = vmatpush.msra.mxu0 %v102
  %1879 = vmatpush.msra.mxu0 %v98
  %1880 = vmatpush.msra.mxu0 %v94
  %1881 = vmatpush.msra.mxu0 %v90
  %1882 = vmatmul.f32.gmra.mxu0 %v1740
  %v1883 = vpop.f32.mrf.mxu0
  %v1884 = vadd.f32 0.0, %v1883
  %1885 = vdwg.mxu0
  %1886 = vmatpush.msra.mxu0 %v151
  %1887 = vmatpush.msra.mxu0 %v147
  %1888 = vmatpush.msra.mxu0 %v143
  %1889 = vmatpush.msra.mxu0 %v139
  %1890 = vmatpush.msra.mxu0 %v135
  %1891 = vmatpush.msra.mxu0 %v131
  %1892 = vmatpush.msra.mxu0 %v127
  %1893 = vmatpush.msra.mxu0 %v123
  %1894 = vmatpush.msra.mxu0 %v119
  %1895 = vmatpush.msra.mxu0 %v115
  %1896 = vmatpush.msra.mxu0 %v111
  %1897 = vmatpush.msra.mxu0 %v107
  %1898 = vmatpush.msra.mxu0 %v103
  %1899 = vmatpush.msra.mxu0 %v99
  %1900 = vmatpush.msra.mxu0 %v95
  %1901 = vmatpush.msra.mxu0 %v91
  %1902 = vmatmul.f32.gmra.mxu0 %v1740
  %v1903 = vpop.f32.mrf.mxu0
  %v1904 = vadd.f32 0.0, %v1903
  %1905 = vdwg.mxu0
  %v1910 = vrot.slane %v1844, 2
  %v1911 = vrot.slane %v1864, 2
  %v1912 = vrot.slane %v1884, 2
  %v1913 = vrot.slane %v1904, 2
  %v1918 = vadd.f32 %v305, %v1910
  %v1919 = vadd.f32 %v328, %v1911
  %v1920 = vadd.f32 %v351, %v1912
  %v1921 = vadd.f32 %v374, %v1913
  %v1922 = vxor.u32 %v1822, 2147483648
  %v1923 = vmul.f32 %v1922, 1.442695
  %v1924 = vpow.pop %v1923
  %v1925 = vadd.f32 %v1924, 1.0
  %v1926 = vrcp.pop %v1925
  %v1927 = vmul.f32 %v1925, %v1926
  %v1928 = vsub.f32 1.0, %v1927
  %v1929 = vmul.f32 %v1926, %v1928
  %v1930 = vadd.f32 %v1926, %v1929
  %vm1931 = vweird.f32 %v1925
  %vm1932 = vweird.f32 %v1926
  %vm1933 = vmor %vm1931, %vm1932
  %v1934 = vsel %vm1933, %v1926, %v1930
  %v1935 = vand.u32 2147483647, %v1925
  %vm1936 = vcmp.eq.f32.partialorder %v1935, 8.507059e+37
  %v1937 = vand.u32 %v1925, 2147483648
  %v1938 = vor.u32 1.1754944e-38, %v1937
  %v1939 = vsel %vm1936, %v1938, %v1934
  %v1940 = vmul.f32 1.0, %v1939
  %v1941 = vxor.u32 %v1823, 2147483648
  %v1942 = vmul.f32 %v1941, 1.442695
  %v1943 = vpow.pop %v1942
  %v1944 = vadd.f32 %v1943, 1.0
  %v1945 = vrcp.pop %v1944
  %v1946 = vmul.f32 %v1944, %v1945
  %v1947 = vsub.f32 1.0, %v1946
  %v1948 = vmul.f32 %v1945, %v1947
  %v1949 = vadd.f32 %v1945, %v1948
  %vm1950 = vweird.f32 %v1944
  %vm1951 = vweird.f32 %v1945
  %vm1952 = vmor %vm1950, %vm1951
  %v1953 = vsel %vm1952, %v1945, %v1949
  %v1954 = vand.u32 2147483647, %v1944
  %vm1955 = vcmp.eq.f32.partialorder %v1954, 8.507059e+37
  %v1956 = vand.u32 %v1944, 2147483648
  %v1957 = vor.u32 1.1754944e-38, %v1956
  %v1958 = vsel %vm1955, %v1957, %v1953
  %v1959 = vmul.f32 1.0, %v1958
  %v1960 = vtanh.pop %v1824
  %v1961 = vxor.u32 %v1825, 2147483648
  %v1962 = vmul.f32 %v1961, 1.442695
  %v1963 = vpow.pop %v1962
  %v1964 = vadd.f32 %v1963, 1.0
  %v1965 = vrcp.pop %v1964
  %v1966 = vmul.f32 %v1964, %v1965
  %v1967 = vsub.f32 1.0, %v1966
  %v1968 = vmul.f32 %v1965, %v1967
  %v1969 = vadd.f32 %v1965, %v1968
  %vm1970 = vweird.f32 %v1964
  %vm1971 = vweird.f32 %v1965
  %vm1972 = vmor %vm1970, %vm1971
  %v1973 = vsel %vm1972, %v1965, %v1969
  %v1974 = vand.u32 2147483647, %v1964
  %vm1975 = vcmp.eq.f32.partialorder %v1974, 8.507059e+37
  %v1976 = vand.u32 %v1964, 2147483648
  %v1977 = vor.u32 1.1754944e-38, %v1976
  %v1978 = vsel %vm1975, %v1977, %v1973
  %v1979 = vmul.f32 1.0, %v1978
  %v1980 = vmul.f32 %v1959, %v1670
  %v1981 = vmul.f32 %v1940, %v1960
  %v1982 = vadd.f32 %v1980, %v1981
  %v1983 = vtanh.pop %v1982
  %v1984 = vmul.f32 %v1979, %v1983
  %v1985 = vsel %vm1739, %v1984, %v1666
  %v1986 = vsel %vm1739, %v1982, %v1670
  %v1987 = vxor.u32 %v1918, 2147483648
  %v1988 = vmul.f32 %v1987, 1.442695
  %v1989 = vpow.pop %v1988
  %v1990 = vadd.f32 %v1989, 1.0
  %v1991 = vrcp.pop %v1990
  %v1992 = vmul.f32 %v1990, %v1991
  %v1993 = vsub.f32 1.0, %v1992
  %v1994 = vmul.f32 %v1991, %v1993
  %v1995 = vadd.f32 %v1991, %v1994
  %vm1996 = vweird.f32 %v1990
  %vm1997 = vweird.f32 %v1991
  %vm1998 = vmor %vm1996, %vm1997
  %v1999 = vsel %vm1998, %v1991, %v1995
  %v2000 = vand.u32 2147483647, %v1990
  %vm2001 = vcmp.eq.f32.partialorder %v2000, 8.507059e+37
  %v2002 = vand.u32 %v1990, 2147483648
  %v2003 = vor.u32 1.1754944e-38, %v2002
  %v2004 = vsel %vm2001, %v2003, %v1999
  %v2005 = vmul.f32 1.0, %v2004
  %v2006 = vxor.u32 %v1919, 2147483648
  %v2007 = vmul.f32 %v2006, 1.442695
  %v2008 = vpow.pop %v2007
  %v2009 = vadd.f32 %v2008, 1.0
  %v2010 = vrcp.pop %v2009
  %v2011 = vmul.f32 %v2009, %v2010
  %v2012 = vsub.f32 1.0, %v2011
  %v2013 = vmul.f32 %v2010, %v2012
  %v2014 = vadd.f32 %v2010, %v2013
  %vm2015 = vweird.f32 %v2009
  %vm2016 = vweird.f32 %v2010
  %vm2017 = vmor %vm2015, %vm2016
  %v2018 = vsel %vm2017, %v2010, %v2014
  %v2019 = vand.u32 2147483647, %v2009
  %vm2020 = vcmp.eq.f32.partialorder %v2019, 8.507059e+37
  %v2021 = vand.u32 %v2009, 2147483648
  %v2022 = vor.u32 1.1754944e-38, %v2021
  %v2023 = vsel %vm2020, %v2022, %v2018
  %v2024 = vmul.f32 1.0, %v2023
  %v2025 = vtanh.pop %v1920
  %v2026 = vxor.u32 %v1921, 2147483648
  %v2027 = vmul.f32 %v2026, 1.442695
  %v2028 = vpow.pop %v2027
  %v2029 = vadd.f32 %v2028, 1.0
  %v2030 = vrcp.pop %v2029
  %v2031 = vmul.f32 %v2029, %v2030
  %v2032 = vsub.f32 1.0, %v2031
  %v2033 = vmul.f32 %v2030, %v2032
  %v2034 = vadd.f32 %v2030, %v2033
  %vm2035 = vweird.f32 %v2029
  %vm2036 = vweird.f32 %v2030
  %vm2037 = vmor %vm2035, %vm2036
  %v2038 = vsel %vm2037, %v2030, %v2034
  %v2039 = vand.u32 2147483647, %v2029
  %vm2040 = vcmp.eq.f32.partialorder %v2039, 8.507059e+37
  %v2041 = vand.u32 %v2029, 2147483648
  %v2042 = vor.u32 1.1754944e-38, %v2041
  %v2043 = vsel %vm2040, %v2042, %v2038
  %v2044 = vmul.f32 1.0, %v2043
  %v2046 = vrot.slane %v1741, 2
  %v2048 = vmul.f32 %v2024, %v2046
  %v2049 = vmul.f32 %v2005, %v2025
  %v2050 = vadd.f32 %v2048, %v2049
  %v2051 = vtanh.pop %v2050
  %v2052 = vmul.f32 %v2044, %v2051
  %v2054 = vrot.slane %v2052, 6
  %v2056 = vsel %vm1662, %v2054, %v1740
  %v2058 = vrot.slane %v2050, 6
  %v2060 = vsel %vm1662, %v2058, %v1741
  %2061 = vmatpush.msra.mxu0 %v84
  %2062 = vmatpush.msra.mxu0 %v80
  %2063 = vmatpush.msra.mxu0 %v76
  %2064 = vmatpush.msra.mxu0 %v72
  %2065 = vmatpush.msra.mxu0 %v68
  %2066 = vmatpush.msra.mxu0 %v64
  %2067 = vmatpush.msra.mxu0 %v60
  %2068 = vmatpush.msra.mxu0 %v56
  %2069 = vmatpush.msra.mxu0 %v52
  %2070 = vmatpush.msra.mxu0 %v48
  %2071 = vmatpush.msra.mxu0 %v44
  %2072 = vmatpush.msra.mxu0 %v40
  %2073 = vmatpush.msra.mxu0 %v36
  %2074 = vmatpush.msra.mxu0 %v32
  %2075 = vmatpush.msra.mxu0 %v28
  %2076 = vmatpush.msra.mxu0 %v24
  %2077 = vmatmul.f32.gmra.mxu0 %v1985
  %v2078 = vpop.f32.mrf.mxu0
  %v2079 = vadd.f32 0.0, %v2078
  %2080 = vdwg.mxu0
  %2081 = vmatpush.msra.mxu0 %v85
  %2082 = vmatpush.msra.mxu0 %v81
  %2083 = vmatpush.msra.mxu0 %v77
  %2084 = vmatpush.msra.mxu0 %v73
  %2085 = vmatpush.msra.mxu0 %v69
  %2086 = vmatpush.msra.mxu0 %v65
  %2087 = vmatpush.msra.mxu0 %v61
  %2088 = vmatpush.msra.mxu0 %v57
  %2089 = vmatpush.msra.mxu0 %v53
  %2090 = vmatpush.msra.mxu0 %v49
  %2091 = vmatpush.msra.mxu0 %v45
  %2092 = vmatpush.msra.mxu0 %v41
  %2093 = vmatpush.msra.mxu0 %v37
  %2094 = vmatpush.msra.mxu0 %v33
  %2095 = vmatpush.msra.mxu0 %v29
  %2096 = vmatpush.msra.mxu0 %v25
  %2097 = vmatmul.f32.gmra.mxu0 %v1985
  %v2098 = vpop.f32.mrf.mxu0
  %v2099 = vadd.f32 0.0, %v2098
  %2100 = vdwg.mxu0
  %2101 = vmatpush.msra.mxu0 %v86
  %2102 = vmatpush.msra.mxu0 %v82
  %2103 = vmatpush.msra.mxu0 %v78
  %2104 = vmatpush.msra.mxu0 %v74
  %2105 = vmatpush.msra.mxu0 %v70
  %2106 = vmatpush.msra.mxu0 %v66
  %2107 = vmatpush.msra.mxu0 %v62
  %2108 = vmatpush.msra.mxu0 %v58
  %2109 = vmatpush.msra.mxu0 %v54
  %2110 = vmatpush.msra.mxu0 %v50
  %2111 = vmatpush.msra.mxu0 %v46
  %2112 = vmatpush.msra.mxu0 %v42
  %2113 = vmatpush.msra.mxu0 %v38
  %2114 = vmatpush.msra.mxu0 %v34
  %2115 = vmatpush.msra.mxu0 %v30
  %2116 = vmatpush.msra.mxu0 %v26
  %2117 = vmatmul.f32.gmra.mxu0 %v1985
  %v2118 = vpop.f32.mrf.mxu0
  %v2119 = vadd.f32 0.0, %v2118
  %2120 = vdwg.mxu0
  %2121 = vmatpush.msra.mxu0 %v87
  %2122 = vmatpush.msra.mxu0 %v83
  %2123 = vmatpush.msra.mxu0 %v79
  %2124 = vmatpush.msra.mxu0 %v75
  %2125 = vmatpush.msra.mxu0 %v71
  %2126 = vmatpush.msra.mxu0 %v67
  %2127 = vmatpush.msra.mxu0 %v63
  %2128 = vmatpush.msra.mxu0 %v59
  %2129 = vmatpush.msra.mxu0 %v55
  %2130 = vmatpush.msra.mxu0 %v51
  %2131 = vmatpush.msra.mxu0 %v47
  %2132 = vmatpush.msra.mxu0 %v43
  %2133 = vmatpush.msra.mxu0 %v39
  %2134 = vmatpush.msra.mxu0 %v35
  %2135 = vmatpush.msra.mxu0 %v31
  %2136 = vmatpush.msra.mxu0 %v27
  %2137 = vmatmul.f32.gmra.mxu0 %v1985
  %v2138 = vpop.f32.mrf.mxu0
  %v2139 = vadd.f32 0.0, %v2138
  %2140 = vdwg.mxu0
  %v2145 = vrot.slane %v2079, 6
  %v2146 = vrot.slane %v2099, 6
  %v2147 = vrot.slane %v2119, 6
  %v2148 = vrot.slane %v2139, 6
  %v2153 = vadd.f32 %v216, %v2145
  %v2154 = vadd.f32 %v239, %v2146
  %v2155 = vadd.f32 %v262, %v2147
  %v2156 = vadd.f32 %v285, %v2148
  %2157 = vmatpush.msra.mxu0 %v148
  %2158 = vmatpush.msra.mxu0 %v144
  %2159 = vmatpush.msra.mxu0 %v140
  %2160 = vmatpush.msra.mxu0 %v136
  %2161 = vmatpush.msra.mxu0 %v132
  %2162 = vmatpush.msra.mxu0 %v128
  %2163 = vmatpush.msra.mxu0 %v124
  %2164 = vmatpush.msra.mxu0 %v120
  %2165 = vmatpush.msra.mxu0 %v116
  %2166 = vmatpush.msra.mxu0 %v112
  %2167 = vmatpush.msra.mxu0 %v108
  %2168 = vmatpush.msra.mxu0 %v104
  %2169 = vmatpush.msra.mxu0 %v100
  %2170 = vmatpush.msra.mxu0 %v96
  %2171 = vmatpush.msra.mxu0 %v92
  %2172 = vmatpush.msra.mxu0 %v88
  %2173 = vmatmul.f32.gmra.mxu0 %v2056
  %v2174 = vpop.f32.mrf.mxu0
  %v2175 = vadd.f32 0.0, %v2174
  %2176 = vdwg.mxu0
  %2177 = vmatpush.msra.mxu0 %v149
  %2178 = vmatpush.msra.mxu0 %v145
  %2179 = vmatpush.msra.mxu0 %v141
  %2180 = vmatpush.msra.mxu0 %v137
  %2181 = vmatpush.msra.mxu0 %v133
  %2182 = vmatpush.msra.mxu0 %v129
  %2183 = vmatpush.msra.mxu0 %v125
  %2184 = vmatpush.msra.mxu0 %v121
  %2185 = vmatpush.msra.mxu0 %v117
  %2186 = vmatpush.msra.mxu0 %v113
  %2187 = vmatpush.msra.mxu0 %v109
  %2188 = vmatpush.msra.mxu0 %v105
  %2189 = vmatpush.msra.mxu0 %v101
  %2190 = vmatpush.msra.mxu0 %v97
  %2191 = vmatpush.msra.mxu0 %v93
  %2192 = vmatpush.msra.mxu0 %v89
  %2193 = vmatmul.f32.gmra.mxu0 %v2056
  %v2194 = vpop.f32.mrf.mxu0
  %v2195 = vadd.f32 0.0, %v2194
  %2196 = vdwg.mxu0
  %2197 = vmatpush.msra.mxu0 %v150
  %2198 = vmatpush.msra.mxu0 %v146
  %2199 = vmatpush.msra.mxu0 %v142
  %2200 = vmatpush.msra.mxu0 %v138
  %2201 = vmatpush.msra.mxu0 %v134
  %2202 = vmatpush.msra.mxu0 %v130
  %2203 = vmatpush.msra.mxu0 %v126
  %2204 = vmatpush.msra.mxu0 %v122
  %2205 = vmatpush.msra.mxu0 %v118
  %2206 = vmatpush.msra.mxu0 %v114
  %2207 = vmatpush.msra.mxu0 %v110
  %2208 = vmatpush.msra.mxu0 %v106
  %2209 = vmatpush.msra.mxu0 %v102
  %2210 = vmatpush.msra.mxu0 %v98
  %2211 = vmatpush.msra.mxu0 %v94
  %2212 = vmatpush.msra.mxu0 %v90
  %2213 = vmatmul.f32.gmra.mxu0 %v2056
  %v2214 = vpop.f32.mrf.mxu0
  %v2215 = vadd.f32 0.0, %v2214
  %2216 = vdwg.mxu0
  %2217 = vmatpush.msra.mxu0 %v151
  %2218 = vmatpush.msra.mxu0 %v147
  %2219 = vmatpush.msra.mxu0 %v143
  %2220 = vmatpush.msra.mxu0 %v139
  %2221 = vmatpush.msra.mxu0 %v135
  %2222 = vmatpush.msra.mxu0 %v131
  %2223 = vmatpush.msra.mxu0 %v127
  %2224 = vmatpush.msra.mxu0 %v123
  %2225 = vmatpush.msra.mxu0 %v119
  %2226 = vmatpush.msra.mxu0 %v115
  %2227 = vmatpush.msra.mxu0 %v111
  %2228 = vmatpush.msra.mxu0 %v107
  %2229 = vmatpush.msra.mxu0 %v103
  %2230 = vmatpush.msra.mxu0 %v99
  %2231 = vmatpush.msra.mxu0 %v95
  %2232 = vmatpush.msra.mxu0 %v91
  %2233 = vmatmul.f32.gmra.mxu0 %v2056
  %v2234 = vpop.f32.mrf.mxu0
  %v2235 = vadd.f32 0.0, %v2234
  %2236 = vdwg.mxu0
  %v2241 = vrot.slane %v2175, 4
  %v2242 = vrot.slane %v2195, 4
  %v2243 = vrot.slane %v2215, 4
  %v2244 = vrot.slane %v2235, 4
  %v2249 = vadd.f32 %v305, %v2241
  %v2250 = vadd.f32 %v328, %v2242
  %v2251 = vadd.f32 %v351, %v2243
  %v2252 = vadd.f32 %v374, %v2244
  %v2253 = vxor.u32 %v2153, 2147483648
  %v2254 = vmul.f32 %v2253, 1.442695
  %v2255 = vpow.pop %v2254
  %v2256 = vadd.f32 %v2255, 1.0
  %v2257 = vrcp.pop %v2256
  %v2258 = vmul.f32 %v2256, %v2257
  %v2259 = vsub.f32 1.0, %v2258
  %v2260 = vmul.f32 %v2257, %v2259
  %v2261 = vadd.f32 %v2257, %v2260
  %vm2262 = vweird.f32 %v2256
  %vm2263 = vweird.f32 %v2257
  %vm2264 = vmor %vm2262, %vm2263
  %v2265 = vsel %vm2264, %v2257, %v2261
  %v2266 = vand.u32 2147483647, %v2256
  %vm2267 = vcmp.eq.f32.partialorder %v2266, 8.507059e+37
  %v2268 = vand.u32 %v2256, 2147483648
  %v2269 = vor.u32 1.1754944e-38, %v2268
  %v2270 = vsel %vm2267, %v2269, %v2265
  %v2271 = vmul.f32 1.0, %v2270
  %v2272 = vxor.u32 %v2154, 2147483648
  %v2273 = vmul.f32 %v2272, 1.442695
  %v2274 = vpow.pop %v2273
  %v2275 = vadd.f32 %v2274, 1.0
  %v2276 = vrcp.pop %v2275
  %v2277 = vmul.f32 %v2275, %v2276
  %v2278 = vsub.f32 1.0, %v2277
  %v2279 = vmul.f32 %v2276, %v2278
  %v2280 = vadd.f32 %v2276, %v2279
  %vm2281 = vweird.f32 %v2275
  %vm2282 = vweird.f32 %v2276
  %vm2283 = vmor %vm2281, %vm2282
  %v2284 = vsel %vm2283, %v2276, %v2280
  %v2285 = vand.u32 2147483647, %v2275
  %vm2286 = vcmp.eq.f32.partialorder %v2285, 8.507059e+37
  %v2287 = vand.u32 %v2275, 2147483648
  %v2288 = vor.u32 1.1754944e-38, %v2287
  %v2289 = vsel %vm2286, %v2288, %v2284
  %v2290 = vmul.f32 1.0, %v2289
  %v2291 = vtanh.pop %v2155
  %v2292 = vxor.u32 %v2156, 2147483648
  %v2293 = vmul.f32 %v2292, 1.442695
  %v2294 = vpow.pop %v2293
  %v2295 = vadd.f32 %v2294, 1.0
  %v2296 = vrcp.pop %v2295
  %v2297 = vmul.f32 %v2295, %v2296
  %v2298 = vsub.f32 1.0, %v2297
  %v2299 = vmul.f32 %v2296, %v2298
  %v2300 = vadd.f32 %v2296, %v2299
  %vm2301 = vweird.f32 %v2295
  %vm2302 = vweird.f32 %v2296
  %vm2303 = vmor %vm2301, %vm2302
  %v2304 = vsel %vm2303, %v2296, %v2300
  %v2305 = vand.u32 2147483647, %v2295
  %vm2306 = vcmp.eq.f32.partialorder %v2305, 8.507059e+37
  %v2307 = vand.u32 %v2295, 2147483648
  %v2308 = vor.u32 1.1754944e-38, %v2307
  %v2309 = vsel %vm2306, %v2308, %v2304
  %v2310 = vmul.f32 1.0, %v2309
  %v2312 = vrot.slane %v1986, 6
  %v2314 = vmul.f32 %v2290, %v2312
  %v2315 = vmul.f32 %v2271, %v2291
  %v2316 = vadd.f32 %v2314, %v2315
  %v2317 = vtanh.pop %v2316
  %v2318 = vmul.f32 %v2310, %v2317
  %v2320 = vrot.slane %v2318, 2
  %v2322 = vsel %vm1402, %v2320, %v1985
  %v2324 = vrot.slane %v2316, 2
  %v2326 = vsel %vm1402, %v2324, %v1986
  %v2327 = vxor.u32 %v2249, 2147483648
  %v2328 = vmul.f32 %v2327, 1.442695
  %v2329 = vpow.pop %v2328
  %v2330 = vadd.f32 %v2329, 1.0
  %v2331 = vrcp.pop %v2330
  %v2332 = vmul.f32 %v2330, %v2331
  %v2333 = vsub.f32 1.0, %v2332
  %v2334 = vmul.f32 %v2331, %v2333
  %v2335 = vadd.f32 %v2331, %v2334
  %vm2336 = vweird.f32 %v2330
  %vm2337 = vweird.f32 %v2331
  %vm2338 = vmor %vm2336, %vm2337
  %v2339 = vsel %vm2338, %v2331, %v2335
  %v2340 = vand.u32 2147483647, %v2330
  %vm2341 = vcmp.eq.f32.partialorder %v2340, 8.507059e+37
  %v2342 = vand.u32 %v2330, 2147483648
  %v2343 = vor.u32 1.1754944e-38, %v2342
  %v2344 = vsel %vm2341, %v2343, %v2339
  %v2345 = vmul.f32 1.0, %v2344
  %v2346 = vxor.u32 %v2250, 2147483648
  %v2347 = vmul.f32 %v2346, 1.442695
  %v2348 = vpow.pop %v2347
  %v2349 = vadd.f32 %v2348, 1.0
  %v2350 = vrcp.pop %v2349
  %v2351 = vmul.f32 %v2349, %v2350
  %v2352 = vsub.f32 1.0, %v2351
  %v2353 = vmul.f32 %v2350, %v2352
  %v2354 = vadd.f32 %v2350, %v2353
  %vm2355 = vweird.f32 %v2349
  %vm2356 = vweird.f32 %v2350
  %vm2357 = vmor %vm2355, %vm2356
  %v2358 = vsel %vm2357, %v2350, %v2354
  %v2359 = vand.u32 2147483647, %v2349
  %vm2360 = vcmp.eq.f32.partialorder %v2359, 8.507059e+37
  %v2361 = vand.u32 %v2349, 2147483648
  %v2362 = vor.u32 1.1754944e-38, %v2361
  %v2363 = vsel %vm2360, %v2362, %v2358
  %v2364 = vmul.f32 1.0, %v2363
  %v2365 = vtanh.pop %v2251
  %v2366 = vxor.u32 %v2252, 2147483648
  %v2367 = vmul.f32 %v2366, 1.442695
  %v2368 = vpow.pop %v2367
  %v2369 = vadd.f32 %v2368, 1.0
  %v2370 = vrcp.pop %v2369
  %v2371 = vmul.f32 %v2369, %v2370
  %v2372 = vsub.f32 1.0, %v2371
  %v2373 = vmul.f32 %v2370, %v2372
  %v2374 = vadd.f32 %v2370, %v2373
  %vm2375 = vweird.f32 %v2369
  %vm2376 = vweird.f32 %v2370
  %vm2377 = vmor %vm2375, %vm2376
  %v2378 = vsel %vm2377, %v2370, %v2374
  %v2379 = vand.u32 2147483647, %v2369
  %vm2380 = vcmp.eq.f32.partialorder %v2379, 8.507059e+37
  %v2381 = vand.u32 %v2369, 2147483648
  %v2382 = vor.u32 1.1754944e-38, %v2381
  %v2383 = vsel %vm2380, %v2382, %v2378
  %v2384 = vmul.f32 1.0, %v2383
  %v2386 = vrot.slane %v2060, 4
  %v2388 = vmul.f32 %v2364, %v2386
  %v2389 = vmul.f32 %v2345, %v2365
  %v2390 = vadd.f32 %v2388, %v2389
  %v2391 = vtanh.pop %v2390
  %v2392 = vmul.f32 %v2384, %v2391
  %v2394 = vrot.slane %v2392, 4
  %v2396 = vsel %vm1322, %v2394, %v2056
  %v2398 = vrot.slane %v2390, 4
  %v2400 = vsel %vm1322, %v2398, %v2060
  %2401 = vmatpush.msra.mxu0 %v84
  %2402 = vmatpush.msra.mxu0 %v80
  %2403 = vmatpush.msra.mxu0 %v76
  %2404 = vmatpush.msra.mxu0 %v72
  %2405 = vmatpush.msra.mxu0 %v68
  %2406 = vmatpush.msra.mxu0 %v64
  %2407 = vmatpush.msra.mxu0 %v60
  %2408 = vmatpush.msra.mxu0 %v56
  %2409 = vmatpush.msra.mxu0 %v52
  %2410 = vmatpush.msra.mxu0 %v48
  %2411 = vmatpush.msra.mxu0 %v44
  %2412 = vmatpush.msra.mxu0 %v40
  %2413 = vmatpush.msra.mxu0 %v36
  %2414 = vmatpush.msra.mxu0 %v32
  %2415 = vmatpush.msra.mxu0 %v28
  %2416 = vmatpush.msra.mxu0 %v24
  %2417 = vmatmul.f32.gmra.mxu0 %v2322
  %v2418 = vpop.f32.mrf.mxu0
  %v2419 = vadd.f32 0.0, %v2418
  %2420 = vdwg.mxu0
  %2421 = vmatpush.msra.mxu0 %v85
  %2422 = vmatpush.msra.mxu0 %v81
  %2423 = vmatpush.msra.mxu0 %v77
  %2424 = vmatpush.msra.mxu0 %v73
  %2425 = vmatpush.msra.mxu0 %v69
  %2426 = vmatpush.msra.mxu0 %v65
  %2427 = vmatpush.msra.mxu0 %v61
  %2428 = vmatpush.msra.mxu0 %v57
  %2429 = vmatpush.msra.mxu0 %v53
  %2430 = vmatpush.msra.mxu0 %v49
  %2431 = vmatpush.msra.mxu0 %v45
  %2432 = vmatpush.msra.mxu0 %v41
  %2433 = vmatpush.msra.mxu0 %v37
  %2434 = vmatpush.msra.mxu0 %v33
  %2435 = vmatpush.msra.mxu0 %v29
  %2436 = vmatpush.msra.mxu0 %v25
  %2437 = vmatmul.f32.gmra.mxu0 %v2322
  %v2438 = vpop.f32.mrf.mxu0
  %v2439 = vadd.f32 0.0, %v2438
  %2440 = vdwg.mxu0
  %2441 = vmatpush.msra.mxu0 %v86
  %2442 = vmatpush.msra.mxu0 %v82
  %2443 = vmatpush.msra.mxu0 %v78
  %2444 = vmatpush.msra.mxu0 %v74
  %2445 = vmatpush.msra.mxu0 %v70
  %2446 = vmatpush.msra.mxu0 %v66
  %2447 = vmatpush.msra.mxu0 %v62
  %2448 = vmatpush.msra.mxu0 %v58
  %2449 = vmatpush.msra.mxu0 %v54
  %2450 = vmatpush.msra.mxu0 %v50
  %2451 = vmatpush.msra.mxu0 %v46
  %2452 = vmatpush.msra.mxu0 %v42
  %2453 = vmatpush.msra.mxu0 %v38
  %2454 = vmatpush.msra.mxu0 %v34
  %2455 = vmatpush.msra.mxu0 %v30
  %2456 = vmatpush.msra.mxu0 %v26
  %2457 = vmatmul.f32.gmra.mxu0 %v2322
  %v2458 = vpop.f32.mrf.mxu0
  %v2459 = vadd.f32 0.0, %v2458
  %2460 = vdwg.mxu0
  %2461 = vmatpush.msra.mxu0 %v87
  %2462 = vmatpush.msra.mxu0 %v83
  %2463 = vmatpush.msra.mxu0 %v79
  %2464 = vmatpush.msra.mxu0 %v75
  %2465 = vmatpush.msra.mxu0 %v71
  %2466 = vmatpush.msra.mxu0 %v67
  %2467 = vmatpush.msra.mxu0 %v63
  %2468 = vmatpush.msra.mxu0 %v59
  %2469 = vmatpush.msra.mxu0 %v55
  %2470 = vmatpush.msra.mxu0 %v51
  %2471 = vmatpush.msra.mxu0 %v47
  %2472 = vmatpush.msra.mxu0 %v43
  %2473 = vmatpush.msra.mxu0 %v39
  %2474 = vmatpush.msra.mxu0 %v35
  %2475 = vmatpush.msra.mxu0 %v31
  %2476 = vmatpush.msra.mxu0 %v27
  %2477 = vmatmul.f32.gmra.mxu0 %v2322
  %v2478 = vpop.f32.mrf.mxu0
  %v2479 = vadd.f32 0.0, %v2478
  %2480 = vdwg.mxu0
  %v2485 = vrot.slane %v2419, 4
  %v2486 = vrot.slane %v2439, 4
  %v2487 = vrot.slane %v2459, 4
  %v2488 = vrot.slane %v2479, 4
  %v2493 = vadd.f32 %v216, %v2485
  %v2494 = vadd.f32 %v239, %v2486
  %v2495 = vadd.f32 %v262, %v2487
  %v2496 = vadd.f32 %v285, %v2488
  %2497 = vmatpush.msra.mxu0 %v148
  %2498 = vmatpush.msra.mxu0 %v144
  %2499 = vmatpush.msra.mxu0 %v140
  %2500 = vmatpush.msra.mxu0 %v136
  %2501 = vmatpush.msra.mxu0 %v132
  %2502 = vmatpush.msra.mxu0 %v128
  %2503 = vmatpush.msra.mxu0 %v124
  %2504 = vmatpush.msra.mxu0 %v120
  %2505 = vmatpush.msra.mxu0 %v116
  %2506 = vmatpush.msra.mxu0 %v112
  %2507 = vmatpush.msra.mxu0 %v108
  %2508 = vmatpush.msra.mxu0 %v104
  %2509 = vmatpush.msra.mxu0 %v100
  %2510 = vmatpush.msra.mxu0 %v96
  %2511 = vmatpush.msra.mxu0 %v92
  %2512 = vmatpush.msra.mxu0 %v88
  %2513 = vmatmul.f32.gmra.mxu0 %v2396
  %v2514 = vpop.f32.mrf.mxu0
  %v2515 = vadd.f32 0.0, %v2514
  %2516 = vdwg.mxu0
  %2517 = vmatpush.msra.mxu0 %v149
  %2518 = vmatpush.msra.mxu0 %v145
  %2519 = vmatpush.msra.mxu0 %v141
  %2520 = vmatpush.msra.mxu0 %v137
  %2521 = vmatpush.msra.mxu0 %v133
  %2522 = vmatpush.msra.mxu0 %v129
  %2523 = vmatpush.msra.mxu0 %v125
  %2524 = vmatpush.msra.mxu0 %v121
  %2525 = vmatpush.msra.mxu0 %v117
  %2526 = vmatpush.msra.mxu0 %v113
  %2527 = vmatpush.msra.mxu0 %v109
  %2528 = vmatpush.msra.mxu0 %v105
  %2529 = vmatpush.msra.mxu0 %v101
  %2530 = vmatpush.msra.mxu0 %v97
  %2531 = vmatpush.msra.mxu0 %v93
  %2532 = vmatpush.msra.mxu0 %v89
  %2533 = vmatmul.f32.gmra.mxu0 %v2396
  %v2534 = vpop.f32.mrf.mxu0
  %v2535 = vadd.f32 0.0, %v2534
  %2536 = vdwg.mxu0
  %2537 = vmatpush.msra.mxu0 %v150
  %2538 = vmatpush.msra.mxu0 %v146
  %2539 = vmatpush.msra.mxu0 %v142
  %2540 = vmatpush.msra.mxu0 %v138
  %2541 = vmatpush.msra.mxu0 %v134
  %2542 = vmatpush.msra.mxu0 %v130
  %2543 = vmatpush.msra.mxu0 %v126
  %2544 = vmatpush.msra.mxu0 %v122
  %2545 = vmatpush.msra.mxu0 %v118
  %2546 = vmatpush.msra.mxu0 %v114
  %2547 = vmatpush.msra.mxu0 %v110
  %2548 = vmatpush.msra.mxu0 %v106
  %2549 = vmatpush.msra.mxu0 %v102
  %2550 = vmatpush.msra.mxu0 %v98
  %2551 = vmatpush.msra.mxu0 %v94
  %2552 = vmatpush.msra.mxu0 %v90
  %2553 = vmatmul.f32.gmra.mxu0 %v2396
  %v2554 = vpop.f32.mrf.mxu0
  %v2555 = vadd.f32 0.0, %v2554
  %2556 = vdwg.mxu0
  %2557 = vmatpush.msra.mxu0 %v151
  %2558 = vmatpush.msra.mxu0 %v147
  %2559 = vmatpush.msra.mxu0 %v143
  %2560 = vmatpush.msra.mxu0 %v139
  %2561 = vmatpush.msra.mxu0 %v135
  %2562 = vmatpush.msra.mxu0 %v131
  %2563 = vmatpush.msra.mxu0 %v127
  %2564 = vmatpush.msra.mxu0 %v123
  %2565 = vmatpush.msra.mxu0 %v119
  %2566 = vmatpush.msra.mxu0 %v115
  %2567 = vmatpush.msra.mxu0 %v111
  %2568 = vmatpush.msra.mxu0 %v107
  %2569 = vmatpush.msra.mxu0 %v103
  %2570 = vmatpush.msra.mxu0 %v99
  %2571 = vmatpush.msra.mxu0 %v95
  %2572 = vmatpush.msra.mxu0 %v91
  %2573 = vmatmul.f32.gmra.mxu0 %v2396
  %v2574 = vpop.f32.mrf.mxu0
  %v2575 = vadd.f32 0.0, %v2574
  %2576 = vdwg.mxu0
  %v2581 = vrot.slane %v2515, 6
  %v2582 = vrot.slane %v2535, 6
  %v2583 = vrot.slane %v2555, 6
  %v2584 = vrot.slane %v2575, 6
  %v2589 = vadd.f32 %v305, %v2581
  %v2590 = vadd.f32 %v328, %v2582
  %v2591 = vadd.f32 %v351, %v2583
  %v2592 = vadd.f32 %v374, %v2584
  %v2593 = vxor.u32 %v2493, 2147483648
  %v2594 = vmul.f32 %v2593, 1.442695
  %v2595 = vpow.pop %v2594
  %v2596 = vadd.f32 %v2595, 1.0
  %v2597 = vrcp.pop %v2596
  %v2598 = vmul.f32 %v2596, %v2597
  %v2599 = vsub.f32 1.0, %v2598
  %v2600 = vmul.f32 %v2597, %v2599
  %v2601 = vadd.f32 %v2597, %v2600
  %vm2602 = vweird.f32 %v2596
  %vm2603 = vweird.f32 %v2597
  %vm2604 = vmor %vm2602, %vm2603
  %v2605 = vsel %vm2604, %v2597, %v2601
  %v2606 = vand.u32 2147483647, %v2596
  %vm2607 = vcmp.eq.f32.partialorder %v2606, 8.507059e+37
  %v2608 = vand.u32 %v2596, 2147483648
  %v2609 = vor.u32 1.1754944e-38, %v2608
  %v2610 = vsel %vm2607, %v2609, %v2605
  %v2611 = vmul.f32 1.0, %v2610
  %v2612 = vxor.u32 %v2494, 2147483648
  %v2613 = vmul.f32 %v2612, 1.442695
  %v2614 = vpow.pop %v2613
  %v2615 = vadd.f32 %v2614, 1.0
  %v2616 = vrcp.pop %v2615
  %v2617 = vmul.f32 %v2615, %v2616
  %v2618 = vsub.f32 1.0, %v2617
  %v2619 = vmul.f32 %v2616, %v2618
  %v2620 = vadd.f32 %v2616, %v2619
  %vm2621 = vweird.f32 %v2615
  %vm2622 = vweird.f32 %v2616
  %vm2623 = vmor %vm2621, %vm2622
  %v2624 = vsel %vm2623, %v2616, %v2620
  %v2625 = vand.u32 2147483647, %v2615
  %vm2626 = vcmp.eq.f32.partialorder %v2625, 8.507059e+37
  %v2627 = vand.u32 %v2615, 2147483648
  %v2628 = vor.u32 1.1754944e-38, %v2627
  %v2629 = vsel %vm2626, %v2628, %v2624
  %v2630 = vmul.f32 1.0, %v2629
  %v2631 = vtanh.pop %v2495
  %v2632 = vxor.u32 %v2496, 2147483648
  %v2633 = vmul.f32 %v2632, 1.442695
  %v2634 = vpow.pop %v2633
  %v2635 = vadd.f32 %v2634, 1.0
  %v2636 = vrcp.pop %v2635
  %v2637 = vmul.f32 %v2635, %v2636
  %v2638 = vsub.f32 1.0, %v2637
  %v2639 = vmul.f32 %v2636, %v2638
  %v2640 = vadd.f32 %v2636, %v2639
  %vm2641 = vweird.f32 %v2635
  %vm2642 = vweird.f32 %v2636
  %vm2643 = vmor %vm2641, %vm2642
  %v2644 = vsel %vm2643, %v2636, %v2640
  %v2645 = vand.u32 2147483647, %v2635
  %vm2646 = vcmp.eq.f32.partialorder %v2645, 8.507059e+37
  %v2647 = vand.u32 %v2635, 2147483648
  %v2648 = vor.u32 1.1754944e-38, %v2647
  %v2649 = vsel %vm2646, %v2648, %v2644
  %v2650 = vmul.f32 1.0, %v2649
  %v2652 = vrot.slane %v2326, 4
  %v2654 = vmul.f32 %v2630, %v2652
  %v2655 = vmul.f32 %v2611, %v2631
  %v2656 = vadd.f32 %v2654, %v2655
  %v2657 = vtanh.pop %v2656
  %v2658 = vmul.f32 %v2650, %v2657
  %v2660 = vrot.slane %v2658, 4
  %v2662 = vsel %vm1050, %v2660, %v2322
  %v2664 = vrot.slane %v2656, 4
  %v2666 = vsel %vm1050, %v2664, %v2326
  %v2667 = vxor.u32 %v2589, 2147483648
  %v2668 = vmul.f32 %v2667, 1.442695
  %v2669 = vpow.pop %v2668
  %v2670 = vadd.f32 %v2669, 1.0
  %v2671 = vrcp.pop %v2670
  %v2672 = vmul.f32 %v2670, %v2671
  %v2673 = vsub.f32 1.0, %v2672
  %v2674 = vmul.f32 %v2671, %v2673
  %v2675 = vadd.f32 %v2671, %v2674
  %vm2676 = vweird.f32 %v2670
  %vm2677 = vweird.f32 %v2671
  %vm2678 = vmor %vm2676, %vm2677
  %v2679 = vsel %vm2678, %v2671, %v2675
  %v2680 = vand.u32 2147483647, %v2670
  %vm2681 = vcmp.eq.f32.partialorder %v2680, 8.507059e+37
  %v2682 = vand.u32 %v2670, 2147483648
  %v2683 = vor.u32 1.1754944e-38, %v2682
  %v2684 = vsel %vm2681, %v2683, %v2679
  %v2685 = vmul.f32 1.0, %v2684
  %v2686 = vxor.u32 %v2590, 2147483648
  %v2687 = vmul.f32 %v2686, 1.442695
  %v2688 = vpow.pop %v2687
  %v2689 = vadd.f32 %v2688, 1.0
  %v2690 = vrcp.pop %v2689
  %v2691 = vmul.f32 %v2689, %v2690
  %v2692 = vsub.f32 1.0, %v2691
  %v2693 = vmul.f32 %v2690, %v2692
  %v2694 = vadd.f32 %v2690, %v2693
  %vm2695 = vweird.f32 %v2689
  %vm2696 = vweird.f32 %v2690
  %vm2697 = vmor %vm2695, %vm2696
  %v2698 = vsel %vm2697, %v2690, %v2694
  %v2699 = vand.u32 2147483647, %v2689
  %vm2700 = vcmp.eq.f32.partialorder %v2699, 8.507059e+37
  %v2701 = vand.u32 %v2689, 2147483648
  %v2702 = vor.u32 1.1754944e-38, %v2701
  %v2703 = vsel %vm2700, %v2702, %v2698
  %v2704 = vmul.f32 1.0, %v2703
  %v2705 = vtanh.pop %v2591
  %v2706 = vxor.u32 %v2592, 2147483648
  %v2707 = vmul.f32 %v2706, 1.442695
  %v2708 = vpow.pop %v2707
  %v2709 = vadd.f32 %v2708, 1.0
  %v2710 = vrcp.pop %v2709
  %v2711 = vmul.f32 %v2709, %v2710
  %v2712 = vsub.f32 1.0, %v2711
  %v2713 = vmul.f32 %v2710, %v2712
  %v2714 = vadd.f32 %v2710, %v2713
  %vm2715 = vweird.f32 %v2709
  %vm2716 = vweird.f32 %v2710
  %vm2717 = vmor %vm2715, %vm2716
  %v2718 = vsel %vm2717, %v2710, %v2714
  %v2719 = vand.u32 2147483647, %v2709
  %vm2720 = vcmp.eq.f32.partialorder %v2719, 8.507059e+37
  %v2721 = vand.u32 %v2709, 2147483648
  %v2722 = vor.u32 1.1754944e-38, %v2721
  %v2723 = vsel %vm2720, %v2722, %v2718
  %v2724 = vmul.f32 1.0, %v2723
  %v2726 = vrot.slane %v2400, 6
  %v2728 = vmul.f32 %v2704, %v2726
  %v2729 = vmul.f32 %v2685, %v2705
  %v2730 = vadd.f32 %v2728, %v2729
  %v2731 = vtanh.pop %v2730
  %v2732 = vmul.f32 %v2724, %v2731
  %v2734 = vrot.slane %v2732, 2
  %v2736 = vsel %vm970, %v2734, %v2396
  %v2738 = vrot.slane %v2730, 2
  %v2740 = vsel %vm970, %v2738, %v2400
  %2741 = vmatpush.msra.mxu0 %v84
  %2742 = vmatpush.msra.mxu0 %v80
  %2743 = vmatpush.msra.mxu0 %v76
  %2744 = vmatpush.msra.mxu0 %v72
  %2745 = vmatpush.msra.mxu0 %v68
  %2746 = vmatpush.msra.mxu0 %v64
  %2747 = vmatpush.msra.mxu0 %v60
  %2748 = vmatpush.msra.mxu0 %v56
  %2749 = vmatpush.msra.mxu0 %v52
  %2750 = vmatpush.msra.mxu0 %v48
  %2751 = vmatpush.msra.mxu0 %v44
  %2752 = vmatpush.msra.mxu0 %v40
  %2753 = vmatpush.msra.mxu0 %v36
  %2754 = vmatpush.msra.mxu0 %v32
  %2755 = vmatpush.msra.mxu0 %v28
  %2756 = vmatpush.msra.mxu0 %v24
  %2757 = vmatmul.f32.gmra.mxu0 %v2662
  %v2758 = vpop.f32.mrf.mxu0
  %v2759 = vadd.f32 0.0, %v2758
  %2760 = vdwg.mxu0
  %2761 = vmatpush.msra.mxu0 %v85
  %2762 = vmatpush.msra.mxu0 %v81
  %2763 = vmatpush.msra.mxu0 %v77
  %2764 = vmatpush.msra.mxu0 %v73
  %2765 = vmatpush.msra.mxu0 %v69
  %2766 = vmatpush.msra.mxu0 %v65
  %2767 = vmatpush.msra.mxu0 %v61
  %2768 = vmatpush.msra.mxu0 %v57
  %2769 = vmatpush.msra.mxu0 %v53
  %2770 = vmatpush.msra.mxu0 %v49
  %2771 = vmatpush.msra.mxu0 %v45
  %2772 = vmatpush.msra.mxu0 %v41
  %2773 = vmatpush.msra.mxu0 %v37
  %2774 = vmatpush.msra.mxu0 %v33
  %2775 = vmatpush.msra.mxu0 %v29
  %2776 = vmatpush.msra.mxu0 %v25
  %2777 = vmatmul.f32.gmra.mxu0 %v2662
  %v2778 = vpop.f32.mrf.mxu0
  %v2779 = vadd.f32 0.0, %v2778
  %2780 = vdwg.mxu0
  %2781 = vmatpush.msra.mxu0 %v86
  %2782 = vmatpush.msra.mxu0 %v82
  %2783 = vmatpush.msra.mxu0 %v78
  %2784 = vmatpush.msra.mxu0 %v74
  %2785 = vmatpush.msra.mxu0 %v70
  %2786 = vmatpush.msra.mxu0 %v66
  %2787 = vmatpush.msra.mxu0 %v62
  %2788 = vmatpush.msra.mxu0 %v58
  %2789 = vmatpush.msra.mxu0 %v54
  %2790 = vmatpush.msra.mxu0 %v50
  %2791 = vmatpush.msra.mxu0 %v46
  %2792 = vmatpush.msra.mxu0 %v42
  %2793 = vmatpush.msra.mxu0 %v38
  %2794 = vmatpush.msra.mxu0 %v34
  %2795 = vmatpush.msra.mxu0 %v30
  %2796 = vmatpush.msra.mxu0 %v26
  %2797 = vmatmul.f32.gmra.mxu0 %v2662
  %v2798 = vpop.f32.mrf.mxu0
  %v2799 = vadd.f32 0.0, %v2798
  %2800 = vdwg.mxu0
  %2801 = vmatpush.msra.mxu0 %v87
  %2802 = vmatpush.msra.mxu0 %v83
  %2803 = vmatpush.msra.mxu0 %v79
  %2804 = vmatpush.msra.mxu0 %v75
  %2805 = vmatpush.msra.mxu0 %v71
  %2806 = vmatpush.msra.mxu0 %v67
  %2807 = vmatpush.msra.mxu0 %v63
  %2808 = vmatpush.msra.mxu0 %v59
  %2809 = vmatpush.msra.mxu0 %v55
  %2810 = vmatpush.msra.mxu0 %v51
  %2811 = vmatpush.msra.mxu0 %v47
  %2812 = vmatpush.msra.mxu0 %v43
  %2813 = vmatpush.msra.mxu0 %v39
  %2814 = vmatpush.msra.mxu0 %v35
  %2815 = vmatpush.msra.mxu0 %v31
  %2816 = vmatpush.msra.mxu0 %v27
  %2817 = vmatmul.f32.gmra.mxu0 %v2662
  %v2818 = vpop.f32.mrf.mxu0
  %v2819 = vadd.f32 0.0, %v2818
  %2820 = vdwg.mxu0
  %v2825 = vrot.slane %v2759, 2
  %v2826 = vrot.slane %v2779, 2
  %v2827 = vrot.slane %v2799, 2
  %v2828 = vrot.slane %v2819, 2
  %v2833 = vadd.f32 %v216, %v2825
  %v2834 = vadd.f32 %v239, %v2826
  %v2835 = vadd.f32 %v262, %v2827
  %v2836 = vadd.f32 %v285, %v2828
  %2837 = vmatpush.msra.mxu0 %v148
  %2838 = vmatpush.msra.mxu0 %v144
  %2839 = vmatpush.msra.mxu0 %v140
  %2840 = vmatpush.msra.mxu0 %v136
  %2841 = vmatpush.msra.mxu0 %v132
  %2842 = vmatpush.msra.mxu0 %v128
  %2843 = vmatpush.msra.mxu0 %v124
  %2844 = vmatpush.msra.mxu0 %v120
  %2845 = vmatpush.msra.mxu0 %v116
  %2846 = vmatpush.msra.mxu0 %v112
  %2847 = vmatpush.msra.mxu0 %v108
  %2848 = vmatpush.msra.mxu0 %v104
  %2849 = vmatpush.msra.mxu0 %v100
  %2850 = vmatpush.msra.mxu0 %v96
  %2851 = vmatpush.msra.mxu0 %v92
  %2852 = vmatpush.msra.mxu0 %v88
  %2853 = vmatmul.f32.gmra.mxu0 %v2736
  %v2854 = vpop.f32.mrf.mxu0
  %v2855 = vadd.f32 0.0, %v2854
  %2856 = vdwg.mxu0
  %2857 = vmatpush.msra.mxu0 %v149
  %2858 = vmatpush.msra.mxu0 %v145
  %2859 = vmatpush.msra.mxu0 %v141
  %2860 = vmatpush.msra.mxu0 %v137
  %2861 = vmatpush.msra.mxu0 %v133
  %2862 = vmatpush.msra.mxu0 %v129
  %2863 = vmatpush.msra.mxu0 %v125
  %2864 = vmatpush.msra.mxu0 %v121
  %2865 = vmatpush.msra.mxu0 %v117
  %2866 = vmatpush.msra.mxu0 %v113
  %2867 = vmatpush.msra.mxu0 %v109
  %2868 = vmatpush.msra.mxu0 %v105
  %2869 = vmatpush.msra.mxu0 %v101
  %2870 = vmatpush.msra.mxu0 %v97
  %2871 = vmatpush.msra.mxu0 %v93
  %2872 = vmatpush.msra.mxu0 %v89
  %2873 = vmatmul.f32.gmra.mxu0 %v2736
  %v2874 = vpop.f32.mrf.mxu0
  %v2875 = vadd.f32 0.0, %v2874
  %2876 = vdwg.mxu0
  %2877 = vmatpush.msra.mxu0 %v150
  %2878 = vmatpush.msra.mxu0 %v146
  %2879 = vmatpush.msra.mxu0 %v142
  %2880 = vmatpush.msra.mxu0 %v138
  %2881 = vmatpush.msra.mxu0 %v134
  %2882 = vmatpush.msra.mxu0 %v130
  %2883 = vmatpush.msra.mxu0 %v126
  %2884 = vmatpush.msra.mxu0 %v122
  %2885 = vmatpush.msra.mxu0 %v118
  %2886 = vmatpush.msra.mxu0 %v114
  %2887 = vmatpush.msra.mxu0 %v110
  %2888 = vmatpush.msra.mxu0 %v106
  %2889 = vmatpush.msra.mxu0 %v102
  %2890 = vmatpush.msra.mxu0 %v98
  %2891 = vmatpush.msra.mxu0 %v94
  %2892 = vmatpush.msra.mxu0 %v90
  %2893 = vmatmul.f32.gmra.mxu0 %v2736
  %v2894 = vpop.f32.mrf.mxu0
  %v2895 = vadd.f32 0.0, %v2894
  %2896 = vdwg.mxu0
  %2897 = vmatpush.msra.mxu0 %v151
  %2898 = vmatpush.msra.mxu0 %v147
  %2899 = vmatpush.msra.mxu0 %v143
  %2900 = vmatpush.msra.mxu0 %v139
  %2901 = vmatpush.msra.mxu0 %v135
  %2902 = vmatpush.msra.mxu0 %v131
  %2903 = vmatpush.msra.mxu0 %v127
  %2904 = vmatpush.msra.mxu0 %v123
  %2905 = vmatpush.msra.mxu0 %v119
  %2906 = vmatpush.msra.mxu0 %v115
  %2907 = vmatpush.msra.mxu0 %v111
  %2908 = vmatpush.msra.mxu0 %v107
  %2909 = vmatpush.msra.mxu0 %v103
  %2910 = vmatpush.msra.mxu0 %v99
  %2911 = vmatpush.msra.mxu0 %v95
  %2912 = vmatpush.msra.mxu0 %v91
  %2913 = vmatmul.f32.gmra.mxu0 %v2736
  %v2914 = vpop.f32.mrf.mxu0
  %v2915 = vadd.f32 0.0, %v2914
  %2916 = vdwg.mxu0
  %v2917 = vadd.f32 %v305, %v2855
  %v2918 = vadd.f32 %v328, %v2875
  %v2919 = vadd.f32 %v351, %v2895
  %v2920 = vadd.f32 %v374, %v2915
  %v2921 = vxor.u32 %v2833, 2147483648
  %v2922 = vmul.f32 %v2921, 1.442695
  %v2923 = vpow.pop %v2922
  %v2924 = vadd.f32 %v2923, 1.0
  %v2925 = vrcp.pop %v2924
  %v2926 = vmul.f32 %v2924, %v2925
  %v2927 = vsub.f32 1.0, %v2926
  %v2928 = vmul.f32 %v2925, %v2927
  %v2929 = vadd.f32 %v2925, %v2928
  %vm2930 = vweird.f32 %v2924
  %vm2931 = vweird.f32 %v2925
  %vm2932 = vmor %vm2930, %vm2931
  %v2933 = vsel %vm2932, %v2925, %v2929
  %v2934 = vand.u32 2147483647, %v2924
  %vm2935 = vcmp.eq.f32.partialorder %v2934, 8.507059e+37
  %v2936 = vand.u32 %v2924, 2147483648
  %v2937 = vor.u32 1.1754944e-38, %v2936
  %v2938 = vsel %vm2935, %v2937, %v2933
  %v2939 = vmul.f32 1.0, %v2938
  %v2940 = vxor.u32 %v2834, 2147483648
  %v2941 = vmul.f32 %v2940, 1.442695
  %v2942 = vpow.pop %v2941
  %v2943 = vadd.f32 %v2942, 1.0
  %v2944 = vrcp.pop %v2943
  %v2945 = vmul.f32 %v2943, %v2944
  %v2946 = vsub.f32 1.0, %v2945
  %v2947 = vmul.f32 %v2944, %v2946
  %v2948 = vadd.f32 %v2944, %v2947
  %vm2949 = vweird.f32 %v2943
  %vm2950 = vweird.f32 %v2944
  %vm2951 = vmor %vm2949, %vm2950
  %v2952 = vsel %vm2951, %v2944, %v2948
  %v2953 = vand.u32 2147483647, %v2943
  %vm2954 = vcmp.eq.f32.partialorder %v2953, 8.507059e+37
  %v2955 = vand.u32 %v2943, 2147483648
  %v2956 = vor.u32 1.1754944e-38, %v2955
  %v2957 = vsel %vm2954, %v2956, %v2952
  %v2958 = vmul.f32 1.0, %v2957
  %v2959 = vtanh.pop %v2835
  %v2960 = vxor.u32 %v2836, 2147483648
  %v2961 = vmul.f32 %v2960, 1.442695
  %v2962 = vpow.pop %v2961
  %v2963 = vadd.f32 %v2962, 1.0
  %v2964 = vrcp.pop %v2963
  %v2965 = vmul.f32 %v2963, %v2964
  %v2966 = vsub.f32 1.0, %v2965
  %v2967 = vmul.f32 %v2964, %v2966
  %v2968 = vadd.f32 %v2964, %v2967
  %vm2969 = vweird.f32 %v2963
  %vm2970 = vweird.f32 %v2964
  %vm2971 = vmor %vm2969, %vm2970
  %v2972 = vsel %vm2971, %v2964, %v2968
  %v2973 = vand.u32 2147483647, %v2963
  %vm2974 = vcmp.eq.f32.partialorder %v2973, 8.507059e+37
  %v2975 = vand.u32 %v2963, 2147483648
  %v2976 = vor.u32 1.1754944e-38, %v2975
  %v2977 = vsel %vm2974, %v2976, %v2972
  %v2978 = vmul.f32 1.0, %v2977
  %v2980 = vrot.slane %v2666, 2
  %v2982 = vmul.f32 %v2958, %v2980
  %v2983 = vmul.f32 %v2939, %v2959
  %v2984 = vadd.f32 %v2982, %v2983
  %v2985 = vtanh.pop %v2984
  %v2986 = vmul.f32 %v2978, %v2985
  %v2988 = vrot.slane %v2986, 6
  %v2990 = vsel %vm698, %v2988, %v2662
  %v2991 = vxor.u32 %v2917, 2147483648
  %v2992 = vmul.f32 %v2991, 1.442695
  %v2993 = vpow.pop %v2992
  %v2994 = vadd.f32 %v2993, 1.0
  %v2995 = vrcp.pop %v2994
  %v2996 = vmul.f32 %v2994, %v2995
  %v2997 = vsub.f32 1.0, %v2996
  %v2998 = vmul.f32 %v2995, %v2997
  %v2999 = vadd.f32 %v2995, %v2998
  %vm3000 = vweird.f32 %v2994
  %vm3001 = vweird.f32 %v2995
  %vm3002 = vmor %vm3000, %vm3001
  %v3003 = vsel %vm3002, %v2995, %v2999
  %v3004 = vand.u32 2147483647, %v2994
  %vm3005 = vcmp.eq.f32.partialorder %v3004, 8.507059e+37
  %v3006 = vand.u32 %v2994, 2147483648
  %v3007 = vor.u32 1.1754944e-38, %v3006
  %v3008 = vsel %vm3005, %v3007, %v3003
  %v3009 = vmul.f32 1.0, %v3008
  %v3010 = vxor.u32 %v2918, 2147483648
  %v3011 = vmul.f32 %v3010, 1.442695
  %v3012 = vpow.pop %v3011
  %v3013 = vadd.f32 %v3012, 1.0
  %v3014 = vrcp.pop %v3013
  %v3015 = vmul.f32 %v3013, %v3014
  %v3016 = vsub.f32 1.0, %v3015
  %v3017 = vmul.f32 %v3014, %v3016
  %v3018 = vadd.f32 %v3014, %v3017
  %vm3019 = vweird.f32 %v3013
  %vm3020 = vweird.f32 %v3014
  %vm3021 = vmor %vm3019, %vm3020
  %v3022 = vsel %vm3021, %v3014, %v3018
  %v3023 = vand.u32 2147483647, %v3013
  %vm3024 = vcmp.eq.f32.partialorder %v3023, 8.507059e+37
  %v3025 = vand.u32 %v3013, 2147483648
  %v3026 = vor.u32 1.1754944e-38, %v3025
  %v3027 = vsel %vm3024, %v3026, %v3022
  %v3028 = vmul.f32 1.0, %v3027
  %v3029 = vtanh.pop %v2919
  %v3030 = vxor.u32 %v2920, 2147483648
  %v3031 = vmul.f32 %v3030, 1.442695
  %v3032 = vpow.pop %v3031
  %v3033 = vadd.f32 %v3032, 1.0
  %v3034 = vrcp.pop %v3033
  %v3035 = vmul.f32 %v3033, %v3034
  %v3036 = vsub.f32 1.0, %v3035
  %v3037 = vmul.f32 %v3034, %v3036
  %v3038 = vadd.f32 %v3034, %v3037
  %vm3039 = vweird.f32 %v3033
  %vm3040 = vweird.f32 %v3034
  %vm3041 = vmor %vm3039, %vm3040
  %v3042 = vsel %vm3041, %v3034, %v3038
  %v3043 = vand.u32 2147483647, %v3033
  %vm3044 = vcmp.eq.f32.partialorder %v3043, 8.507059e+37
  %v3045 = vand.u32 %v3033, 2147483648
  %v3046 = vor.u32 1.1754944e-38, %v3045
  %v3047 = vsel %vm3044, %v3046, %v3042
  %v3048 = vmul.f32 1.0, %v3047
  %v3049 = vmul.f32 %v3028, %v2740
  %v3050 = vmul.f32 %v3009, %v3029
  %v3051 = vadd.f32 %v3049, %v3050
  %v3052 = vtanh.pop %v3051
  %v3053 = vmul.f32 %v3048, %v3052
  %v3054 = vsel %vm627, %v3053, %v2736
  %3055 = vst [vmem:[%s6] sm:$0x3] %v2990
  %3056 = vst [vmem:[%s6 + $0x2] sm:$0x3] %v3054
  // Predicated region
  $region26: #{net_forward.2} parent=0 // pred_check
    _
  $region27: #{net_forward.2} parent=0 // pred_check_branch
    %3058 = sbr.rel (0) target = $region29
  $region28: #{net_forward.2} parent=0 // pred_region
    _
  $region29: #{net_forward.2} parent=0 // pred_fallthru
    _
  // Predicated region
  $region30: #{net_forward.2} parent=0 // pred_check
    _
  $region31: #{net_forward.2} parent=0 // pred_check_branch
    %3060 = sbr.rel (0) target = $region33
  $region32: #{net_forward.2} parent=0 // pred_region
    _
  $region33: #{net_forward.2} parent=0 // pred_fallthru
    _

</llo_original>
